<compile_context>
chip_gen: v7x
topology: tpu7x:2x2x1
jax: 0.10.0
libtpu: 0.0.40
codegen_flags: <defaults>
</compile_context>

<pallas_src>
import functools

import jax
import jax.numpy as jnp
from jax.experimental import pallas as pl
from jax.experimental.pallas import tpu as pltpu


# ----------------------------------------------------------------------------
# Fused bidirectional GRU layer, time-chunked: grid = (2 directions, T_pad/K)
# ----------------------------------------------------------------------------
def _bigru_kernel(gi_ref, valid_ref, whh_ref, bhh_ref, out_ref,
                  h_scr, o_scr, *, H, K):
    """One (direction, time-chunk) grid point; K timesteps per invocation.

    gi_ref   : (K, bs, 3H) f32   precomputed x @ W_ih + b_ih (original time order)
    valid_ref: (K, bs, 1)  f32   1.0 while t < length else 0.0
    whh_ref  : (H, 3H)     bf16  recurrent weights of this direction
    bhh_ref  : (1, 3H)     f32
    out_ref  : (K, bs, H)  bf16  time-chunk slice of (T_pad, bs, 2H), lane slab d
    h_scr    : (2, bs, H)  f32   per-direction hidden state (carried over chunks)
    o_scr    : (K, bs, H)  f32   chunk output staging buffer
    """
    d = pl.program_id(0)
    c = pl.program_id(1)

    @pl.when(c == 0)
    def _():
        h_scr[d] = jnp.zeros(h_scr.shape[1:], h_scr.dtype)

    whh = whh_ref[...]                                  # (H, 3H) bf16
    bhh = bhh_ref[...]                                  # (1, 3H) f32

    def step(k, h):
        # local row inside the chunk: k for fwd, K-1-k for bwd
        row = k + d * (K - 1 - 2 * k)
        gi = gi_ref[row]                                # (bs, 3H) f32
        v = valid_ref[row]                              # (bs, 1)  f32
        gh = jnp.dot(h.astype(jnp.bfloat16), whh,
                     preferred_element_type=jnp.float32) + bhh
        # PyTorch GRU gate order [r, z, n]; b_hn sits inside the r-product.
        r = jax.nn.sigmoid(gi[:, 0 * H:1 * H] + gh[:, 0 * H:1 * H])
        z = jax.nn.sigmoid(gi[:, 1 * H:2 * H] + gh[:, 1 * H:2 * H])
        n = jnp.tanh(gi[:, 2 * H:3 * H] + r * gh[:, 2 * H:3 * H])
        h_new = (1.0 - z) * n + z * h
        o_scr[row] = v * h_new                          # zero outputs past length
        return v * h_new + (1.0 - v) * h                # freeze h past length

    h_scr[d] = jax.lax.fori_loop(0, K, step, h_scr[d], unroll=True)
    out_ref[...] = o_scr[...].astype(out_ref.dtype)     # one dense (K,bs,H) store


def bigru_layer(gi, valid, whh, bhh, *, K):
    """gi: (2, T_pad, bs, 3H) f32 (original time order for both directions).

    Returns (T_pad, bs, 2H) bf16 with fwd in lanes 0:H and bwd in lanes H:2H.
    """
    _, T_pad, bs, threeH = gi.shape
    H = threeH // 3
    C = T_pad // K

    def tc_idx(d, c):
        # forward processes chunk c, backward processes chunk C-1-c
        return c + d * (C - 1 - 2 * c)

    return pl.pallas_call(
        functools.partial(_bigru_kernel, H=H, K=K),
        out_shape=jax.ShapeDtypeStruct((T_pad, bs, 2 * H), jnp.bfloat16),
        grid=(2, C),
        in_specs=[
            pl.BlockSpec((None, K, bs, threeH),
                         lambda d, c: (d, tc_idx(d, c), 0, 0)),
            pl.BlockSpec((K, bs, 1), lambda d, c: (tc_idx(d, c), 0, 0)),
            pl.BlockSpec((None, H, threeH), lambda d, c: (d, 0, 0)),
            pl.BlockSpec((None, 1, threeH), lambda d, c: (d, 0, 0)),
        ],
        out_specs=pl.BlockSpec((K, bs, H), lambda d, c: (tc_idx(d, c), 0, d)),
        scratch_shapes=[pltpu.VMEM((2, bs, H), jnp.float32),
                        pltpu.VMEM((K, bs, H), jnp.float32)],
        compiler_params=pltpu.CompilerParams(
            dimension_semantics=("parallel", "arbitrary")),
    )(gi, valid, whh, bhh)


# ----------------------------------------------------------------------------
# Articulator head with the shared Linear(2H->H)+ReLU fused in.
# grid = (A, M_tiles), both parallel; x/y heads fused lane-dense (256, 2*S_pad)
# ----------------------------------------------------------------------------
def _head_kernel(feat_ref, w1_ref, b1_ref,
                 g1_ref, be1_ref, w2_ref, b2_ref, g2_ref, be2_ref,
                 w3_ref, b3_ref, g3_ref, be3_ref, wxy_ref, bxy_ref, out_ref):
    def layer_norm(h, g, b):
        mu = jnp.mean(h, axis=-1, keepdims=True)
        var = jnp.mean(jnp.square(h - mu), axis=-1, keepdims=True)
        return (h - mu) * jax.lax.rsqrt(var + 1e-5) * g + b

    # shared Linear(2H -> H) + ReLU, recomputed per articulator (fusion)
    h = jnp.maximum(
        jnp.dot(feat_ref[...], w1_ref[...],
                preferred_element_type=jnp.float32) + b1_ref[...], 0.0)
    h = layer_norm(h, g1_ref[...], be1_ref[...])
    h = jnp.maximum(
        jnp.dot(h.astype(jnp.bfloat16), w2_ref[...],
                preferred_element_type=jnp.float32) + b2_ref[...], 0.0)
    h = layer_norm(h, g2_ref[...], be2_ref[...])
    h = jnp.maximum(
        jnp.dot(h.astype(jnp.bfloat16), w3_ref[...],
                preferred_element_type=jnp.float32) + b3_ref[...], 0.0)
    h = layer_norm(h, g3_ref[...], be3_ref[...])
    out_ref[...] = jax.nn.sigmoid(
        jnp.dot(h.astype(jnp.bfloat16), wxy_ref[...],
                preferred_element_type=jnp.float32) + bxy_ref[...])


def head_call(feat, w1, b1, art, *, block_m):
    """feat: (Mp, 2H) bf16, rows in (batch, time) order.

    Returns (Mp, A * 2*S_pad) f32; per articulator, lanes are [x(S_pad)|y(S_pad)].
    """
    Mp, F = feat.shape
    H = w1.shape[1]
    A = art["w2"].shape[0]
    P2 = art["wxy"].shape[-1]                     # 2 * S_pad (multiple of 128)

    def art_spec(shape):
        return pl.BlockSpec((None,) + shape, lambda a, m: (a, 0, 0))

    in_specs = [
        pl.BlockSpec((block_m, F), lambda a, m: (m, 0)),
        pl.BlockSpec((F, H), lambda a, m: (0, 0)),      # w1 (shared)
        pl.BlockSpec((1, H), lambda a, m: (0, 0)),      # b1 (shared)
        art_spec((1, H)),        # g1
        art_spec((1, H)),        # be1
        art_spec((H, 256)),      # w2
        art_spec((1, 256)),      # b2
        art_spec((1, 256)),      # g2
        art_spec((1, 256)),      # be2
        art_spec((256, 256)),    # w3
        art_spec((1, 256)),      # b3
        art_spec((1, 256)),      # g3
        art_spec((1, 256)),      # be3
        art_spec((256, P2)),     # wxy (fused x|y)
        art_spec((1, P2)),       # bxy
    ]
    out_specs = pl.BlockSpec((block_m, P2), lambda a, m: (m, a))

    return pl.pallas_call(
        _head_kernel,
        out_shape=jax.ShapeDtypeStruct((Mp, A * P2), jnp.float32),
        grid=(A, Mp // block_m),
        in_specs=in_specs,
        out_specs=out_specs,
        compiler_params=pltpu.CompilerParams(
            dimension_semantics=("parallel", "parallel")),
    )(feat, w1, b1, art["g1"], art["be1"], art["w2"], art["b2"], art["g2"],
      art["be2"], art["w3"], art["b3"], art["g3"], art["be3"],
      art["wxy"], art["bxy"])


def _choose_block_m(M):
    """Pick a head row-tile that minimizes padding of M (per perf review)."""
    if M <= 128:
        bm = max(8, -(-M // 8) * 8)
        return bm, bm
    best_bm, best_mp = None, None
    for bm in (128, 256, 512, 1024):
        mp = -(-M // bm) * bm
        if best_mp is None or mp < best_mp or (mp == best_mp and bm > best_bm):
            best_bm, best_mp = bm, mp
    return best_bm, best_mp


# ----------------------------------------------------------------------------
# Parameter init (deterministic, synthetic)
# ----------------------------------------------------------------------------
def init_params(key, vocab_size, n_articulators, embed_dim, hidden_size,
                n_samples, s_pad):
    H, E, A, S = hidden_size, embed_dim, n_articulators, n_samples
    keys = iter(jax.random.split(key, 64))

    def w(shape, scale=0.1, dtype=jnp.bfloat16):
        return (scale * jax.random.normal(next(keys), shape)).astype(dtype)

    params = {"embedding": w((vocab_size, E), 0.5, jnp.float32)}

    # 2-layer bidirectional GRU; direction axis stacked in front, gates [r,z,n]
    gru = []
    for layer in range(2):
        in_dim = E if layer == 0 else 2 * H
        gru.append({
            "wih": w((2, in_dim, 3 * H)),                       # bf16 (MXU)
            "bih": jnp.zeros((2, 1, 1, 3 * H), jnp.float32),
            "whh": w((2, H, 3 * H)),                            # bf16 (MXU)
            "bhh": jnp.zeros((2, 1, 3 * H), jnp.float32),
        })
    params["gru"] = gru

    # shared Linear(2H -> H) + ReLU (fused into the head kernel)
    params["w1"] = w((2 * H, H))
    params["b1"] = jnp.zeros((1, H), jnp.float32)

    # per-articulator predictors; x/y heads fused and lane-padded to 2*s_pad
    wx = w((A, 256, S), dtype=jnp.float32)
    wy = w((A, 256, S), dtype=jnp.float32)
    pad = ((0, 0), (0, 0), (0, s_pad - S))
    wxy = jnp.concatenate([jnp.pad(wx, pad), jnp.pad(wy, pad)],
                          axis=-1).astype(jnp.bfloat16)
    params["art"] = {
        "g1": jnp.ones((A, 1, H), jnp.float32),
        "be1": jnp.zeros((A, 1, H), jnp.float32),
        "w2": w((A, H, 256)),
        "b2": jnp.zeros((A, 1, 256), jnp.float32),
        "g2": jnp.ones((A, 1, 256), jnp.float32),
        "be2": jnp.zeros((A, 1, 256), jnp.float32),
        "w3": w((A, 256, 256)),
        "b3": jnp.zeros((A, 1, 256), jnp.float32),
        "g3": jnp.ones((A, 1, 256), jnp.float32),
        "be3": jnp.zeros((A, 1, 256), jnp.float32),
        "wxy": wxy,
        "bxy": jnp.zeros((A, 1, 2 * s_pad), jnp.float32),
    }
    return params


# ----------------------------------------------------------------------------
# Full forward pass
# ----------------------------------------------------------------------------
def artspeech_forward(params, x_ids, lengths, *, n_samples):
    bs, T = x_ids.shape
    H = params["gru"][0]["whh"].shape[1]
    A = params["art"]["w2"].shape[0]
    S = n_samples
    s_pad = params["art"]["wxy"].shape[-1] // 2

    # time-chunk size for the recurrent kernels (amortizes per-step overhead)
    K = 8 if T <= 8 else (16 if T <= 128 else 32)
    T_pad = -(-T // K) * K

    lens = jnp.asarray(lengths, jnp.int32)
    valid = (jnp.arange(T_pad, dtype=jnp.int32)[:, None] < lens[None, :])
    valid = valid.astype(jnp.float32)[:, :, None]                 # (T_pad, bs, 1)

    # Embedding gather (plain XLA glue), bf16 for MXU inputs.
    embed = params["embedding"][x_ids].astype(jnp.bfloat16)       # (bs, T, E)

    # --- GRU layer 0: input projection hoisted out of the recurrence ---
    g0 = params["gru"][0]
    gi0 = jnp.einsum("bte,deh->dtbh", embed, g0["wih"],
                     preferred_element_type=jnp.float32) + g0["bih"]
    if T_pad != T:
        gi0 = jnp.pad(gi0, ((0, 0), (0, T_pad - T), (0, 0), (0, 0)))
    h0 = bigru_layer(gi0, valid, g0["whh"], g0["bhh"], K=K)       # (T_pad, bs, 2H)

    # --- GRU layer 1 ---
    g1 = params["gru"][1]
    gi1 = jnp.einsum("tbf,dfh->dtbh", h0, g1["wih"],
                     preferred_element_type=jnp.float32) + g1["bih"]
    rnn_out = bigru_layer(gi1, valid, g1["whh"], g1["bhh"], K=K)  # (T_pad, bs, 2H)

    # --- head: rows in (batch, time) order so the output needs no transpose ---
    feat = jnp.transpose(rnn_out[:T], (1, 0, 2)).reshape(bs * T, 2 * H)  # bf16
    M = bs * T
    block_m, Mp = _choose_block_m(M)
    if Mp != M:
        feat = jnp.pad(feat, ((0, Mp - M), (0, 0)))

    out = head_call(feat, params["w1"], params["b1"], params["art"],
                    block_m=block_m)                              # (Mp, A*2*s_pad)

    # free reshape to PyTorch layout, then drop the lane padding (S_pad -> S)
    out = out[:M].reshape(bs, T, A, 2, s_pad)[..., :S]            # (bs, T, A, 2, S)
    return out


# ----------------------------------------------------------------------------
if __name__ == "__main__":
    vocab_size = 40
    n_articulators = 3
    embed_dim = 64
    hidden_size = 128
    n_samples = 50
    bs, seq_len = 2, 8

    key = jax.random.PRNGKey(0)
    k_params, k_ids = jax.random.split(key)

    s_pad = ((n_samples + 63) // 64) * 64          # 50 -> 64 (lane-dense 2*64=128)
    params = init_params(k_params, vocab_size, n_articulators,
                         embed_dim, hidden_size, n_samples, s_pad)

    x_ids = jax.random.randint(k_ids, (bs, seq_len), 0, vocab_size, dtype=jnp.int32)
    lengths = jnp.array([seq_len, 5], jnp.int32)   # sorted decreasing (packed seq)

    fwd = jax.jit(functools.partial(artspeech_forward, n_samples=n_samples))
    out = fwd(params, x_ids, lengths)
    out = jax.block_until_ready(out)

    assert out.shape == (bs, seq_len, n_articulators, 2, n_samples), out.shape
    assert bool(jnp.all(jnp.isfinite(out)))
    print("KERNEL_OK")
</pallas_src>

<mosaic_0001>
module attributes {stable_mosaic.version = 11 : i64} {
  func.func @_bigru_kernel(%arg0: i32, %arg1: i32, %arg2: memref<1x8x2x384xf32, #tpu.memory_space<vmem>>, %arg3: memref<8x2x1xf32, #tpu.memory_space<vmem>>, %arg4: memref<1x128x384xbf16, #tpu.memory_space<vmem>>, %arg5: memref<1x1x384xf32, #tpu.memory_space<vmem>>, %arg6: memref<8x2x128xbf16, #tpu.memory_space<vmem>>, %arg7: memref<2x2x128xf32, #tpu.memory_space<vmem>>, %arg8: memref<8x2x128xf32, #tpu.memory_space<vmem>>) attributes {dimension_semantics = [#tpu.dimension_semantics<parallel>, #tpu.dimension_semantics<arbitrary>], iteration_bounds = array<i64: 2, 1>, scalar_prefetch = 0 : i64, scratch_operands = 2 : i64, tpu.core_type = #tpu.core_type<tc>, window_params = [{transform_indices = @transform_0, window_bounds = array<i64: 1, 8, 2, 384>}, {transform_indices = @transform_1, window_bounds = array<i64: 8, 2, 1>}, {transform_indices = @transform_2, window_bounds = array<i64: 1, 128, 384>}, {transform_indices = @transform_3, window_bounds = array<i64: 1, 1, 384>}, {transform_indices = @transform_4, window_bounds = array<i64: 8, 2, 128>}]} {
    %c0_i32 = arith.constant 0 : i32
    %0 = arith.cmpi eq, %arg1, %c0_i32 : i32
    %1 = arith.extui %0 : i1 to i32
    %c0_i32_0 = arith.constant 0 : i32
    %2 = arith.cmpi ne, %1, %c0_i32_0 : i32
    scf.if %2 {
      %cst_128 = arith.constant 0.000000e+00 : f32
      %441 = vector.broadcast %cst_128 : f32 to vector<2x128xf32>
      %442 = arith.index_cast %arg0 : i32 to index
      %c0_129 = arith.constant 0 : index
      %c0_130 = arith.constant 0 : index
      %443 = vector.load %arg7[%442, %c0_129, %c0_130] : memref<2x2x128xf32, #tpu.memory_space<vmem>>, vector<1x2x128xf32>
      %444 = vector.shape_cast %443 : vector<1x2x128xf32> to vector<2x128xf32>
      %445 = vector.shape_cast %441 : vector<2x128xf32> to vector<1x2x128xf32>
      tpu.vector_store %arg7[%442, %c0_129, %c0_130], %445 {strides = array<i32>} : memref<2x2x128xf32, #tpu.memory_space<vmem>>, vector<1x2x128xf32>,
    } else {
    }
    %c0 = arith.constant 0 : index
    %c0_1 = arith.constant 0 : index
    %c0_2 = arith.constant 0 : index
    %3 = vector.load %arg4[%c0, %c0_1, %c0_2] : memref<1x128x384xbf16, #tpu.memory_space<vmem>>, vector<1x128x384xbf16>
    %4 = vector.shape_cast %3 : vector<1x128x384xbf16> to vector<128x384xbf16>
    %c0_3 = arith.constant 0 : index
    %c0_4 = arith.constant 0 : index
    %c0_5 = arith.constant 0 : index
    %5 = vector.load %arg5[%c0_3, %c0_4, %c0_5] : memref<1x1x384xf32, #tpu.memory_space<vmem>>, vector<1x1x384xf32>
    %6 = vector.shape_cast %5 : vector<1x1x384xf32> to vector<1x384xf32>
    %7 = arith.index_cast %arg0 : i32 to index
    %c0_6 = arith.constant 0 : index
    %c0_7 = arith.constant 0 : index
    %8 = vector.load %arg7[%7, %c0_6, %c0_7] : memref<2x2x128xf32, #tpu.memory_space<vmem>>, vector<1x2x128xf32>
    %9 = vector.shape_cast %8 : vector<1x2x128xf32> to vector<2x128xf32>
    %c0_i32_8 = arith.constant 0 : i32
    %c2_i32 = arith.constant 2 : i32
    %10 = arith.muli %c2_i32, %c0_i32_8 : i32
    %c7_i32 = arith.constant 7 : i32
    %11 = arith.subi %c7_i32, %10 : i32
    %12 = arith.muli %arg0, %11 : i32
    %13 = arith.addi %c0_i32_8, %12 : i32
    %c0_9 = arith.constant 0 : index
    %14 = arith.index_cast %13 : i32 to index
    %c0_10 = arith.constant 0 : index
    %c0_11 = arith.constant 0 : index
    %15 = vector.load %arg2[%c0_9, %14, %c0_10, %c0_11] : memref<1x8x2x384xf32, #tpu.memory_space<vmem>>, vector<1x1x2x384xf32>
    %16 = vector.shape_cast %15 : vector<1x1x2x384xf32> to vector<2x384xf32>
    %17 = arith.index_cast %13 : i32 to index
    %c0_12 = arith.constant 0 : index
    %c0_13 = arith.constant 0 : index
    %18 = vector.load %arg3[%17, %c0_12, %c0_13] : memref<8x2x1xf32, #tpu.memory_space<vmem>>, vector<1x2x1xf32>
    %19 = vector.shape_cast %18 : vector<1x2x1xf32> to vector<2x1xf32>
    %20 = arith.truncf %9 : vector<2x128xf32> to vector<2x128xbf16>
    %cst = arith.constant dense<0.000000e+00> : vector<2x384xf32>
    %21 = tpu.matmul %20, %4, %cst {dimension_numbers = #tpu.dot_dimension_numbers<[1], [0], [0], [1], [0, 0, 1, 1], [], []>} : vector<2x128xbf16>, vector<128x384xbf16>, vector<2x384xf32> -> vector<2x384xf32>
    %22 = vector.broadcast %6 : vector<1x384xf32> to vector<2x384xf32>
    %23 = arith.addf %21, %22 : vector<2x384xf32>
    %24 = vector.extract_strided_slice %16 {offsets = [0, 0], sizes = [2, 128], strides = [1, 1]} : vector<2x384xf32> to vector<2x128xf32>
    %25 = vector.extract_strided_slice %23 {offsets = [0, 0], sizes = [2, 128], strides = [1, 1]} : vector<2x384xf32> to vector<2x128xf32>
    %26 = arith.addf %24, %25 : vector<2x128xf32>
    %27 = arith.negf %26 : vector<2x128xf32>
    %28 = math.exp %27 : vector<2x128xf32>
    %cst_14 = arith.constant 1.000000e+00 : f32
    %29 = vector.broadcast %cst_14 : f32 to vector<2x128xf32>
    %30 = arith.addf %29, %28 : vector<2x128xf32>
    %31 = arith.divf %29, %30 : vector<2x128xf32>
    %32 = vector.extract_strided_slice %16 {offsets = [0, 128], sizes = [2, 128], strides = [1, 1]} : vector<2x384xf32> to vector<2x128xf32>
    %33 = vector.extract_strided_slice %23 {offsets = [0, 128], sizes = [2, 128], strides = [1, 1]} : vector<2x384xf32> to vector<2x128xf32>
    %34 = arith.addf %32, %33 : vector<2x128xf32>
    %35 = arith.negf %34 : vector<2x128xf32>
    %36 = math.exp %35 : vector<2x128xf32>
    %cst_15 = arith.constant 1.000000e+00 : f32
    %37 = vector.broadcast %cst_15 : f32 to vector<2x128xf32>
    %38 = arith.addf %37, %36 : vector<2x128xf32>
    %39 = arith.divf %37, %38 : vector<2x128xf32>
    %40 = vector.extract_strided_slice %16 {offsets = [0, 256], sizes = [2, 128], strides = [1, 1]} : vector<2x384xf32> to vector<2x128xf32>
    %41 = vector.extract_strided_slice %23 {offsets = [0, 256], sizes = [2, 128], strides = [1, 1]} : vector<2x384xf32> to vector<2x128xf32>
    %42 = arith.mulf %31, %41 : vector<2x128xf32>
    %43 = arith.addf %40, %42 : vector<2x128xf32>
    %44 = math.tanh %43 : vector<2x128xf32>
    %cst_16 = arith.constant 1.000000e+00 : f32
    %45 = vector.broadcast %cst_16 : f32 to vector<2x128xf32>
    %46 = arith.subf %45, %39 : vector<2x128xf32>
    %47 = arith.mulf %46, %44 : vector<2x128xf32>
    %48 = arith.mulf %39, %9 : vector<2x128xf32>
    %49 = arith.addf %47, %48 : vector<2x128xf32>
    %50 = vector.broadcast %19 : vector<2x1xf32> to vector<2x128xf32>
    %51 = arith.mulf %50, %49 : vector<2x128xf32>
    %52 = arith.index_cast %13 : i32 to index
    %c0_17 = arith.constant 0 : index
    %c0_18 = arith.constant 0 : index
    %53 = vector.load %arg8[%52, %c0_17, %c0_18] : memref<8x2x128xf32, #tpu.memory_space<vmem>>, vector<1x2x128xf32>
    %54 = vector.shape_cast %53 : vector<1x2x128xf32> to vector<2x128xf32>
    %55 = vector.shape_cast %51 : vector<2x128xf32> to vector<1x2x128xf32>
    tpu.vector_store %arg8[%52, %c0_17, %c0_18], %55 {strides = array<i32>} : memref<8x2x128xf32, #tpu.memory_space<vmem>>, vector<1x2x128xf32>,
    %56 = vector.broadcast %19 : vector<2x1xf32> to vector<2x128xf32>
    %57 = arith.mulf %56, %49 : vector<2x128xf32>
    %cst_19 = arith.constant 1.000000e+00 : f32
    %58 = vector.broadcast %cst_19 : f32 to vector<2x1xf32>
    %59 = arith.subf %58, %19 : vector<2x1xf32>
    %60 = vector.broadcast %59 : vector<2x1xf32> to vector<2x128xf32>
    %61 = arith.mulf %60, %9 : vector<2x128xf32>
    %62 = arith.addf %57, %61 : vector<2x128xf32>
    %c1_i32 = arith.constant 1 : i32
    %c2_i32_20 = arith.constant 2 : i32
    %63 = arith.muli %c2_i32_20, %c1_i32 : i32
    %c7_i32_21 = arith.constant 7 : i32
    %64 = arith.subi %c7_i32_21, %63 : i32
    %65 = arith.muli %arg0, %64 : i32
    %66 = arith.addi %c1_i32, %65 : i32
    %c0_22 = arith.constant 0 : index
    %67 = arith.index_cast %66 : i32 to index
    %c0_23 = arith.constant 0 : index
    %c0_24 = arith.constant 0 : index
    %68 = vector.load %arg2[%c0_22, %67, %c0_23, %c0_24] : memref<1x8x2x384xf32, #tpu.memory_space<vmem>>, vector<1x1x2x384xf32>
    %69 = vector.shape_cast %68 : vector<1x1x2x384xf32> to vector<2x384xf32>
    %70 = arith.index_cast %66 : i32 to index
    %c0_25 = arith.constant 0 : index
    %c0_26 = arith.constant 0 : index
    %71 = vector.load %arg3[%70, %c0_25, %c0_26] : memref<8x2x1xf32, #tpu.memory_space<vmem>>, vector<1x2x1xf32>
    %72 = vector.shape_cast %71 : vector<1x2x1xf32> to vector<2x1xf32>
    %73 = arith.truncf %62 : vector<2x128xf32> to vector<2x128xbf16>
    %cst_27 = arith.constant dense<0.000000e+00> : vector<2x384xf32>
    %74 = tpu.matmul %73, %4, %cst_27 {dimension_numbers = #tpu.dot_dimension_numbers<[1], [0], [0], [1], [0, 0, 1, 1], [], []>} : vector<2x128xbf16>, vector<128x384xbf16>, vector<2x384xf32> -> vector<2x384xf32>
    %75 = vector.broadcast %6 : vector<1x384xf32> to vector<2x384xf32>
    %76 = arith.addf %74, %75 : vector<2x384xf32>
    %77 = vector.extract_strided_slice %69 {offsets = [0, 0], sizes = [2, 128], strides = [1, 1]} : vector<2x384xf32> to vector<2x128xf32>
    %78 = vector.extract_strided_slice %76 {offsets = [0, 0], sizes = [2, 128], strides = [1, 1]} : vector<2x384xf32> to vector<2x128xf32>
    %79 = arith.addf %77, %78 : vector<2x128xf32>
    %80 = arith.negf %79 : vector<2x128xf32>
    %81 = math.exp %80 : vector<2x128xf32>
    %cst_28 = arith.constant 1.000000e+00 : f32
    %82 = vector.broadcast %cst_28 : f32 to vector<2x128xf32>
    %83 = arith.addf %82, %81 : vector<2x128xf32>
    %84 = arith.divf %82, %83 : vector<2x128xf32>
    %85 = vector.extract_strided_slice %69 {offsets = [0, 128], sizes = [2, 128], strides = [1, 1]} : vector<2x384xf32> to vector<2x128xf32>
    %86 = vector.extract_strided_slice %76 {offsets = [0, 128], sizes = [2, 128], strides = [1, 1]} : vector<2x384xf32> to vector<2x128xf32>
    %87 = arith.addf %85, %86 : vector<2x128xf32>
    %88 = arith.negf %87 : vector<2x128xf32>
    %89 = math.exp %88 : vector<2x128xf32>
    %cst_29 = arith.constant 1.000000e+00 : f32
    %90 = vector.broadcast %cst_29 : f32 to vector<2x128xf32>
    %91 = arith.addf %90, %89 : vector<2x128xf32>
    %92 = arith.divf %90, %91 : vector<2x128xf32>
    %93 = vector.extract_strided_slice %69 {offsets = [0, 256], sizes = [2, 128], strides = [1, 1]} : vector<2x384xf32> to vector<2x128xf32>
    %94 = vector.extract_strided_slice %76 {offsets = [0, 256], sizes = [2, 128], strides = [1, 1]} : vector<2x384xf32> to vector<2x128xf32>
    %95 = arith.mulf %84, %94 : vector<2x128xf32>
    %96 = arith.addf %93, %95 : vector<2x128xf32>
    %97 = math.tanh %96 : vector<2x128xf32>
    %cst_30 = arith.constant 1.000000e+00 : f32
    %98 = vector.broadcast %cst_30 : f32 to vector<2x128xf32>
    %99 = arith.subf %98, %92 : vector<2x128xf32>
    %100 = arith.mulf %99, %97 : vector<2x128xf32>
    %101 = arith.mulf %92, %62 : vector<2x128xf32>
    %102 = arith.addf %100, %101 : vector<2x128xf32>
    %103 = vector.broadcast %72 : vector<2x1xf32> to vector<2x128xf32>
    %104 = arith.mulf %103, %102 : vector<2x128xf32>
    %105 = arith.index_cast %66 : i32 to index
    %c0_31 = arith.constant 0 : index
    %c0_32 = arith.constant 0 : index
    %106 = vector.load %arg8[%105, %c0_31, %c0_32] : memref<8x2x128xf32, #tpu.memory_space<vmem>>, vector<1x2x128xf32>
    %107 = vector.shape_cast %106 : vector<1x2x128xf32> to vector<2x128xf32>
    %108 = vector.shape_cast %104 : vector<2x128xf32> to vector<1x2x128xf32>
    tpu.vector_store %arg8[%105, %c0_31, %c0_32], %108 {strides = array<i32>} : memref<8x2x128xf32, #tpu.memory_space<vmem>>, vector<1x2x128xf32>,
    %109 = vector.broadcast %72 : vector<2x1xf32> to vector<2x128xf32>
    %110 = arith.mulf %109, %102 : vector<2x128xf32>
    %cst_33 = arith.constant 1.000000e+00 : f32
    %111 = vector.broadcast %cst_33 : f32 to vector<2x1xf32>
    %112 = arith.subf %111, %72 : vector<2x1xf32>
    %113 = vector.broadcast %112 : vector<2x1xf32> to vector<2x128xf32>
    %114 = arith.mulf %113, %62 : vector<2x128xf32>
    %115 = arith.addf %110, %114 : vector<2x128xf32>
    %c2_i32_34 = arith.constant 2 : i32
    %c2_i32_35 = arith.constant 2 : i32
    %116 = arith.muli %c2_i32_35, %c2_i32_34 : i32
    %c7_i32_36 = arith.constant 7 : i32
    %117 = arith.subi %c7_i32_36, %116 : i32
    %118 = arith.muli %arg0, %117 : i32
    %119 = arith.addi %c2_i32_34, %118 : i32
    %c0_37 = arith.constant 0 : index
    %120 = arith.index_cast %119 : i32 to index
    %c0_38 = arith.constant 0 : index
    %c0_39 = arith.constant 0 : index
    %121 = vector.load %arg2[%c0_37, %120, %c0_38, %c0_39] : memref<1x8x2x384xf32, #tpu.memory_space<vmem>>, vector<1x1x2x384xf32>
    %122 = vector.shape_cast %121 : vector<1x1x2x384xf32> to vector<2x384xf32>
    %123 = arith.index_cast %119 : i32 to index
    %c0_40 = arith.constant 0 : index
    %c0_41 = arith.constant 0 : index
    %124 = vector.load %arg3[%123, %c0_40, %c0_41] : memref<8x2x1xf32, #tpu.memory_space<vmem>>, vector<1x2x1xf32>
    %125 = vector.shape_cast %124 : vector<1x2x1xf32> to vector<2x1xf32>
    %126 = arith.truncf %115 : vector<2x128xf32> to vector<2x128xbf16>
    %cst_42 = arith.constant dense<0.000000e+00> : vector<2x384xf32>
    %127 = tpu.matmul %126, %4, %cst_42 {dimension_numbers = #tpu.dot_dimension_numbers<[1], [0], [0], [1], [0, 0, 1, 1], [], []>} : vector<2x128xbf16>, vector<128x384xbf16>, vector<2x384xf32> -> vector<2x384xf32>
    %128 = vector.broadcast %6 : vector<1x384xf32> to vector<2x384xf32>
    %129 = arith.addf %127, %128 : vector<2x384xf32>
    %130 = vector.extract_strided_slice %122 {offsets = [0, 0], sizes = [2, 128], strides = [1, 1]} : vector<2x384xf32> to vector<2x128xf32>
    %131 = vector.extract_strided_slice %129 {offsets = [0, 0], sizes = [2, 128], strides = [1, 1]} : vector<2x384xf32> to vector<2x128xf32>
    %132 = arith.addf %130, %131 : vector<2x128xf32>
    %133 = arith.negf %132 : vector<2x128xf32>
    %134 = math.exp %133 : vector<2x128xf32>
    %cst_43 = arith.constant 1.000000e+00 : f32
    %135 = vector.broadcast %cst_43 : f32 to vector<2x128xf32>
    %136 = arith.addf %135, %134 : vector<2x128xf32>
    %137 = arith.divf %135, %136 : vector<2x128xf32>
    %138 = vector.extract_strided_slice %122 {offsets = [0, 128], sizes = [2, 128], strides = [1, 1]} : vector<2x384xf32> to vector<2x128xf32>
    %139 = vector.extract_strided_slice %129 {offsets = [0, 128], sizes = [2, 128], strides = [1, 1]} : vector<2x384xf32> to vector<2x128xf32>
    %140 = arith.addf %138, %139 : vector<2x128xf32>
    %141 = arith.negf %140 : vector<2x128xf32>
    %142 = math.exp %141 : vector<2x128xf32>
    %cst_44 = arith.constant 1.000000e+00 : f32
    %143 = vector.broadcast %cst_44 : f32 to vector<2x128xf32>
    %144 = arith.addf %143, %142 : vector<2x128xf32>
    %145 = arith.divf %143, %144 : vector<2x128xf32>
    %146 = vector.extract_strided_slice %122 {offsets = [0, 256], sizes = [2, 128], strides = [1, 1]} : vector<2x384xf32> to vector<2x128xf32>
    %147 = vector.extract_strided_slice %129 {offsets = [0, 256], sizes = [2, 128], strides = [1, 1]} : vector<2x384xf32> to vector<2x128xf32>
    %148 = arith.mulf %137, %147 : vector<2x128xf32>
    %149 = arith.addf %146, %148 : vector<2x128xf32>
    %150 = math.tanh %149 : vector<2x128xf32>
    %cst_45 = arith.constant 1.000000e+00 : f32
    %151 = vector.broadcast %cst_45 : f32 to vector<2x128xf32>
    %152 = arith.subf %151, %145 : vector<2x128xf32>
    %153 = arith.mulf %152, %150 : vector<2x128xf32>
    %154 = arith.mulf %145, %115 : vector<2x128xf32>
    %155 = arith.addf %153, %154 : vector<2x128xf32>
    %156 = vector.broadcast %125 : vector<2x1xf32> to vector<2x128xf32>
    %157 = arith.mulf %156, %155 : vector<2x128xf32>
    %158 = arith.index_cast %119 : i32 to index
    %c0_46 = arith.constant 0 : index
    %c0_47 = arith.constant 0 : index
    %159 = vector.load %arg8[%158, %c0_46, %c0_47] : memref<8x2x128xf32, #tpu.memory_space<vmem>>, vector<1x2x128xf32>
    %160 = vector.shape_cast %159 : vector<1x2x128xf32> to vector<2x128xf32>
    %161 = vector.shape_cast %157 : vector<2x128xf32> to vector<1x2x128xf32>
    tpu.vector_store %arg8[%158, %c0_46, %c0_47], %161 {strides = array<i32>} : memref<8x2x128xf32, #tpu.memory_space<vmem>>, vector<1x2x128xf32>,
    %162 = vector.broadcast %125 : vector<2x1xf32> to vector<2x128xf32>
    %163 = arith.mulf %162, %155 : vector<2x128xf32>
    %cst_48 = arith.constant 1.000000e+00 : f32
    %164 = vector.broadcast %cst_48 : f32 to vector<2x1xf32>
    %165 = arith.subf %164, %125 : vector<2x1xf32>
    %166 = vector.broadcast %165 : vector<2x1xf32> to vector<2x128xf32>
    %167 = arith.mulf %166, %115 : vector<2x128xf32>
    %168 = arith.addf %163, %167 : vector<2x128xf32>
    %c3_i32 = arith.constant 3 : i32
    %c2_i32_49 = arith.constant 2 : i32
    %169 = arith.muli %c2_i32_49, %c3_i32 : i32
    %c7_i32_50 = arith.constant 7 : i32
    %170 = arith.subi %c7_i32_50, %169 : i32
    %171 = arith.muli %arg0, %170 : i32
    %172 = arith.addi %c3_i32, %171 : i32
    %c0_51 = arith.constant 0 : index
    %173 = arith.index_cast %172 : i32 to index
    %c0_52 = arith.constant 0 : index
    %c0_53 = arith.constant 0 : index
    %174 = vector.load %arg2[%c0_51, %173, %c0_52, %c0_53] : memref<1x8x2x384xf32, #tpu.memory_space<vmem>>, vector<1x1x2x384xf32>
    %175 = vector.shape_cast %174 : vector<1x1x2x384xf32> to vector<2x384xf32>
    %176 = arith.index_cast %172 : i32 to index
    %c0_54 = arith.constant 0 : index
    %c0_55 = arith.constant 0 : index
    %177 = vector.load %arg3[%176, %c0_54, %c0_55] : memref<8x2x1xf32, #tpu.memory_space<vmem>>, vector<1x2x1xf32>
    %178 = vector.shape_cast %177 : vector<1x2x1xf32> to vector<2x1xf32>
    %179 = arith.truncf %168 : vector<2x128xf32> to vector<2x128xbf16>
    %cst_56 = arith.constant dense<0.000000e+00> : vector<2x384xf32>
    %180 = tpu.matmul %179, %4, %cst_56 {dimension_numbers = #tpu.dot_dimension_numbers<[1], [0], [0], [1], [0, 0, 1, 1], [], []>} : vector<2x128xbf16>, vector<128x384xbf16>, vector<2x384xf32> -> vector<2x384xf32>
    %181 = vector.broadcast %6 : vector<1x384xf32> to vector<2x384xf32>
    %182 = arith.addf %180, %181 : vector<2x384xf32>
    %183 = vector.extract_strided_slice %175 {offsets = [0, 0], sizes = [2, 128], strides = [1, 1]} : vector<2x384xf32> to vector<2x128xf32>
    %184 = vector.extract_strided_slice %182 {offsets = [0, 0], sizes = [2, 128], strides = [1, 1]} : vector<2x384xf32> to vector<2x128xf32>
    %185 = arith.addf %183, %184 : vector<2x128xf32>
    %186 = arith.negf %185 : vector<2x128xf32>
    %187 = math.exp %186 : vector<2x128xf32>
    %cst_57 = arith.constant 1.000000e+00 : f32
    %188 = vector.broadcast %cst_57 : f32 to vector<2x128xf32>
    %189 = arith.addf %188, %187 : vector<2x128xf32>
    %190 = arith.divf %188, %189 : vector<2x128xf32>
    %191 = vector.extract_strided_slice %175 {offsets = [0, 128], sizes = [2, 128], strides = [1, 1]} : vector<2x384xf32> to vector<2x128xf32>
    %192 = vector.extract_strided_slice %182 {offsets = [0, 128], sizes = [2, 128], strides = [1, 1]} : vector<2x384xf32> to vector<2x128xf32>
    %193 = arith.addf %191, %192 : vector<2x128xf32>
    %194 = arith.negf %193 : vector<2x128xf32>
    %195 = math.exp %194 : vector<2x128xf32>
    %cst_58 = arith.constant 1.000000e+00 : f32
    %196 = vector.broadcast %cst_58 : f32 to vector<2x128xf32>
    %197 = arith.addf %196, %195 : vector<2x128xf32>
    %198 = arith.divf %196, %197 : vector<2x128xf32>
    %199 = vector.extract_strided_slice %175 {offsets = [0, 256], sizes = [2, 128], strides = [1, 1]} : vector<2x384xf32> to vector<2x128xf32>
    %200 = vector.extract_strided_slice %182 {offsets = [0, 256], sizes = [2, 128], strides = [1, 1]} : vector<2x384xf32> to vector<2x128xf32>
    %201 = arith.mulf %190, %200 : vector<2x128xf32>
    %202 = arith.addf %199, %201 : vector<2x128xf32>
    %203 = math.tanh %202 : vector<2x128xf32>
    %cst_59 = arith.constant 1.000000e+00 : f32
    %204 = vector.broadcast %cst_59 : f32 to vector<2x128xf32>
    %205 = arith.subf %204, %198 : vector<2x128xf32>
    %206 = arith.mulf %205, %203 : vector<2x128xf32>
    %207 = arith.mulf %198, %168 : vector<2x128xf32>
    %208 = arith.addf %206, %207 : vector<2x128xf32>
    %209 = vector.broadcast %178 : vector<2x1xf32> to vector<2x128xf32>
    %210 = arith.mulf %209, %208 : vector<2x128xf32>
    %211 = arith.index_cast %172 : i32 to index
    %c0_60 = arith.constant 0 : index
    %c0_61 = arith.constant 0 : index
    %212 = vector.load %arg8[%211, %c0_60, %c0_61] : memref<8x2x128xf32, #tpu.memory_space<vmem>>, vector<1x2x128xf32>
    %213 = vector.shape_cast %212 : vector<1x2x128xf32> to vector<2x128xf32>
    %214 = vector.shape_cast %210 : vector<2x128xf32> to vector<1x2x128xf32>
    tpu.vector_store %arg8[%211, %c0_60, %c0_61], %214 {strides = array<i32>} : memref<8x2x128xf32, #tpu.memory_space<vmem>>, vector<1x2x128xf32>,
    %215 = vector.broadcast %178 : vector<2x1xf32> to vector<2x128xf32>
    %216 = arith.mulf %215, %208 : vector<2x128xf32>
    %cst_62 = arith.constant 1.000000e+00 : f32
    %217 = vector.broadcast %cst_62 : f32 to vector<2x1xf32>
    %218 = arith.subf %217, %178 : vector<2x1xf32>
    %219 = vector.broadcast %218 : vector<2x1xf32> to vector<2x128xf32>
    %220 = arith.mulf %219, %168 : vector<2x128xf32>
    %221 = arith.addf %216, %220 : vector<2x128xf32>
    %c4_i32 = arith.constant 4 : i32
    %c2_i32_63 = arith.constant 2 : i32
    %222 = arith.muli %c2_i32_63, %c4_i32 : i32
    %c7_i32_64 = arith.constant 7 : i32
    %223 = arith.subi %c7_i32_64, %222 : i32
    %224 = arith.muli %arg0, %223 : i32
    %225 = arith.addi %c4_i32, %224 : i32
    %c0_65 = arith.constant 0 : index
    %226 = arith.index_cast %225 : i32 to index
    %c0_66 = arith.constant 0 : index
    %c0_67 = arith.constant 0 : index
    %227 = vector.load %arg2[%c0_65, %226, %c0_66, %c0_67] : memref<1x8x2x384xf32, #tpu.memory_space<vmem>>, vector<1x1x2x384xf32>
    %228 = vector.shape_cast %227 : vector<1x1x2x384xf32> to vector<2x384xf32>
    %229 = arith.index_cast %225 : i32 to index
    %c0_68 = arith.constant 0 : index
    %c0_69 = arith.constant 0 : index
    %230 = vector.load %arg3[%229, %c0_68, %c0_69] : memref<8x2x1xf32, #tpu.memory_space<vmem>>, vector<1x2x1xf32>
    %231 = vector.shape_cast %230 : vector<1x2x1xf32> to vector<2x1xf32>
    %232 = arith.truncf %221 : vector<2x128xf32> to vector<2x128xbf16>
    %cst_70 = arith.constant dense<0.000000e+00> : vector<2x384xf32>
    %233 = tpu.matmul %232, %4, %cst_70 {dimension_numbers = #tpu.dot_dimension_numbers<[1], [0], [0], [1], [0, 0, 1, 1], [], []>} : vector<2x128xbf16>, vector<128x384xbf16>, vector<2x384xf32> -> vector<2x384xf32>
    %234 = vector.broadcast %6 : vector<1x384xf32> to vector<2x384xf32>
    %235 = arith.addf %233, %234 : vector<2x384xf32>
    %236 = vector.extract_strided_slice %228 {offsets = [0, 0], sizes = [2, 128], strides = [1, 1]} : vector<2x384xf32> to vector<2x128xf32>
    %237 = vector.extract_strided_slice %235 {offsets = [0, 0], sizes = [2, 128], strides = [1, 1]} : vector<2x384xf32> to vector<2x128xf32>
    %238 = arith.addf %236, %237 : vector<2x128xf32>
    %239 = arith.negf %238 : vector<2x128xf32>
    %240 = math.exp %239 : vector<2x128xf32>
    %cst_71 = arith.constant 1.000000e+00 : f32
    %241 = vector.broadcast %cst_71 : f32 to vector<2x128xf32>
    %242 = arith.addf %241, %240 : vector<2x128xf32>
    %243 = arith.divf %241, %242 : vector<2x128xf32>
    %244 = vector.extract_strided_slice %228 {offsets = [0, 128], sizes = [2, 128], strides = [1, 1]} : vector<2x384xf32> to vector<2x128xf32>
    %245 = vector.extract_strided_slice %235 {offsets = [0, 128], sizes = [2, 128], strides = [1, 1]} : vector<2x384xf32> to vector<2x128xf32>
    %246 = arith.addf %244, %245 : vector<2x128xf32>
    %247 = arith.negf %246 : vector<2x128xf32>
    %248 = math.exp %247 : vector<2x128xf32>
    %cst_72 = arith.constant 1.000000e+00 : f32
    %249 = vector.broadcast %cst_72 : f32 to vector<2x128xf32>
    %250 = arith.addf %249, %248 : vector<2x128xf32>
    %251 = arith.divf %249, %250 : vector<2x128xf32>
    %252 = vector.extract_strided_slice %228 {offsets = [0, 256], sizes = [2, 128], strides = [1, 1]} : vector<2x384xf32> to vector<2x128xf32>
    %253 = vector.extract_strided_slice %235 {offsets = [0, 256], sizes = [2, 128], strides = [1, 1]} : vector<2x384xf32> to vector<2x128xf32>
    %254 = arith.mulf %243, %253 : vector<2x128xf32>
    %255 = arith.addf %252, %254 : vector<2x128xf32>
    %256 = math.tanh %255 : vector<2x128xf32>
    %cst_73 = arith.constant 1.000000e+00 : f32
    %257 = vector.broadcast %cst_73 : f32 to vector<2x128xf32>
    %258 = arith.subf %257, %251 : vector<2x128xf32>
    %259 = arith.mulf %258, %256 : vector<2x128xf32>
    %260 = arith.mulf %251, %221 : vector<2x128xf32>
    %261 = arith.addf %259, %260 : vector<2x128xf32>
    %262 = vector.broadcast %231 : vector<2x1xf32> to vector<2x128xf32>
    %263 = arith.mulf %262, %261 : vector<2x128xf32>
    %264 = arith.index_cast %225 : i32 to index
    %c0_74 = arith.constant 0 : index
    %c0_75 = arith.constant 0 : index
    %265 = vector.load %arg8[%264, %c0_74, %c0_75] : memref<8x2x128xf32, #tpu.memory_space<vmem>>, vector<1x2x128xf32>
    %266 = vector.shape_cast %265 : vector<1x2x128xf32> to vector<2x128xf32>
    %267 = vector.shape_cast %263 : vector<2x128xf32> to vector<1x2x128xf32>
    tpu.vector_store %arg8[%264, %c0_74, %c0_75], %267 {strides = array<i32>} : memref<8x2x128xf32, #tpu.memory_space<vmem>>, vector<1x2x128xf32>,
    %268 = vector.broadcast %231 : vector<2x1xf32> to vector<2x128xf32>
    %269 = arith.mulf %268, %261 : vector<2x128xf32>
    %cst_76 = arith.constant 1.000000e+00 : f32
    %270 = vector.broadcast %cst_76 : f32 to vector<2x1xf32>
    %271 = arith.subf %270, %231 : vector<2x1xf32>
    %272 = vector.broadcast %271 : vector<2x1xf32> to vector<2x128xf32>
    %273 = arith.mulf %272, %221 : vector<2x128xf32>
    %274 = arith.addf %269, %273 : vector<2x128xf32>
    %c5_i32 = arith.constant 5 : i32
    %c2_i32_77 = arith.constant 2 : i32
    %275 = arith.muli %c2_i32_77, %c5_i32 : i32
    %c7_i32_78 = arith.constant 7 : i32
    %276 = arith.subi %c7_i32_78, %275 : i32
    %277 = arith.muli %arg0, %276 : i32
    %278 = arith.addi %c5_i32, %277 : i32
    %c0_79 = arith.constant 0 : index
    %279 = arith.index_cast %278 : i32 to index
    %c0_80 = arith.constant 0 : index
    %c0_81 = arith.constant 0 : index
    %280 = vector.load %arg2[%c0_79, %279, %c0_80, %c0_81] : memref<1x8x2x384xf32, #tpu.memory_space<vmem>>, vector<1x1x2x384xf32>
    %281 = vector.shape_cast %280 : vector<1x1x2x384xf32> to vector<2x384xf32>
    %282 = arith.index_cast %278 : i32 to index
    %c0_82 = arith.constant 0 : index
    %c0_83 = arith.constant 0 : index
    %283 = vector.load %arg3[%282, %c0_82, %c0_83] : memref<8x2x1xf32, #tpu.memory_space<vmem>>, vector<1x2x1xf32>
    %284 = vector.shape_cast %283 : vector<1x2x1xf32> to vector<2x1xf32>
    %285 = arith.truncf %274 : vector<2x128xf32> to vector<2x128xbf16>
    %cst_84 = arith.constant dense<0.000000e+00> : vector<2x384xf32>
    %286 = tpu.matmul %285, %4, %cst_84 {dimension_numbers = #tpu.dot_dimension_numbers<[1], [0], [0], [1], [0, 0, 1, 1], [], []>} : vector<2x128xbf16>, vector<128x384xbf16>, vector<2x384xf32> -> vector<2x384xf32>
    %287 = vector.broadcast %6 : vector<1x384xf32> to vector<2x384xf32>
    %288 = arith.addf %286, %287 : vector<2x384xf32>
    %289 = vector.extract_strided_slice %281 {offsets = [0, 0], sizes = [2, 128], strides = [1, 1]} : vector<2x384xf32> to vector<2x128xf32>
    %290 = vector.extract_strided_slice %288 {offsets = [0, 0], sizes = [2, 128], strides = [1, 1]} : vector<2x384xf32> to vector<2x128xf32>
    %291 = arith.addf %289, %290 : vector<2x128xf32>
    %292 = arith.negf %291 : vector<2x128xf32>
    %293 = math.exp %292 : vector<2x128xf32>
    %cst_85 = arith.constant 1.000000e+00 : f32
    %294 = vector.broadcast %cst_85 : f32 to vector<2x128xf32>
    %295 = arith.addf %294, %293 : vector<2x128xf32>
    %296 = arith.divf %294, %295 : vector<2x128xf32>
    %297 = vector.extract_strided_slice %281 {offsets = [0, 128], sizes = [2, 128], strides = [1, 1]} : vector<2x384xf32> to vector<2x128xf32>
    %298 = vector.extract_strided_slice %288 {offsets = [0, 128], sizes = [2, 128], strides = [1, 1]} : vector<2x384xf32> to vector<2x128xf32>
    %299 = arith.addf %297, %298 : vector<2x128xf32>
    %300 = arith.negf %299 : vector<2x128xf32>
    %301 = math.exp %300 : vector<2x128xf32>
    %cst_86 = arith.constant 1.000000e+00 : f32
    %302 = vector.broadcast %cst_86 : f32 to vector<2x128xf32>
    %303 = arith.addf %302, %301 : vector<2x128xf32>
    %304 = arith.divf %302, %303 : vector<2x128xf32>
    %305 = vector.extract_strided_slice %281 {offsets = [0, 256], sizes = [2, 128], strides = [1, 1]} : vector<2x384xf32> to vector<2x128xf32>
    %306 = vector.extract_strided_slice %288 {offsets = [0, 256], sizes = [2, 128], strides = [1, 1]} : vector<2x384xf32> to vector<2x128xf32>
    %307 = arith.mulf %296, %306 : vector<2x128xf32>
    %308 = arith.addf %305, %307 : vector<2x128xf32>
    %309 = math.tanh %308 : vector<2x128xf32>
    %cst_87 = arith.constant 1.000000e+00 : f32
    %310 = vector.broadcast %cst_87 : f32 to vector<2x128xf32>
    %311 = arith.subf %310, %304 : vector<2x128xf32>
    %312 = arith.mulf %311, %309 : vector<2x128xf32>
    %313 = arith.mulf %304, %274 : vector<2x128xf32>
    %314 = arith.addf %312, %313 : vector<2x128xf32>
    %315 = vector.broadcast %284 : vector<2x1xf32> to vector<2x128xf32>
    %316 = arith.mulf %315, %314 : vector<2x128xf32>
    %317 = arith.index_cast %278 : i32 to index
    %c0_88 = arith.constant 0 : index
    %c0_89 = arith.constant 0 : index
    %318 = vector.load %arg8[%317, %c0_88, %c0_89] : memref<8x2x128xf32, #tpu.memory_space<vmem>>, vector<1x2x128xf32>
    %319 = vector.shape_cast %318 : vector<1x2x128xf32> to vector<2x128xf32>
    %320 = vector.shape_cast %316 : vector<2x128xf32> to vector<1x2x128xf32>
    tpu.vector_store %arg8[%317, %c0_88, %c0_89], %320 {strides = array<i32>} : memref<8x2x128xf32, #tpu.memory_space<vmem>>, vector<1x2x128xf32>,
    %321 = vector.broadcast %284 : vector<2x1xf32> to vector<2x128xf32>
    %322 = arith.mulf %321, %314 : vector<2x128xf32>
    %cst_90 = arith.constant 1.000000e+00 : f32
    %323 = vector.broadcast %cst_90 : f32 to vector<2x1xf32>
    %324 = arith.subf %323, %284 : vector<2x1xf32>
    %325 = vector.broadcast %324 : vector<2x1xf32> to vector<2x128xf32>
    %326 = arith.mulf %325, %274 : vector<2x128xf32>
    %327 = arith.addf %322, %326 : vector<2x128xf32>
    %c6_i32 = arith.constant 6 : i32
    %c2_i32_91 = arith.constant 2 : i32
    %328 = arith.muli %c2_i32_91, %c6_i32 : i32
    %c7_i32_92 = arith.constant 7 : i32
    %329 = arith.subi %c7_i32_92, %328 : i32
    %330 = arith.muli %arg0, %329 : i32
    %331 = arith.addi %c6_i32, %330 : i32
    %c0_93 = arith.constant 0 : index
    %332 = arith.index_cast %331 : i32 to index
    %c0_94 = arith.constant 0 : index
    %c0_95 = arith.constant 0 : index
    %333 = vector.load %arg2[%c0_93, %332, %c0_94, %c0_95] : memref<1x8x2x384xf32, #tpu.memory_space<vmem>>, vector<1x1x2x384xf32>
    %334 = vector.shape_cast %333 : vector<1x1x2x384xf32> to vector<2x384xf32>
    %335 = arith.index_cast %331 : i32 to index
    %c0_96 = arith.constant 0 : index
    %c0_97 = arith.constant 0 : index
    %336 = vector.load %arg3[%335, %c0_96, %c0_97] : memref<8x2x1xf32, #tpu.memory_space<vmem>>, vector<1x2x1xf32>
    %337 = vector.shape_cast %336 : vector<1x2x1xf32> to vector<2x1xf32>
    %338 = arith.truncf %327 : vector<2x128xf32> to vector<2x128xbf16>
    %cst_98 = arith.constant dense<0.000000e+00> : vector<2x384xf32>
    %339 = tpu.matmul %338, %4, %cst_98 {dimension_numbers = #tpu.dot_dimension_numbers<[1], [0], [0], [1], [0, 0, 1, 1], [], []>} : vector<2x128xbf16>, vector<128x384xbf16>, vector<2x384xf32> -> vector<2x384xf32>
    %340 = vector.broadcast %6 : vector<1x384xf32> to vector<2x384xf32>
    %341 = arith.addf %339, %340 : vector<2x384xf32>
    %342 = vector.extract_strided_slice %334 {offsets = [0, 0], sizes = [2, 128], strides = [1, 1]} : vector<2x384xf32> to vector<2x128xf32>
    %343 = vector.extract_strided_slice %341 {offsets = [0, 0], sizes = [2, 128], strides = [1, 1]} : vector<2x384xf32> to vector<2x128xf32>
    %344 = arith.addf %342, %343 : vector<2x128xf32>
    %345 = arith.negf %344 : vector<2x128xf32>
    %346 = math.exp %345 : vector<2x128xf32>
    %cst_99 = arith.constant 1.000000e+00 : f32
    %347 = vector.broadcast %cst_99 : f32 to vector<2x128xf32>
    %348 = arith.addf %347, %346 : vector<2x128xf32>
    %349 = arith.divf %347, %348 : vector<2x128xf32>
    %350 = vector.extract_strided_slice %334 {offsets = [0, 128], sizes = [2, 128], strides = [1, 1]} : vector<2x384xf32> to vector<2x128xf32>
    %351 = vector.extract_strided_slice %341 {offsets = [0, 128], sizes = [2, 128], strides = [1, 1]} : vector<2x384xf32> to vector<2x128xf32>
    %352 = arith.addf %350, %351 : vector<2x128xf32>
    %353 = arith.negf %352 : vector<2x128xf32>
    %354 = math.exp %353 : vector<2x128xf32>
    %cst_100 = arith.constant 1.000000e+00 : f32
    %355 = vector.broadcast %cst_100 : f32 to vector<2x128xf32>
    %356 = arith.addf %355, %354 : vector<2x128xf32>
    %357 = arith.divf %355, %356 : vector<2x128xf32>
    %358 = vector.extract_strided_slice %334 {offsets = [0, 256], sizes = [2, 128], strides = [1, 1]} : vector<2x384xf32> to vector<2x128xf32>
    %359 = vector.extract_strided_slice %341 {offsets = [0, 256], sizes = [2, 128], strides = [1, 1]} : vector<2x384xf32> to vector<2x128xf32>
    %360 = arith.mulf %349, %359 : vector<2x128xf32>
    %361 = arith.addf %358, %360 : vector<2x128xf32>
    %362 = math.tanh %361 : vector<2x128xf32>
    %cst_101 = arith.constant 1.000000e+00 : f32
    %363 = vector.broadcast %cst_101 : f32 to vector<2x128xf32>
    %364 = arith.subf %363, %357 : vector<2x128xf32>
    %365 = arith.mulf %364, %362 : vector<2x128xf32>
    %366 = arith.mulf %357, %327 : vector<2x128xf32>
    %367 = arith.addf %365, %366 : vector<2x128xf32>
    %368 = vector.broadcast %337 : vector<2x1xf32> to vector<2x128xf32>
    %369 = arith.mulf %368, %367 : vector<2x128xf32>
    %370 = arith.index_cast %331 : i32 to index
    %c0_102 = arith.constant 0 : index
    %c0_103 = arith.constant 0 : index
    %371 = vector.load %arg8[%370, %c0_102, %c0_103] : memref<8x2x128xf32, #tpu.memory_space<vmem>>, vector<1x2x128xf32>
    %372 = vector.shape_cast %371 : vector<1x2x128xf32> to vector<2x128xf32>
    %373 = vector.shape_cast %369 : vector<2x128xf32> to vector<1x2x128xf32>
    tpu.vector_store %arg8[%370, %c0_102, %c0_103], %373 {strides = array<i32>} : memref<8x2x128xf32, #tpu.memory_space<vmem>>, vector<1x2x128xf32>,
    %374 = vector.broadcast %337 : vector<2x1xf32> to vector<2x128xf32>
    %375 = arith.mulf %374, %367 : vector<2x128xf32>
    %cst_104 = arith.constant 1.000000e+00 : f32
    %376 = vector.broadcast %cst_104 : f32 to vector<2x1xf32>
    %377 = arith.subf %376, %337 : vector<2x1xf32>
    %378 = vector.broadcast %377 : vector<2x1xf32> to vector<2x128xf32>
    %379 = arith.mulf %378, %327 : vector<2x128xf32>
    %380 = arith.addf %375, %379 : vector<2x128xf32>
    %c7_i32_105 = arith.constant 7 : i32
    %c2_i32_106 = arith.constant 2 : i32
    %381 = arith.muli %c2_i32_106, %c7_i32_105 : i32
    %c7_i32_107 = arith.constant 7 : i32
    %382 = arith.subi %c7_i32_107, %381 : i32
    %383 = arith.muli %arg0, %382 : i32
    %384 = arith.addi %c7_i32_105, %383 : i32
    %c0_108 = arith.constant 0 : index
    %385 = arith.index_cast %384 : i32 to index
    %c0_109 = arith.constant 0 : index
    %c0_110 = arith.constant 0 : index
    %386 = vector.load %arg2[%c0_108, %385, %c0_109, %c0_110] : memref<1x8x2x384xf32, #tpu.memory_space<vmem>>, vector<1x1x2x384xf32>
    %387 = vector.shape_cast %386 : vector<1x1x2x384xf32> to vector<2x384xf32>
    %388 = arith.index_cast %384 : i32 to index
    %c0_111 = arith.constant 0 : index
    %c0_112 = arith.constant 0 : index
    %389 = vector.load %arg3[%388, %c0_111, %c0_112] : memref<8x2x1xf32, #tpu.memory_space<vmem>>, vector<1x2x1xf32>
    %390 = vector.shape_cast %389 : vector<1x2x1xf32> to vector<2x1xf32>
    %391 = arith.truncf %380 : vector<2x128xf32> to vector<2x128xbf16>
    %cst_113 = arith.constant dense<0.000000e+00> : vector<2x384xf32>
    %392 = tpu.matmul %391, %4, %cst_113 {dimension_numbers = #tpu.dot_dimension_numbers<[1], [0], [0], [1], [0, 0, 1, 1], [], []>} : vector<2x128xbf16>, vector<128x384xbf16>, vector<2x384xf32> -> vector<2x384xf32>
    %393 = vector.broadcast %6 : vector<1x384xf32> to vector<2x384xf32>
    %394 = arith.addf %392, %393 : vector<2x384xf32>
    %395 = vector.extract_strided_slice %387 {offsets = [0, 0], sizes = [2, 128], strides = [1, 1]} : vector<2x384xf32> to vector<2x128xf32>
    %396 = vector.extract_strided_slice %394 {offsets = [0, 0], sizes = [2, 128], strides = [1, 1]} : vector<2x384xf32> to vector<2x128xf32>
    %397 = arith.addf %395, %396 : vector<2x128xf32>
    %398 = arith.negf %397 : vector<2x128xf32>
    %399 = math.exp %398 : vector<2x128xf32>
    %cst_114 = arith.constant 1.000000e+00 : f32
    %400 = vector.broadcast %cst_114 : f32 to vector<2x128xf32>
    %401 = arith.addf %400, %399 : vector<2x128xf32>
    %402 = arith.divf %400, %401 : vector<2x128xf32>
    %403 = vector.extract_strided_slice %387 {offsets = [0, 128], sizes = [2, 128], strides = [1, 1]} : vector<2x384xf32> to vector<2x128xf32>
    %404 = vector.extract_strided_slice %394 {offsets = [0, 128], sizes = [2, 128], strides = [1, 1]} : vector<2x384xf32> to vector<2x128xf32>
    %405 = arith.addf %403, %404 : vector<2x128xf32>
    %406 = arith.negf %405 : vector<2x128xf32>
    %407 = math.exp %406 : vector<2x128xf32>
    %cst_115 = arith.constant 1.000000e+00 : f32
    %408 = vector.broadcast %cst_115 : f32 to vector<2x128xf32>
    %409 = arith.addf %408, %407 : vector<2x128xf32>
    %410 = arith.divf %408, %409 : vector<2x128xf32>
    %411 = vector.extract_strided_slice %387 {offsets = [0, 256], sizes = [2, 128], strides = [1, 1]} : vector<2x384xf32> to vector<2x128xf32>
    %412 = vector.extract_strided_slice %394 {offsets = [0, 256], sizes = [2, 128], strides = [1, 1]} : vector<2x384xf32> to vector<2x128xf32>
    %413 = arith.mulf %402, %412 : vector<2x128xf32>
    %414 = arith.addf %411, %413 : vector<2x128xf32>
    %415 = math.tanh %414 : vector<2x128xf32>
    %cst_116 = arith.constant 1.000000e+00 : f32
    %416 = vector.broadcast %cst_116 : f32 to vector<2x128xf32>
    %417 = arith.subf %416, %410 : vector<2x128xf32>
    %418 = arith.mulf %417, %415 : vector<2x128xf32>
    %419 = arith.mulf %410, %380 : vector<2x128xf32>
    %420 = arith.addf %418, %419 : vector<2x128xf32>
    %421 = vector.broadcast %390 : vector<2x1xf32> to vector<2x128xf32>
    %422 = arith.mulf %421, %420 : vector<2x128xf32>
    %423 = arith.index_cast %384 : i32 to index
    %c0_117 = arith.constant 0 : index
    %c0_118 = arith.constant 0 : index
    %424 = vector.load %arg8[%423, %c0_117, %c0_118] : memref<8x2x128xf32, #tpu.memory_space<vmem>>, vector<1x2x128xf32>
    %425 = vector.shape_cast %424 : vector<1x2x128xf32> to vector<2x128xf32>
    %426 = vector.shape_cast %422 : vector<2x128xf32> to vector<1x2x128xf32>
    tpu.vector_store %arg8[%423, %c0_117, %c0_118], %426 {strides = array<i32>} : memref<8x2x128xf32, #tpu.memory_space<vmem>>, vector<1x2x128xf32>,
    %427 = vector.broadcast %390 : vector<2x1xf32> to vector<2x128xf32>
    %428 = arith.mulf %427, %420 : vector<2x128xf32>
    %cst_119 = arith.constant 1.000000e+00 : f32
    %429 = vector.broadcast %cst_119 : f32 to vector<2x1xf32>
    %430 = arith.subf %429, %390 : vector<2x1xf32>
    %431 = vector.broadcast %430 : vector<2x1xf32> to vector<2x128xf32>
    %432 = arith.mulf %431, %380 : vector<2x128xf32>
    %433 = arith.addf %428, %432 : vector<2x128xf32>
    %c8_i32 = arith.constant 8 : i32
    %434 = arith.index_cast %arg0 : i32 to index
    %c0_120 = arith.constant 0 : index
    %c0_121 = arith.constant 0 : index
    %435 = vector.load %arg7[%434, %c0_120, %c0_121] : memref<2x2x128xf32, #tpu.memory_space<vmem>>, vector<1x2x128xf32>
    %436 = vector.shape_cast %435 : vector<1x2x128xf32> to vector<2x128xf32>
    %437 = vector.shape_cast %433 : vector<2x128xf32> to vector<1x2x128xf32>
    tpu.vector_store %arg7[%434, %c0_120, %c0_121], %437 {strides = array<i32>} : memref<2x2x128xf32, #tpu.memory_space<vmem>>, vector<1x2x128xf32>,
    %c0_122 = arith.constant 0 : index
    %c0_123 = arith.constant 0 : index
    %c0_124 = arith.constant 0 : index
    %438 = vector.load %arg8[%c0_122, %c0_123, %c0_124] : memref<8x2x128xf32, #tpu.memory_space<vmem>>, vector<8x2x128xf32>
    %439 = arith.truncf %438 : vector<8x2x128xf32> to vector<8x2x128xbf16>
    %c0_125 = arith.constant 0 : index
    %c0_126 = arith.constant 0 : index
    %c0_127 = arith.constant 0 : index
    %440 = vector.load %arg6[%c0_125, %c0_126, %c0_127] : memref<8x2x128xbf16, #tpu.memory_space<vmem>>, vector<8x2x128xbf16>
    tpu.vector_store %arg6[%c0_125, %c0_126, %c0_127], %439 {strides = array<i32>} : memref<8x2x128xbf16, #tpu.memory_space<vmem>>, vector<8x2x128xbf16>,
    return
  }
  func.func @transform_0(%arg0: i32, %arg1: i32) -> (i32, i32, i32, i32) {
    %c2_i32 = arith.constant 2 : i32
    %0 = arith.muli %c2_i32, %arg1 : i32
    %c0_i32 = arith.constant 0 : i32
    %1 = arith.subi %c0_i32, %0 : i32
    %2 = arith.muli %arg0, %1 : i32
    %3 = arith.addi %arg1, %2 : i32
    %c0_i32_0 = arith.constant 0 : i32
    %c0_i32_1 = arith.constant 0 : i32
    %c0_i32_2 = arith.constant 0 : i32
    return %arg0, %3, %c0_i32_0, %c0_i32_1 : i32, i32, i32, i32
  }
  func.func @transform_1(%arg0: i32, %arg1: i32) -> (i32, i32, i32) {
    %c2_i32 = arith.constant 2 : i32
    %0 = arith.muli %c2_i32, %arg1 : i32
    %c0_i32 = arith.constant 0 : i32
    %1 = arith.subi %c0_i32, %0 : i32
    %2 = arith.muli %arg0, %1 : i32
    %3 = arith.addi %arg1, %2 : i32
    %c0_i32_0 = arith.constant 0 : i32
    %c0_i32_1 = arith.constant 0 : i32
    %c0_i32_2 = arith.constant 0 : i32
    return %3, %c0_i32_0, %c0_i32_1 : i32, i32, i32
  }
  func.func @transform_2(%arg0: i32, %arg1: i32) -> (i32, i32, i32) {
    %c0_i32 = arith.constant 0 : i32
    %c0_i32_0 = arith.constant 0 : i32
    %c0_i32_1 = arith.constant 0 : i32
    return %arg0, %c0_i32, %c0_i32_0 : i32, i32, i32
  }
  func.func @transform_3(%arg0: i32, %arg1: i32) -> (i32, i32, i32) {
    %c0_i32 = arith.constant 0 : i32
    %c0_i32_0 = arith.constant 0 : i32
    %c0_i32_1 = arith.constant 0 : i32
    return %arg0, %c0_i32, %c0_i32_0 : i32, i32, i32
  }
  func.func @transform_4(%arg0: i32, %arg1: i32) -> (i32, i32, i32) {
    %c2_i32 = arith.constant 2 : i32
    %0 = arith.muli %c2_i32, %arg1 : i32
    %c0_i32 = arith.constant 0 : i32
    %1 = arith.subi %c0_i32, %0 : i32
    %2 = arith.muli %arg0, %1 : i32
    %3 = arith.addi %arg1, %2 : i32
    %c0_i32_0 = arith.constant 0 : i32
    %c0_i32_1 = arith.constant 0 : i32
    return %3, %c0_i32_0, %arg0 : i32, i32, i32
  }
}

module attributes {stable_mosaic.version = 11 : i64} {
  func.func @_head_kernel(%arg0: i32, %arg1: i32, %arg2: memref<16x256xbf16, #tpu.memory_space<vmem>>, %arg3: memref<256x128xbf16, #tpu.memory_space<vmem>>, %arg4: memref<1x128xf32, #tpu.memory_space<vmem>>, %arg5: memref<1x1x128xf32, #tpu.memory_space<vmem>>, %arg6: memref<1x1x128xf32, #tpu.memory_space<vmem>>, %arg7: memref<1x128x256xbf16, #tpu.memory_space<vmem>>, %arg8: memref<1x1x256xf32, #tpu.memory_space<vmem>>, %arg9: memref<1x1x256xf32, #tpu.memory_space<vmem>>, %arg10: memref<1x1x256xf32, #tpu.memory_space<vmem>>, %arg11: memref<1x256x256xbf16, #tpu.memory_space<vmem>>, %arg12: memref<1x1x256xf32, #tpu.memory_space<vmem>>, %arg13: memref<1x1x256xf32, #tpu.memory_space<vmem>>, %arg14: memref<1x1x256xf32, #tpu.memory_space<vmem>>, %arg15: memref<1x256x128xbf16, #tpu.memory_space<vmem>>, %arg16: memref<1x1x128xf32, #tpu.memory_space<vmem>>, %arg17: memref<16x128xf32, #tpu.memory_space<vmem>>) attributes {dimension_semantics = [#tpu.dimension_semantics<parallel>, #tpu.dimension_semantics<parallel>], iteration_bounds = array<i64: 3, 1>, scalar_prefetch = 0 : i64, scratch_operands = 0 : i64, tpu.core_type = #tpu.core_type<tc>, window_params = [{transform_indices = @transform_0, window_bounds = array<i64: 16, 256>}, {pipeline_mode = #tpu.pipeline_mode<synchronous>, transform_indices = @transform_1, window_bounds = array<i64: 256, 128>}, {pipeline_mode = #tpu.pipeline_mode<synchronous>, transform_indices = @transform_2, window_bounds = array<i64: 1, 128>}, {transform_indices = @transform_3, window_bounds = array<i64: 1, 1, 128>}, {transform_indices = @transform_4, window_bounds = array<i64: 1, 1, 128>}, {transform_indices = @transform_5, window_bounds = array<i64: 1, 128, 256>}, {transform_indices = @transform_6, window_bounds = array<i64: 1, 1, 256>}, {transform_indices = @transform_7, window_bounds = array<i64: 1, 1, 256>}, {transform_indices = @transform_8, window_bounds = array<i64: 1, 1, 256>}, {transform_indices = @transform_9, window_bounds = array<i64: 1, 256, 256>}, {transform_indices = @transform_10, window_bounds = array<i64: 1, 1, 256>}, {transform_indices = @transform_11, window_bounds = array<i64: 1, 1, 256>}, {transform_indices = @transform_12, window_bounds = array<i64: 1, 1, 256>}, {transform_indices = @transform_13, window_bounds = array<i64: 1, 256, 128>}, {transform_indices = @transform_14, window_bounds = array<i64: 1, 1, 128>}, {transform_indices = @transform_15, window_bounds = array<i64: 16, 128>}]} {
    %c0 = arith.constant 0 : index
    %c0_0 = arith.constant 0 : index
    %0 = vector.load %arg2[%c0, %c0_0] : memref<16x256xbf16, #tpu.memory_space<vmem>>, vector<16x256xbf16>
    %c0_1 = arith.constant 0 : index
    %c0_2 = arith.constant 0 : index
    %1 = vector.load %arg3[%c0_1, %c0_2] : memref<256x128xbf16, #tpu.memory_space<vmem>>, vector<256x128xbf16>
    %cst = arith.constant dense<0.000000e+00> : vector<16x128xf32>
    %2 = tpu.matmul %0, %1, %cst {dimension_numbers = #tpu.dot_dimension_numbers<[1], [0], [0], [1], [0, 0, 1, 1], [], []>} : vector<16x256xbf16>, vector<256x128xbf16>, vector<16x128xf32> -> vector<16x128xf32>
    %c0_3 = arith.constant 0 : index
    %c0_4 = arith.constant 0 : index
    %3 = vector.load %arg4[%c0_3, %c0_4] : memref<1x128xf32, #tpu.memory_space<vmem>>, vector<1x128xf32>
    %4 = vector.broadcast %3 : vector<1x128xf32> to vector<16x128xf32>
    %5 = arith.addf %2, %4 : vector<16x128xf32>
    %cst_5 = arith.constant 0.000000e+00 : f32
    %6 = vector.broadcast %cst_5 : f32 to vector<16x128xf32>
    %7 = arith.maximumf %5, %6 : vector<16x128xf32>
    %c0_6 = arith.constant 0 : index
    %c0_7 = arith.constant 0 : index
    %c0_8 = arith.constant 0 : index
    %8 = vector.load %arg5[%c0_6, %c0_7, %c0_8] : memref<1x1x128xf32, #tpu.memory_space<vmem>>, vector<1x1x128xf32>
    %9 = vector.shape_cast %8 : vector<1x1x128xf32> to vector<1x128xf32>
    %c0_9 = arith.constant 0 : index
    %c0_10 = arith.constant 0 : index
    %c0_11 = arith.constant 0 : index
    %10 = vector.load %arg6[%c0_9, %c0_10, %c0_11] : memref<1x1x128xf32, #tpu.memory_space<vmem>>, vector<1x1x128xf32>
    %11 = vector.shape_cast %10 : vector<1x1x128xf32> to vector<1x128xf32>
    %cst_12 = arith.constant dense<0.000000e+00> : vector<16xf32>
    %12 = vector.multi_reduction <add>, %7, %cst_12 [1] : vector<16x128xf32> to vector<16xf32>
    %13 = vector.shape_cast %12 : vector<16xf32> to vector<16x1xf32>
    %cst_13 = arith.constant 1.280000e+02 : f32
    %14 = vector.broadcast %cst_13 : f32 to vector<16x1xf32>
    %15 = arith.divf %13, %14 : vector<16x1xf32>
    %16 = vector.broadcast %15 : vector<16x1xf32> to vector<16x128xf32>
    %17 = arith.subf %7, %16 : vector<16x128xf32>
    %18 = arith.mulf %17, %17 : vector<16x128xf32>
    %cst_14 = arith.constant dense<0.000000e+00> : vector<16xf32>
    %19 = vector.multi_reduction <add>, %18, %cst_14 [1] : vector<16x128xf32> to vector<16xf32>
    %20 = vector.shape_cast %19 : vector<16xf32> to vector<16x1xf32>
    %cst_15 = arith.constant 1.280000e+02 : f32
    %21 = vector.broadcast %cst_15 : f32 to vector<16x1xf32>
    %22 = arith.divf %20, %21 : vector<16x1xf32>
    %23 = vector.broadcast %15 : vector<16x1xf32> to vector<16x128xf32>
    %24 = arith.subf %7, %23 : vector<16x128xf32>
    %cst_16 = arith.constant 9.99999974E-6 : f32
    %25 = vector.broadcast %cst_16 : f32 to vector<16x1xf32>
    %26 = arith.addf %22, %25 : vector<16x1xf32>
    %27 = math.rsqrt %26 : vector<16x1xf32>
    %28 = vector.broadcast %27 : vector<16x1xf32> to vector<16x128xf32>
    %29 = arith.mulf %24, %28 : vector<16x128xf32>
    %30 = vector.broadcast %9 : vector<1x128xf32> to vector<16x128xf32>
    %31 = arith.mulf %29, %30 : vector<16x128xf32>
    %32 = vector.broadcast %11 : vector<1x128xf32> to vector<16x128xf32>
    %33 = arith.addf %31, %32 : vector<16x128xf32>
    %34 = arith.truncf %33 : vector<16x128xf32> to vector<16x128xbf16>
    %c0_17 = arith.constant 0 : index
    %c0_18 = arith.constant 0 : index
    %c0_19 = arith.constant 0 : index
    %35 = vector.load %arg7[%c0_17, %c0_18, %c0_19] : memref<1x128x256xbf16, #tpu.memory_space<vmem>>, vector<1x128x256xbf16>
    %36 = vector.shape_cast %35 : vector<1x128x256xbf16> to vector<128x256xbf16>
    %cst_20 = arith.constant dense<0.000000e+00> : vector<16x256xf32>
    %37 = tpu.matmul %34, %36, %cst_20 {dimension_numbers = #tpu.dot_dimension_numbers<[1], [0], [0], [1], [0, 0, 1, 1], [], []>} : vector<16x128xbf16>, vector<128x256xbf16>, vector<16x256xf32> -> vector<16x256xf32>
    %c0_21 = arith.constant 0 : index
    %c0_22 = arith.constant 0 : index
    %c0_23 = arith.constant 0 : index
    %38 = vector.load %arg8[%c0_21, %c0_22, %c0_23] : memref<1x1x256xf32, #tpu.memory_space<vmem>>, vector<1x1x256xf32>
    %39 = vector.shape_cast %38 : vector<1x1x256xf32> to vector<1x256xf32>
    %40 = vector.broadcast %39 : vector<1x256xf32> to vector<16x256xf32>
    %41 = arith.addf %37, %40 : vector<16x256xf32>
    %cst_24 = arith.constant 0.000000e+00 : f32
    %42 = vector.broadcast %cst_24 : f32 to vector<16x256xf32>
    %43 = arith.maximumf %41, %42 : vector<16x256xf32>
    %c0_25 = arith.constant 0 : index
    %c0_26 = arith.constant 0 : index
    %c0_27 = arith.constant 0 : index
    %44 = vector.load %arg9[%c0_25, %c0_26, %c0_27] : memref<1x1x256xf32, #tpu.memory_space<vmem>>, vector<1x1x256xf32>
    %45 = vector.shape_cast %44 : vector<1x1x256xf32> to vector<1x256xf32>
    %c0_28 = arith.constant 0 : index
    %c0_29 = arith.constant 0 : index
    %c0_30 = arith.constant 0 : index
    %46 = vector.load %arg10[%c0_28, %c0_29, %c0_30] : memref<1x1x256xf32, #tpu.memory_space<vmem>>, vector<1x1x256xf32>
    %47 = vector.shape_cast %46 : vector<1x1x256xf32> to vector<1x256xf32>
    %cst_31 = arith.constant dense<0.000000e+00> : vector<16xf32>
    %48 = vector.multi_reduction <add>, %43, %cst_31 [1] : vector<16x256xf32> to vector<16xf32>
    %49 = vector.shape_cast %48 : vector<16xf32> to vector<16x1xf32>
    %cst_32 = arith.constant 2.560000e+02 : f32
    %50 = vector.broadcast %cst_32 : f32 to vector<16x1xf32>
    %51 = arith.divf %49, %50 : vector<16x1xf32>
    %52 = vector.broadcast %51 : vector<16x1xf32> to vector<16x256xf32>
    %53 = arith.subf %43, %52 : vector<16x256xf32>
    %54 = arith.mulf %53, %53 : vector<16x256xf32>
    %cst_33 = arith.constant dense<0.000000e+00> : vector<16xf32>
    %55 = vector.multi_reduction <add>, %54, %cst_33 [1] : vector<16x256xf32> to vector<16xf32>
    %56 = vector.shape_cast %55 : vector<16xf32> to vector<16x1xf32>
    %cst_34 = arith.constant 2.560000e+02 : f32
    %57 = vector.broadcast %cst_34 : f32 to vector<16x1xf32>
    %58 = arith.divf %56, %57 : vector<16x1xf32>
    %59 = vector.broadcast %51 : vector<16x1xf32> to vector<16x256xf32>
    %60 = arith.subf %43, %59 : vector<16x256xf32>
    %cst_35 = arith.constant 9.99999974E-6 : f32
    %61 = vector.broadcast %cst_35 : f32 to vector<16x1xf32>
    %62 = arith.addf %58, %61 : vector<16x1xf32>
    %63 = math.rsqrt %62 : vector<16x1xf32>
    %64 = vector.broadcast %63 : vector<16x1xf32> to vector<16x256xf32>
    %65 = arith.mulf %60, %64 : vector<16x256xf32>
    %66 = vector.broadcast %45 : vector<1x256xf32> to vector<16x256xf32>
    %67 = arith.mulf %65, %66 : vector<16x256xf32>
    %68 = vector.broadcast %47 : vector<1x256xf32> to vector<16x256xf32>
    %69 = arith.addf %67, %68 : vector<16x256xf32>
    %70 = arith.truncf %69 : vector<16x256xf32> to vector<16x256xbf16>
    %c0_36 = arith.constant 0 : index
    %c0_37 = arith.constant 0 : index
    %c0_38 = arith.constant 0 : index
    %71 = vector.load %arg11[%c0_36, %c0_37, %c0_38] : memref<1x256x256xbf16, #tpu.memory_space<vmem>>, vector<1x256x256xbf16>
    %72 = vector.shape_cast %71 : vector<1x256x256xbf16> to vector<256x256xbf16>
    %cst_39 = arith.constant dense<0.000000e+00> : vector<16x256xf32>
    %73 = tpu.matmul %70, %72, %cst_39 {dimension_numbers = #tpu.dot_dimension_numbers<[1], [0], [0], [1], [0, 0, 1, 1], [], []>} : vector<16x256xbf16>, vector<256x256xbf16>, vector<16x256xf32> -> vector<16x256xf32>
    %c0_40 = arith.constant 0 : index
    %c0_41 = arith.constant 0 : index
    %c0_42 = arith.constant 0 : index
    %74 = vector.load %arg12[%c0_40, %c0_41, %c0_42] : memref<1x1x256xf32, #tpu.memory_space<vmem>>, vector<1x1x256xf32>
    %75 = vector.shape_cast %74 : vector<1x1x256xf32> to vector<1x256xf32>
    %76 = vector.broadcast %75 : vector<1x256xf32> to vector<16x256xf32>
    %77 = arith.addf %73, %76 : vector<16x256xf32>
    %cst_43 = arith.constant 0.000000e+00 : f32
    %78 = vector.broadcast %cst_43 : f32 to vector<16x256xf32>
    %79 = arith.maximumf %77, %78 : vector<16x256xf32>
    %c0_44 = arith.constant 0 : index
    %c0_45 = arith.constant 0 : index
    %c0_46 = arith.constant 0 : index
    %80 = vector.load %arg13[%c0_44, %c0_45, %c0_46] : memref<1x1x256xf32, #tpu.memory_space<vmem>>, vector<1x1x256xf32>
    %81 = vector.shape_cast %80 : vector<1x1x256xf32> to vector<1x256xf32>
    %c0_47 = arith.constant 0 : index
    %c0_48 = arith.constant 0 : index
    %c0_49 = arith.constant 0 : index
    %82 = vector.load %arg14[%c0_47, %c0_48, %c0_49] : memref<1x1x256xf32, #tpu.memory_space<vmem>>, vector<1x1x256xf32>
    %83 = vector.shape_cast %82 : vector<1x1x256xf32> to vector<1x256xf32>
    %cst_50 = arith.constant dense<0.000000e+00> : vector<16xf32>
    %84 = vector.multi_reduction <add>, %79, %cst_50 [1] : vector<16x256xf32> to vector<16xf32>
    %85 = vector.shape_cast %84 : vector<16xf32> to vector<16x1xf32>
    %cst_51 = arith.constant 2.560000e+02 : f32
    %86 = vector.broadcast %cst_51 : f32 to vector<16x1xf32>
    %87 = arith.divf %85, %86 : vector<16x1xf32>
    %88 = vector.broadcast %87 : vector<16x1xf32> to vector<16x256xf32>
    %89 = arith.subf %79, %88 : vector<16x256xf32>
    %90 = arith.mulf %89, %89 : vector<16x256xf32>
    %cst_52 = arith.constant dense<0.000000e+00> : vector<16xf32>
    %91 = vector.multi_reduction <add>, %90, %cst_52 [1] : vector<16x256xf32> to vector<16xf32>
    %92 = vector.shape_cast %91 : vector<16xf32> to vector<16x1xf32>
    %cst_53 = arith.constant 2.560000e+02 : f32
    %93 = vector.broadcast %cst_53 : f32 to vector<16x1xf32>
    %94 = arith.divf %92, %93 : vector<16x1xf32>
    %95 = vector.broadcast %87 : vector<16x1xf32> to vector<16x256xf32>
    %96 = arith.subf %79, %95 : vector<16x256xf32>
    %cst_54 = arith.constant 9.99999974E-6 : f32
    %97 = vector.broadcast %cst_54 : f32 to vector<16x1xf32>
    %98 = arith.addf %94, %97 : vector<16x1xf32>
    %99 = math.rsqrt %98 : vector<16x1xf32>
    %100 = vector.broadcast %99 : vector<16x1xf32> to vector<16x256xf32>
    %101 = arith.mulf %96, %100 : vector<16x256xf32>
    %102 = vector.broadcast %81 : vector<1x256xf32> to vector<16x256xf32>
    %103 = arith.mulf %101, %102 : vector<16x256xf32>
    %104 = vector.broadcast %83 : vector<1x256xf32> to vector<16x256xf32>
    %105 = arith.addf %103, %104 : vector<16x256xf32>
    %106 = arith.truncf %105 : vector<16x256xf32> to vector<16x256xbf16>
    %c0_55 = arith.constant 0 : index
    %c0_56 = arith.constant 0 : index
    %c0_57 = arith.constant 0 : index
    %107 = vector.load %arg15[%c0_55, %c0_56, %c0_57] : memref<1x256x128xbf16, #tpu.memory_space<vmem>>, vector<1x256x128xbf16>
    %108 = vector.shape_cast %107 : vector<1x256x128xbf16> to vector<256x128xbf16>
    %cst_58 = arith.constant dense<0.000000e+00> : vector<16x128xf32>
    %109 = tpu.matmul %106, %108, %cst_58 {dimension_numbers = #tpu.dot_dimension_numbers<[1], [0], [0], [1], [0, 0, 1, 1], [], []>} : vector<16x256xbf16>, vector<256x128xbf16>, vector<16x128xf32> -> vector<16x128xf32>
    %c0_59 = arith.constant 0 : index
    %c0_60 = arith.constant 0 : index
    %c0_61 = arith.constant 0 : index
    %110 = vector.load %arg16[%c0_59, %c0_60, %c0_61] : memref<1x1x128xf32, #tpu.memory_space<vmem>>, vector<1x1x128xf32>
    %111 = vector.shape_cast %110 : vector<1x1x128xf32> to vector<1x128xf32>
    %112 = vector.broadcast %111 : vector<1x128xf32> to vector<16x128xf32>
    %113 = arith.addf %109, %112 : vector<16x128xf32>
    %114 = arith.negf %113 : vector<16x128xf32>
    %115 = math.exp %114 : vector<16x128xf32>
    %cst_62 = arith.constant 1.000000e+00 : f32
    %116 = vector.broadcast %cst_62 : f32 to vector<16x128xf32>
    %117 = arith.addf %116, %115 : vector<16x128xf32>
    %118 = arith.divf %116, %117 : vector<16x128xf32>
    %c0_63 = arith.constant 0 : index
    %c0_64 = arith.constant 0 : index
    %119 = vector.load %arg17[%c0_63, %c0_64] : memref<16x128xf32, #tpu.memory_space<vmem>>, vector<16x128xf32>
    tpu.vector_store %arg17[%c0_63, %c0_64], %118 {strides = array<i32>} : memref<16x128xf32, #tpu.memory_space<vmem>>, vector<16x128xf32>,
    return
  }
  func.func @transform_0(%arg0: i32, %arg1: i32) -> (i32, i32) {
    %c0_i32 = arith.constant 0 : i32
    %c0_i32_0 = arith.constant 0 : i32
    return %arg1, %c0_i32 : i32, i32
  }
  func.func @transform_1(%arg0: i32, %arg1: i32) -> (i32, i32) {
    %c0_i32 = arith.constant 0 : i32
    %c0_i32_0 = arith.constant 0 : i32
    %c0_i32_1 = arith.constant 0 : i32
    return %c0_i32, %c0_i32_0 : i32, i32
  }
  func.func @transform_2(%arg0: i32, %arg1: i32) -> (i32, i32) {
    %c0_i32 = arith.constant 0 : i32
    %c0_i32_0 = arith.constant 0 : i32
    %c0_i32_1 = arith.constant 0 : i32
    return %c0_i32, %c0_i32_0 : i32, i32
  }
  func.func @transform_3(%arg0: i32, %arg1: i32) -> (i32, i32, i32) {
    %c0_i32 = arith.constant 0 : i32
    %c0_i32_0 = arith.constant 0 : i32
    %c0_i32_1 = arith.constant 0 : i32
    return %arg0, %c0_i32, %c0_i32_0 : i32, i32, i32
  }
  func.func @transform_4(%arg0: i32, %arg1: i32) -> (i32, i32, i32) {
    %c0_i32 = arith.constant 0 : i32
    %c0_i32_0 = arith.constant 0 : i32
    %c0_i32_1 = arith.constant 0 : i32
    return %arg0, %c0_i32, %c0_i32_0 : i32, i32, i32
  }
  func.func @transform_5(%arg0: i32, %arg1: i32) -> (i32, i32, i32) {
    %c0_i32 = arith.constant 0 : i32
    %c0_i32_0 = arith.constant 0 : i32
    %c0_i32_1 = arith.constant 0 : i32
    return %arg0, %c0_i32, %c0_i32_0 : i32, i32, i32
  }
  func.func @transform_6(%arg0: i32, %arg1: i32) -> (i32, i32, i32) {
    %c0_i32 = arith.constant 0 : i32
    %c0_i32_0 = arith.constant 0 : i32
    %c0_i32_1 = arith.constant 0 : i32
    return %arg0, %c0_i32, %c0_i32_0 : i32, i32, i32
  }
  func.func @transform_7(%arg0: i32, %arg1: i32) -> (i32, i32, i32) {
    %c0_i32 = arith.constant 0 : i32
    %c0_i32_0 = arith.constant 0 : i32
    %c0_i32_1 = arith.constant 0 : i32
    return %arg0, %c0_i32, %c0_i32_0 : i32, i32, i32
  }
  func.func @transform_8(%arg0: i32, %arg1: i32) -> (i32, i32, i32) {
    %c0_i32 = arith.constant 0 : i32
    %c0_i32_0 = arith.constant 0 : i32
    %c0_i32_1 = arith.constant 0 : i32
    return %arg0, %c0_i32, %c0_i32_0 : i32, i32, i32
  }
  func.func @transform_9(%arg0: i32, %arg1: i32) -> (i32, i32, i32) {
    %c0_i32 = arith.constant 0 : i32
    %c0_i32_0 = arith.constant 0 : i32
    %c0_i32_1 = arith.constant 0 : i32
    return %arg0, %c0_i32, %c0_i32_0 : i32, i32, i32
  }
  func.func @transform_10(%arg0: i32, %arg1: i32) -> (i32, i32, i32) {
    %c0_i32 = arith.constant 0 : i32
    %c0_i32_0 = arith.constant 0 : i32
    %c0_i32_1 = arith.constant 0 : i32
    return %arg0, %c0_i32, %c0_i32_0 : i32, i32, i32
  }
  func.func @transform_11(%arg0: i32, %arg1: i32) -> (i32, i32, i32) {
    %c0_i32 = arith.constant 0 : i32
    %c0_i32_0 = arith.constant 0 : i32
    %c0_i32_1 = arith.constant 0 : i32
    return %arg0, %c0_i32, %c0_i32_0 : i32, i32, i32
  }
  func.func @transform_12(%arg0: i32, %arg1: i32) -> (i32, i32, i32) {
    %c0_i32 = arith.constant 0 : i32
    %c0_i32_0 = arith.constant 0 : i32
    %c0_i32_1 = arith.constant 0 : i32
    return %arg0, %c0_i32, %c0_i32_0 : i32, i32, i32
  }
  func.func @transform_13(%arg0: i32, %arg1: i32) -> (i32, i32, i32) {
    %c0_i32 = arith.constant 0 : i32
    %c0_i32_0 = arith.constant 0 : i32
    %c0_i32_1 = arith.constant 0 : i32
    return %arg0, %c0_i32, %c0_i32_0 : i32, i32, i32
  }
  func.func @transform_14(%arg0: i32, %arg1: i32) -> (i32, i32, i32) {
    %c0_i32 = arith.constant 0 : i32
    %c0_i32_0 = arith.constant 0 : i32
    %c0_i32_1 = arith.constant 0 : i32
    return %arg0, %c0_i32, %c0_i32_0 : i32, i32, i32
  }
  func.func @transform_15(%arg0: i32, %arg1: i32) -> (i32, i32) {
    %c0_i32 = arith.constant 0 : i32
    return %arg1, %arg0 : i32, i32
  }
}

</mosaic_0001>

<llo_original>
// kernel: artspeech_forward.5
$region0: #{artspeech_forward.5}
  #allocation0 [shape = 'u32[]', space=smem, size = 0x4, offset = 0x4, fixed_abs, tag = 'smem constant byte address 0x4 - core index']
  #allocation1 [shape = 'u32[144,128]{1,0:T(1,128)}', space=vmem, size = 0x12000, scoped, tag = 'internal scratch']
  %s0 = inlined_call_operand.vmem [shape: bf16[16,256], index: 0, kind: input, shape index: {}]
  %s1 = inlined_call_operand.vmem [shape: bf16[256,128], index: 1, kind: input, shape index: {}]
  %s2 = inlined_call_operand.vmem [shape: f32[1,128], index: 2, kind: input, shape index: {}]
  %s3 = inlined_call_operand.vmem [shape: f32[3,1,128], index: 3, kind: input, shape index: {}]
  %s4 = inlined_call_operand.vmem [shape: f32[3,1,128], index: 4, kind: input, shape index: {}]
  %s5 = inlined_call_operand.vmem [shape: bf16[3,128,256], index: 5, kind: input, shape index: {}]
  %s6 = inlined_call_operand.vmem [shape: f32[3,1,256], index: 6, kind: input, shape index: {}]
  %s7 = inlined_call_operand.vmem [shape: f32[3,1,256], index: 7, kind: input, shape index: {}]
  %s8 = inlined_call_operand.vmem [shape: f32[3,1,256], index: 8, kind: input, shape index: {}]
  %s9 = inlined_call_operand.vmem [shape: bf16[3,256,256], index: 9, kind: input, shape index: {}]
  %s10 = inlined_call_operand.vmem [shape: f32[3,1,256], index: 10, kind: input, shape index: {}]
  %s11 = inlined_call_operand.vmem [shape: f32[3,1,256], index: 11, kind: input, shape index: {}]
  %s12 = inlined_call_operand.vmem [shape: f32[3,1,256], index: 12, kind: input, shape index: {}]
  %s13 = inlined_call_operand.vmem [shape: bf16[3,256,128], index: 13, kind: input, shape index: {}]
  %s14 = inlined_call_operand.vmem [shape: f32[3,1,128], index: 14, kind: input, shape index: {}]
  %s15 = inlined_call_operand.vmem [shape: f32[16,384], index: 15, kind: output, shape index: {}]
  %s16 = sld [smem:[#allocation0]]
  $region127: #{artspeech_forward.5} parent=0
    _
  %s18 = ssub.s32 1, %s16
  %s19 = scalar_select 0, %s18, %s16
  $region1: #{artspeech_forward.5} parent=0
    #allocation2 [shape = 'u8[16384]{0}', space=vmem, size = 0x4000, scoped, tag = 'output window, operand 0']
    loop: start=0, step=1, limit=5
    $region2: #{artspeech_forward.5} parent=1 // loop_pre_header
      _
    $region3: #{artspeech_forward.5} parent=1 // loop_header
      %s21 = sphi 0, %s25
      %p22 = scmp.ge.s32.totalorder %s21, 5
      %s28 = sphi 0, %s40
      %s29 = sphi 0, %s36
      %s30 = sphi 0, %s28
      %s31 = sphi 0, %s29
      %s32 = sphi 0, %s30
      %s33 = sphi 0, %s31
      %s43 = sphi 0, %s45
      %s46 = sphi 0, %s43
      %s47 = sphi 0, %s46
      %s63 = sphi 0, %s47
      %s67 = sphi 0, %s67
      %s69 = sphi 0, %s67
      %s70 = sphi 0, %s69
      %s84 = sphi 0, %s70
      %s88 = sphi 0, %s88
      %s90 = sphi 0, %s88
      %s91 = sphi 0, %s90
      %s105 = sphi 0, %s91
      %s111 = sphi 0, %s113
      %s114 = sphi 0, %s111
      %s115 = sphi 0, %s114
      %s131 = sphi 0, %s115
      %s137 = sphi 0, %s139
      %s140 = sphi 0, %s137
      %s141 = sphi 0, %s140
      %s157 = sphi 0, %s141
      %s163 = sphi 0, %s165
      %s166 = sphi 0, %s163
      %s167 = sphi 0, %s166
      %s183 = sphi 0, %s167
      %s189 = sphi 0, %s191
      %s192 = sphi 0, %s189
      %s193 = sphi 0, %s192
      %s209 = sphi 0, %s193
      %s215 = sphi 0, %s217
      %s218 = sphi 0, %s215
      %s219 = sphi 0, %s218
      %s235 = sphi 0, %s219
      %s241 = sphi 0, %s243
      %s244 = sphi 0, %s241
      %s245 = sphi 0, %s244
      %s261 = sphi 0, %s245
      %s267 = sphi 0, %s269
      %s270 = sphi 0, %s267
      %s271 = sphi 0, %s270
      %s287 = sphi 0, %s271
      %s293 = sphi 0, %s295
      %s296 = sphi 0, %s293
      %s297 = sphi 0, %s296
      %s313 = sphi 0, %s297
      %s319 = sphi 0, %s321
      %s322 = sphi 0, %s319
      %s323 = sphi 0, %s322
      %s339 = sphi 0, %s323
      %s345 = sphi 0, %s347
      %s348 = sphi 0, %s345
      %s349 = sphi 0, %s348
      %s365 = sphi 0, %s349
      %s371 = sphi 0, %s373
      %s374 = sphi 0, %s371
      %s375 = sphi 0, %s374
      %s391 = sphi 0, %s375
      %s397 = sphi 0, %s399
      %s400 = sphi 0, %s397
      %s401 = sphi 0, %s400
      %s417 = sphi 0, %s401
      %s425 = sphi 0, %s427
      %s428 = sphi 0, %s425
      %s429 = sphi 0, %s428
      %s445 = sphi 0, %s429
    $region4: #{artspeech_forward.5} parent=1 // loop_header_branch
      %24 = sbr.rel (%p22) target = $region8
    $region5: #{artspeech_forward.5} parent=1 // loop_body
      %s26 = ssub.s32 %s21, 1
      %s27 = ssub.s32 %s21, 2
      %s34 = sadd.s32 1, %s29
      %p35 = scmp.ge.s32.totalorder %s34, 1
      %s36 = scalar_select %p35, 0, %s34
      %s37 = sadd.s32 1, %s28
      %s38 = scalar_select %p35, %s37, %s28
      %p39 = scmp.ge.s32.totalorder %s38, 3
      %s40 = scalar_select %p39, 0, %s38
      %s41 = ssub.s32 %s29, %s36
      %p42 = scmp.eq.s32.totalorder %s41, 0
      %s44 = sadd.s32 %s43, 1
      %s45 = scalar_select %p42, %s43, %s44
      %p48 = pneg %p42
      %p49 = scmp.eq.s32.totalorder %s21, 2
      %p50 = por %p48, %p49
      %p51 = scmp.ne.s32.totalorder %s43, %s46
      %p52 = scmp.eq.s32.totalorder %s21, 0
      %p53 = por %p51, %p52
      %p54 = scmp.ne.s32.totalorder %s43, %s46
      %p55 = scmp.eq.s32.totalorder %s26, 2
      %p56 = por %p54, %p55
      %p57 = scmp.ne.s32.totalorder %s46, %s47
      %p58 = scmp.eq.s32.totalorder %s26, 0
      %p59 = por %p57, %p58
      %p60 = scmp.ne.s32.totalorder %s46, %s47
      %p61 = scmp.eq.s32.totalorder %s27, 2
      %p62 = por %p60, %p61
      %p64 = scmp.ne.s32.totalorder %s47, %s63
      %p65 = scmp.eq.s32.totalorder %s27, 0
      %p66 = por %p64, %p65
      %s68 = sadd.s32 %s67, 1
      %p71 = scmp.eq.s32.totalorder %s21, 2
      %p72 = scmp.ne.s32.totalorder %s67, %s69
      %p73 = scmp.eq.s32.totalorder %s21, 0
      %p74 = por %p72, %p73
      %p75 = scmp.ne.s32.totalorder %s67, %s69
      %p76 = scmp.eq.s32.totalorder %s26, 2
      %p77 = por %p75, %p76
      %p78 = scmp.ne.s32.totalorder %s69, %s70
      %p79 = scmp.eq.s32.totalorder %s26, 0
      %p80 = por %p78, %p79
      %p81 = scmp.ne.s32.totalorder %s69, %s70
      %p82 = scmp.eq.s32.totalorder %s27, 2
      %p83 = por %p81, %p82
      %p85 = scmp.ne.s32.totalorder %s70, %s84
      %p86 = scmp.eq.s32.totalorder %s27, 0
      %p87 = por %p85, %p86
      %s89 = sadd.s32 %s88, 1
      %p92 = scmp.eq.s32.totalorder %s21, 2
      %p93 = scmp.ne.s32.totalorder %s88, %s90
      %p94 = scmp.eq.s32.totalorder %s21, 0
      %p95 = por %p93, %p94
      %p96 = scmp.ne.s32.totalorder %s88, %s90
      %p97 = scmp.eq.s32.totalorder %s26, 2
      %p98 = por %p96, %p97
      %p99 = scmp.ne.s32.totalorder %s90, %s91
      %p100 = scmp.eq.s32.totalorder %s26, 0
      %p101 = por %p99, %p100
      %p102 = scmp.ne.s32.totalorder %s90, %s91
      %p103 = scmp.eq.s32.totalorder %s27, 2
      %p104 = por %p102, %p103
      %p106 = scmp.ne.s32.totalorder %s91, %s105
      %p107 = scmp.eq.s32.totalorder %s27, 0
      %p108 = por %p106, %p107
      %s109 = ssub.s32 %s28, %s40
      %p110 = scmp.eq.s32.totalorder %s109, 0
      %s112 = sadd.s32 %s111, 1
      %s113 = scalar_select %p110, %s111, %s112
      %p116 = pneg %p110
      %p117 = scmp.eq.s32.totalorder %s21, 2
      %p118 = por %p116, %p117
      %p119 = scmp.ne.s32.totalorder %s111, %s114
      %p120 = scmp.eq.s32.totalorder %s21, 0
      %p121 = por %p119, %p120
      %p122 = scmp.ne.s32.totalorder %s111, %s114
      %p123 = scmp.eq.s32.totalorder %s26, 2
      %p124 = por %p122, %p123
      %p125 = scmp.ne.s32.totalorder %s114, %s115
      %p126 = scmp.eq.s32.totalorder %s26, 0
      %p127 = por %p125, %p126
      %p128 = scmp.ne.s32.totalorder %s114, %s115
      %p129 = scmp.eq.s32.totalorder %s27, 2
      %p130 = por %p128, %p129
      %p132 = scmp.ne.s32.totalorder %s115, %s131
      %p133 = scmp.eq.s32.totalorder %s27, 0
      %p134 = por %p132, %p133
      %s135 = ssub.s32 %s28, %s40
      %p136 = scmp.eq.s32.totalorder %s135, 0
      %s138 = sadd.s32 %s137, 1
      %s139 = scalar_select %p136, %s137, %s138
      %p142 = pneg %p136
      %p143 = scmp.eq.s32.totalorder %s21, 2
      %p144 = por %p142, %p143
      %p145 = scmp.ne.s32.totalorder %s137, %s140
      %p146 = scmp.eq.s32.totalorder %s21, 0
      %p147 = por %p145, %p146
      %p148 = scmp.ne.s32.totalorder %s137, %s140
      %p149 = scmp.eq.s32.totalorder %s26, 2
      %p150 = por %p148, %p149
      %p151 = scmp.ne.s32.totalorder %s140, %s141
      %p152 = scmp.eq.s32.totalorder %s26, 0
      %p153 = por %p151, %p152
      %p154 = scmp.ne.s32.totalorder %s140, %s141
      %p155 = scmp.eq.s32.totalorder %s27, 2
      %p156 = por %p154, %p155
      %p158 = scmp.ne.s32.totalorder %s141, %s157
      %p159 = scmp.eq.s32.totalorder %s27, 0
      %p160 = por %p158, %p159
      %s161 = ssub.s32 %s28, %s40
      %p162 = scmp.eq.s32.totalorder %s161, 0
      %s164 = sadd.s32 %s163, 1
      %s165 = scalar_select %p162, %s163, %s164
      %p168 = pneg %p162
      %p169 = scmp.eq.s32.totalorder %s21, 2
      %p170 = por %p168, %p169
      %p171 = scmp.ne.s32.totalorder %s163, %s166
      %p172 = scmp.eq.s32.totalorder %s21, 0
      %p173 = por %p171, %p172
      %p174 = scmp.ne.s32.totalorder %s163, %s166
      %p175 = scmp.eq.s32.totalorder %s26, 2
      %p176 = por %p174, %p175
      %p177 = scmp.ne.s32.totalorder %s166, %s167
      %p178 = scmp.eq.s32.totalorder %s26, 0
      %p179 = por %p177, %p178
      %p180 = scmp.ne.s32.totalorder %s166, %s167
      %p181 = scmp.eq.s32.totalorder %s27, 2
      %p182 = por %p180, %p181
      %p184 = scmp.ne.s32.totalorder %s167, %s183
      %p185 = scmp.eq.s32.totalorder %s27, 0
      %p186 = por %p184, %p185
      %s187 = ssub.s32 %s28, %s40
      %p188 = scmp.eq.s32.totalorder %s187, 0
      %s190 = sadd.s32 %s189, 1
      %s191 = scalar_select %p188, %s189, %s190
      %p194 = pneg %p188
      %p195 = scmp.eq.s32.totalorder %s21, 2
      %p196 = por %p194, %p195
      %p197 = scmp.ne.s32.totalorder %s189, %s192
      %p198 = scmp.eq.s32.totalorder %s21, 0
      %p199 = por %p197, %p198
      %p200 = scmp.ne.s32.totalorder %s189, %s192
      %p201 = scmp.eq.s32.totalorder %s26, 2
      %p202 = por %p200, %p201
      %p203 = scmp.ne.s32.totalorder %s192, %s193
      %p204 = scmp.eq.s32.totalorder %s26, 0
      %p205 = por %p203, %p204
      %p206 = scmp.ne.s32.totalorder %s192, %s193
      %p207 = scmp.eq.s32.totalorder %s27, 2
      %p208 = por %p206, %p207
      %p210 = scmp.ne.s32.totalorder %s193, %s209
      %p211 = scmp.eq.s32.totalorder %s27, 0
      %p212 = por %p210, %p211
      %s213 = ssub.s32 %s28, %s40
      %p214 = scmp.eq.s32.totalorder %s213, 0
      %s216 = sadd.s32 %s215, 1
      %s217 = scalar_select %p214, %s215, %s216
      %p220 = pneg %p214
      %p221 = scmp.eq.s32.totalorder %s21, 2
      %p222 = por %p220, %p221
      %p223 = scmp.ne.s32.totalorder %s215, %s218
      %p224 = scmp.eq.s32.totalorder %s21, 0
      %p225 = por %p223, %p224
      %p226 = scmp.ne.s32.totalorder %s215, %s218
      %p227 = scmp.eq.s32.totalorder %s26, 2
      %p228 = por %p226, %p227
      %p229 = scmp.ne.s32.totalorder %s218, %s219
      %p230 = scmp.eq.s32.totalorder %s26, 0
      %p231 = por %p229, %p230
      %p232 = scmp.ne.s32.totalorder %s218, %s219
      %p233 = scmp.eq.s32.totalorder %s27, 2
      %p234 = por %p232, %p233
      %p236 = scmp.ne.s32.totalorder %s219, %s235
      %p237 = scmp.eq.s32.totalorder %s27, 0
      %p238 = por %p236, %p237
      %s239 = ssub.s32 %s28, %s40
      %p240 = scmp.eq.s32.totalorder %s239, 0
      %s242 = sadd.s32 %s241, 1
      %s243 = scalar_select %p240, %s241, %s242
      %p246 = pneg %p240
      %p247 = scmp.eq.s32.totalorder %s21, 2
      %p248 = por %p246, %p247
      %p249 = scmp.ne.s32.totalorder %s241, %s244
      %p250 = scmp.eq.s32.totalorder %s21, 0
      %p251 = por %p249, %p250
      %p252 = scmp.ne.s32.totalorder %s241, %s244
      %p253 = scmp.eq.s32.totalorder %s26, 2
      %p254 = por %p252, %p253
      %p255 = scmp.ne.s32.totalorder %s244, %s245
      %p256 = scmp.eq.s32.totalorder %s26, 0
      %p257 = por %p255, %p256
      %p258 = scmp.ne.s32.totalorder %s244, %s245
      %p259 = scmp.eq.s32.totalorder %s27, 2
      %p260 = por %p258, %p259
      %p262 = scmp.ne.s32.totalorder %s245, %s261
      %p263 = scmp.eq.s32.totalorder %s27, 0
      %p264 = por %p262, %p263
      %s265 = ssub.s32 %s28, %s40
      %p266 = scmp.eq.s32.totalorder %s265, 0
      %s268 = sadd.s32 %s267, 1
      %s269 = scalar_select %p266, %s267, %s268
      %p272 = pneg %p266
      %p273 = scmp.eq.s32.totalorder %s21, 2
      %p274 = por %p272, %p273
      %p275 = scmp.ne.s32.totalorder %s267, %s270
      %p276 = scmp.eq.s32.totalorder %s21, 0
      %p277 = por %p275, %p276
      %p278 = scmp.ne.s32.totalorder %s267, %s270
      %p279 = scmp.eq.s32.totalorder %s26, 2
      %p280 = por %p278, %p279
      %p281 = scmp.ne.s32.totalorder %s270, %s271
      %p282 = scmp.eq.s32.totalorder %s26, 0
      %p283 = por %p281, %p282
      %p284 = scmp.ne.s32.totalorder %s270, %s271
      %p285 = scmp.eq.s32.totalorder %s27, 2
      %p286 = por %p284, %p285
      %p288 = scmp.ne.s32.totalorder %s271, %s287
      %p289 = scmp.eq.s32.totalorder %s27, 0
      %p290 = por %p288, %p289
      %s291 = ssub.s32 %s28, %s40
      %p292 = scmp.eq.s32.totalorder %s291, 0
      %s294 = sadd.s32 %s293, 1
      %s295 = scalar_select %p292, %s293, %s294
      %p298 = pneg %p292
      %p299 = scmp.eq.s32.totalorder %s21, 2
      %p300 = por %p298, %p299
      %p301 = scmp.ne.s32.totalorder %s293, %s296
      %p302 = scmp.eq.s32.totalorder %s21, 0
      %p303 = por %p301, %p302
      %p304 = scmp.ne.s32.totalorder %s293, %s296
      %p305 = scmp.eq.s32.totalorder %s26, 2
      %p306 = por %p304, %p305
      %p307 = scmp.ne.s32.totalorder %s296, %s297
      %p308 = scmp.eq.s32.totalorder %s26, 0
      %p309 = por %p307, %p308
      %p310 = scmp.ne.s32.totalorder %s296, %s297
      %p311 = scmp.eq.s32.totalorder %s27, 2
      %p312 = por %p310, %p311
      %p314 = scmp.ne.s32.totalorder %s297, %s313
      %p315 = scmp.eq.s32.totalorder %s27, 0
      %p316 = por %p314, %p315
      %s317 = ssub.s32 %s28, %s40
      %p318 = scmp.eq.s32.totalorder %s317, 0
      %s320 = sadd.s32 %s319, 1
      %s321 = scalar_select %p318, %s319, %s320
      %p324 = pneg %p318
      %p325 = scmp.eq.s32.totalorder %s21, 2
      %p326 = por %p324, %p325
      %p327 = scmp.ne.s32.totalorder %s319, %s322
      %p328 = scmp.eq.s32.totalorder %s21, 0
      %p329 = por %p327, %p328
      %p330 = scmp.ne.s32.totalorder %s319, %s322
      %p331 = scmp.eq.s32.totalorder %s26, 2
      %p332 = por %p330, %p331
      %p333 = scmp.ne.s32.totalorder %s322, %s323
      %p334 = scmp.eq.s32.totalorder %s26, 0
      %p335 = por %p333, %p334
      %p336 = scmp.ne.s32.totalorder %s322, %s323
      %p337 = scmp.eq.s32.totalorder %s27, 2
      %p338 = por %p336, %p337
      %p340 = scmp.ne.s32.totalorder %s323, %s339
      %p341 = scmp.eq.s32.totalorder %s27, 0
      %p342 = por %p340, %p341
      %s343 = ssub.s32 %s28, %s40
      %p344 = scmp.eq.s32.totalorder %s343, 0
      %s346 = sadd.s32 %s345, 1
      %s347 = scalar_select %p344, %s345, %s346
      %p350 = pneg %p344
      %p351 = scmp.eq.s32.totalorder %s21, 2
      %p352 = por %p350, %p351
      %p353 = scmp.ne.s32.totalorder %s345, %s348
      %p354 = scmp.eq.s32.totalorder %s21, 0
      %p355 = por %p353, %p354
      %p356 = scmp.ne.s32.totalorder %s345, %s348
      %p357 = scmp.eq.s32.totalorder %s26, 2
      %p358 = por %p356, %p357
      %p359 = scmp.ne.s32.totalorder %s348, %s349
      %p360 = scmp.eq.s32.totalorder %s26, 0
      %p361 = por %p359, %p360
      %p362 = scmp.ne.s32.totalorder %s348, %s349
      %p363 = scmp.eq.s32.totalorder %s27, 2
      %p364 = por %p362, %p363
      %p366 = scmp.ne.s32.totalorder %s349, %s365
      %p367 = scmp.eq.s32.totalorder %s27, 0
      %p368 = por %p366, %p367
      %s369 = ssub.s32 %s28, %s40
      %p370 = scmp.eq.s32.totalorder %s369, 0
      %s372 = sadd.s32 %s371, 1
      %s373 = scalar_select %p370, %s371, %s372
      %p376 = pneg %p370
      %p377 = scmp.eq.s32.totalorder %s21, 2
      %p378 = por %p376, %p377
      %p379 = scmp.ne.s32.totalorder %s371, %s374
      %p380 = scmp.eq.s32.totalorder %s21, 0
      %p381 = por %p379, %p380
      %p382 = scmp.ne.s32.totalorder %s371, %s374
      %p383 = scmp.eq.s32.totalorder %s26, 2
      %p384 = por %p382, %p383
      %p385 = scmp.ne.s32.totalorder %s374, %s375
      %p386 = scmp.eq.s32.totalorder %s26, 0
      %p387 = por %p385, %p386
      %p388 = scmp.ne.s32.totalorder %s374, %s375
      %p389 = scmp.eq.s32.totalorder %s27, 2
      %p390 = por %p388, %p389
      %p392 = scmp.ne.s32.totalorder %s375, %s391
      %p393 = scmp.eq.s32.totalorder %s27, 0
      %p394 = por %p392, %p393
      %s395 = ssub.s32 %s28, %s40
      %p396 = scmp.eq.s32.totalorder %s395, 0
      %s398 = sadd.s32 %s397, 1
      %s399 = scalar_select %p396, %s397, %s398
      %p402 = pneg %p396
      %p403 = scmp.eq.s32.totalorder %s21, 2
      %p404 = por %p402, %p403
      %p405 = scmp.ne.s32.totalorder %s397, %s400
      %p406 = scmp.eq.s32.totalorder %s21, 0
      %p407 = por %p405, %p406
      %p408 = scmp.ne.s32.totalorder %s397, %s400
      %p409 = scmp.eq.s32.totalorder %s26, 2
      %p410 = por %p408, %p409
      %p411 = scmp.ne.s32.totalorder %s400, %s401
      %p412 = scmp.eq.s32.totalorder %s26, 0
      %p413 = por %p411, %p412
      %p414 = scmp.ne.s32.totalorder %s400, %s401
      %p415 = scmp.eq.s32.totalorder %s27, 2
      %p416 = por %p414, %p415
      %p418 = scmp.ne.s32.totalorder %s401, %s417
      %p419 = scmp.eq.s32.totalorder %s27, 0
      %p420 = por %p418, %p419
      %s421 = ssub.s32 %s29, %s36
      %s422 = ssub.s32 %s28, %s40
      %s423 = sor.u32 %s421, %s422
      %p424 = scmp.eq.s32.totalorder %s423, 0
      %s426 = sadd.s32 %s425, 1
      %s427 = scalar_select %p424, %s425, %s426
      %p430 = pneg %p424
      %p431 = scmp.eq.s32.totalorder %s21, 2
      %p432 = por %p430, %p431
      %p433 = scmp.ne.s32.totalorder %s425, %s428
      %p434 = scmp.eq.s32.totalorder %s21, 0
      %p435 = por %p433, %p434
      %p436 = scmp.ne.s32.totalorder %s425, %s428
      %p437 = scmp.eq.s32.totalorder %s26, 2
      %p438 = por %p436, %p437
      %p439 = scmp.ne.s32.totalorder %s428, %s429
      %p440 = scmp.eq.s32.totalorder %s26, 0
      %p441 = por %p439, %p440
      %p442 = scmp.ne.s32.totalorder %s428, %s429
      %p443 = scmp.eq.s32.totalorder %s27, 2
      %p444 = por %p442, %p443
      %p446 = scmp.ne.s32.totalorder %s429, %s445
      %p447 = scmp.eq.s32.totalorder %s27, 0
      %p448 = por %p446, %p447
      %p449 = scmp.le.s32.totalorder 1, %s21
      %p450 = scmp.lt.s32.totalorder %s21, 4
      %p451 = pnand %p449, %p450
      %p452 = pneg %p451
      // Predicated region
      $region9: #{artspeech_forward.5} parent=5 // pred_check
        _
      $region10: #{artspeech_forward.5} parent=5 // pred_check_branch
        %454 = sbr.rel (%p451) target = $region12
      $region11: #{artspeech_forward.5} parent=5 // pred_region
        %s455 = ssub.s32 %s21, 1
        // Predicated region
        $region13: #{artspeech_forward.5} parent=11 // pred_check
          %p456 = pneg %p59
        $region14: #{artspeech_forward.5} parent=11 // pred_check_branch
          %458 = sbr.rel (%p456) target = $region16
        $region15: #{artspeech_forward.5} parent=11 // pred_region
          %s459 = smul.u32 2, %s31
          %p460 = scmp.lt.s32.totalorder %s459, 1
          %s461 = scalar_select %p460, %s459, 1
          %s462 = smul.addr %s461, 2
          %s463 = smul.addr %s462, 4
          %s464 = scalar_lea.vmem %s0, %s463
          %s465 = smul.u32 2, %s31
        $region16: #{artspeech_forward.5} parent=11 // pred_fallthru
          _
        // Predicated region
        $region17: #{artspeech_forward.5} parent=11 // pred_check
          %p466 = pneg %p80
        $region18: #{artspeech_forward.5} parent=11 // pred_check_branch
          %468 = sbr.rel (%p466) target = $region20
        $region19: #{artspeech_forward.5} parent=11 // pred_region
          _
        $region20: #{artspeech_forward.5} parent=11 // pred_fallthru
          _
        // Predicated region
        $region21: #{artspeech_forward.5} parent=11 // pred_check
          %p469 = pneg %p101
        $region22: #{artspeech_forward.5} parent=11 // pred_check_branch
          %471 = sbr.rel (%p469) target = $region24
        $region23: #{artspeech_forward.5} parent=11 // pred_region
          _
        $region24: #{artspeech_forward.5} parent=11 // pred_fallthru
          _
      $region12: #{artspeech_forward.5} parent=5 // pred_fallthru
        _
      %p472 = scmp.lt.s32.totalorder %s21, 3
      // Predicated region
      $region25: #{artspeech_forward.5} parent=5 // pred_check
        %p473 = pneg %p472
      $region26: #{artspeech_forward.5} parent=5 // pred_check_branch
        %475 = sbr.rel (%p473) target = $region28
      $region27: #{artspeech_forward.5} parent=5 // pred_region
        // Predicated region
        $region29: #{artspeech_forward.5} parent=27 // pred_check
          %p476 = pneg %p121
        $region30: #{artspeech_forward.5} parent=27 // pred_check_branch
          %478 = sbr.rel (%p476) target = $region32
        $region31: #{artspeech_forward.5} parent=27 // pred_region
          %p479 = scmp.lt.s32.totalorder %s28, 2
          %s480 = scalar_select %p479, %s28, 2
          %s481 = scalar_lea.vmem %s3, %s480
        $region32: #{artspeech_forward.5} parent=27 // pred_fallthru
          _
        // Predicated region
        $region33: #{artspeech_forward.5} parent=27 // pred_check
          %p482 = pneg %p147
        $region34: #{artspeech_forward.5} parent=27 // pred_check_branch
          %484 = sbr.rel (%p482) target = $region36
        $region35: #{artspeech_forward.5} parent=27 // pred_region
          %p485 = scmp.lt.s32.totalorder %s28, 2
          %s486 = scalar_select %p485, %s28, 2
          %s487 = scalar_lea.vmem %s4, %s486
        $region36: #{artspeech_forward.5} parent=27 // pred_fallthru
          _
        // Predicated region
        $region37: #{artspeech_forward.5} parent=27 // pred_check
          %p488 = pneg %p173
        $region38: #{artspeech_forward.5} parent=27 // pred_check_branch
          %490 = sbr.rel (%p488) target = $region40
        $region39: #{artspeech_forward.5} parent=27 // pred_region
          %p491 = scmp.lt.s32.totalorder %s28, 2
          %s492 = scalar_select %p491, %s28, 2
          %s493 = smul.addr %s492, 32
          %s494 = smul.addr %s493, 4
          %s495 = scalar_lea.vmem %s5, %s494
        $region40: #{artspeech_forward.5} parent=27 // pred_fallthru
          _
        // Predicated region
        $region41: #{artspeech_forward.5} parent=27 // pred_check
          %p496 = pneg %p199
        $region42: #{artspeech_forward.5} parent=27 // pred_check_branch
          %498 = sbr.rel (%p496) target = $region44
        $region43: #{artspeech_forward.5} parent=27 // pred_region
          %p499 = scmp.lt.s32.totalorder %s28, 2
          %s500 = scalar_select %p499, %s28, 2
          %s501 = smul.addr %s500, 2
          %s502 = scalar_lea.vmem %s6, %s501
        $region44: #{artspeech_forward.5} parent=27 // pred_fallthru
          _
        // Predicated region
        $region45: #{artspeech_forward.5} parent=27 // pred_check
          %p503 = pneg %p225
        $region46: #{artspeech_forward.5} parent=27 // pred_check_branch
          %505 = sbr.rel (%p503) target = $region48
        $region47: #{artspeech_forward.5} parent=27 // pred_region
          %p506 = scmp.lt.s32.totalorder %s28, 2
          %s507 = scalar_select %p506, %s28, 2
          %s508 = smul.addr %s507, 2
          %s509 = scalar_lea.vmem %s7, %s508
        $region48: #{artspeech_forward.5} parent=27 // pred_fallthru
          _
        // Predicated region
        $region49: #{artspeech_forward.5} parent=27 // pred_check
          %p510 = pneg %p251
        $region50: #{artspeech_forward.5} parent=27 // pred_check_branch
          %512 = sbr.rel (%p510) target = $region52
        $region51: #{artspeech_forward.5} parent=27 // pred_region
          %p513 = scmp.lt.s32.totalorder %s28, 2
          %s514 = scalar_select %p513, %s28, 2
          %s515 = smul.addr %s514, 2
          %s516 = scalar_lea.vmem %s8, %s515
        $region52: #{artspeech_forward.5} parent=27 // pred_fallthru
          _
        // Predicated region
        $region53: #{artspeech_forward.5} parent=27 // pred_check
          %p517 = pneg %p277
        $region54: #{artspeech_forward.5} parent=27 // pred_check_branch
          %519 = sbr.rel (%p517) target = $region56
        $region55: #{artspeech_forward.5} parent=27 // pred_region
          %p520 = scmp.lt.s32.totalorder %s28, 2
          %s521 = scalar_select %p520, %s28, 2
          %s522 = smul.addr %s521, 64
          %s523 = smul.addr %s522, 4
          %s524 = scalar_lea.vmem %s9, %s523
        $region56: #{artspeech_forward.5} parent=27 // pred_fallthru
          _
        // Predicated region
        $region57: #{artspeech_forward.5} parent=27 // pred_check
          %p525 = pneg %p303
        $region58: #{artspeech_forward.5} parent=27 // pred_check_branch
          %527 = sbr.rel (%p525) target = $region60
        $region59: #{artspeech_forward.5} parent=27 // pred_region
          %p528 = scmp.lt.s32.totalorder %s28, 2
          %s529 = scalar_select %p528, %s28, 2
          %s530 = smul.addr %s529, 2
          %s531 = scalar_lea.vmem %s10, %s530
        $region60: #{artspeech_forward.5} parent=27 // pred_fallthru
          _
        // Predicated region
        $region61: #{artspeech_forward.5} parent=27 // pred_check
          %p532 = pneg %p329
        $region62: #{artspeech_forward.5} parent=27 // pred_check_branch
          %534 = sbr.rel (%p532) target = $region64
        $region63: #{artspeech_forward.5} parent=27 // pred_region
          %p535 = scmp.lt.s32.totalorder %s28, 2
          %s536 = scalar_select %p535, %s28, 2
          %s537 = smul.addr %s536, 2
          %s538 = scalar_lea.vmem %s11, %s537
        $region64: #{artspeech_forward.5} parent=27 // pred_fallthru
          _
        // Predicated region
        $region65: #{artspeech_forward.5} parent=27 // pred_check
          %p539 = pneg %p355
        $region66: #{artspeech_forward.5} parent=27 // pred_check_branch
          %541 = sbr.rel (%p539) target = $region68
        $region67: #{artspeech_forward.5} parent=27 // pred_region
          %p542 = scmp.lt.s32.totalorder %s28, 2
          %s543 = scalar_select %p542, %s28, 2
          %s544 = smul.addr %s543, 2
          %s545 = scalar_lea.vmem %s12, %s544
        $region68: #{artspeech_forward.5} parent=27 // pred_fallthru
          _
        // Predicated region
        $region69: #{artspeech_forward.5} parent=27 // pred_check
          %p546 = pneg %p381
        $region70: #{artspeech_forward.5} parent=27 // pred_check_branch
          %548 = sbr.rel (%p546) target = $region72
        $region71: #{artspeech_forward.5} parent=27 // pred_region
          %p549 = scmp.lt.s32.totalorder %s28, 2
          %s550 = scalar_select %p549, %s28, 2
          %s551 = smul.addr %s550, 32
          %s552 = smul.addr %s551, 4
          %s553 = scalar_lea.vmem %s13, %s552
        $region72: #{artspeech_forward.5} parent=27 // pred_fallthru
          _
        // Predicated region
        $region73: #{artspeech_forward.5} parent=27 // pred_check
          %p554 = pneg %p407
        $region74: #{artspeech_forward.5} parent=27 // pred_check_branch
          %556 = sbr.rel (%p554) target = $region76
        $region75: #{artspeech_forward.5} parent=27 // pred_region
          %p557 = scmp.lt.s32.totalorder %s28, 2
          %s558 = scalar_select %p557, %s28, 2
          %s559 = scalar_lea.vmem %s14, %s558
        $region76: #{artspeech_forward.5} parent=27 // pred_fallthru
          _
      $region28: #{artspeech_forward.5} parent=5 // pred_fallthru
        _
      %p560 = scmp.le.s32.totalorder 1, %s21
      %p561 = scmp.lt.s32.totalorder %s21, 4
      %p562 = pnand %p560, %p561
      %p563 = pneg %p562
      // Predicated region
      $region77: #{artspeech_forward.5} parent=5 // pred_check
        _
      $region78: #{artspeech_forward.5} parent=5 // pred_check_branch
        %565 = sbr.rel (%p562) target = $region80
      $region79: #{artspeech_forward.5} parent=5 // pred_region
        %s566 = ssub.s32 %s21, 1
        %s567 = smul.u32 2, %s31
        %p568 = scmp.lt.s32.totalorder %s567, 1
        %s569 = scalar_select %p568, %s567, 1
        %s570 = smul.addr %s569, 2
        %s571 = smul.addr %s570, 4
        %s572 = scalar_lea.vmem %s0, %s571
        %p573 = pneg %p59
        %p574 = pneg %p56
        %p575 = pneg %p80
        %p576 = pneg %p77
        %p577 = pneg %p101
        %p578 = pneg %p98
        %p579 = scmp.lt.s32.totalorder %s30, 2
        %s580 = scalar_select %p579, %s30, 2
        %s581 = scalar_lea.vmem %s3, %s580
        %p582 = pneg %p127
        %p583 = pneg %p124
        %p584 = scmp.lt.s32.totalorder %s30, 2
        %s585 = scalar_select %p584, %s30, 2
        %s586 = scalar_lea.vmem %s4, %s585
        %p587 = pneg %p153
        %p588 = pneg %p150
        %p589 = scmp.lt.s32.totalorder %s30, 2
        %s590 = scalar_select %p589, %s30, 2
        %s591 = smul.addr %s590, 32
        %s592 = smul.addr %s591, 4
        %s593 = scalar_lea.vmem %s5, %s592
        %p594 = pneg %p179
        %p595 = pneg %p176
        %p596 = scmp.lt.s32.totalorder %s30, 2
        %s597 = scalar_select %p596, %s30, 2
        %s598 = smul.addr %s597, 2
        %s599 = scalar_lea.vmem %s6, %s598
        %p600 = pneg %p205
        %p601 = pneg %p202
        %p602 = scmp.lt.s32.totalorder %s30, 2
        %s603 = scalar_select %p602, %s30, 2
        %s604 = smul.addr %s603, 2
        %s605 = scalar_lea.vmem %s7, %s604
        %p606 = pneg %p231
        %p607 = pneg %p228
        %p608 = scmp.lt.s32.totalorder %s30, 2
        %s609 = scalar_select %p608, %s30, 2
        %s610 = smul.addr %s609, 2
        %s611 = scalar_lea.vmem %s8, %s610
        %p612 = pneg %p257
        %p613 = pneg %p254
        %p614 = scmp.lt.s32.totalorder %s30, 2
        %s615 = scalar_select %p614, %s30, 2
        %s616 = smul.addr %s615, 64
        %s617 = smul.addr %s616, 4
        %s618 = scalar_lea.vmem %s9, %s617
        %p619 = pneg %p283
        %p620 = pneg %p280
        %p621 = scmp.lt.s32.totalorder %s30, 2
        %s622 = scalar_select %p621, %s30, 2
        %s623 = smul.addr %s622, 2
        %s624 = scalar_lea.vmem %s10, %s623
        %p625 = pneg %p309
        %p626 = pneg %p306
        %p627 = scmp.lt.s32.totalorder %s30, 2
        %s628 = scalar_select %p627, %s30, 2
        %s629 = smul.addr %s628, 2
        %s630 = scalar_lea.vmem %s11, %s629
        %p631 = pneg %p335
        %p632 = pneg %p332
        %p633 = scmp.lt.s32.totalorder %s30, 2
        %s634 = scalar_select %p633, %s30, 2
        %s635 = smul.addr %s634, 2
        %s636 = scalar_lea.vmem %s12, %s635
        %p637 = pneg %p361
        %p638 = pneg %p358
        %p639 = scmp.lt.s32.totalorder %s30, 2
        %s640 = scalar_select %p639, %s30, 2
        %s641 = smul.addr %s640, 32
        %s642 = smul.addr %s641, 4
        %s643 = scalar_lea.vmem %s13, %s642
        %p644 = pneg %p387
        %p645 = pneg %p384
        %p646 = scmp.lt.s32.totalorder %s30, 2
        %s647 = scalar_select %p646, %s30, 2
        %s648 = scalar_lea.vmem %s14, %s647
        %p649 = pneg %p413
        %p650 = pneg %p410
        %p651 = pneg %p441
        %p652 = pneg %p438
        %s653 = sand.u32 %s428, 1
        %s654 = sand.u32 %s428, 1
        %s655 = smul.addr %s654, 16
        %s656 = scalar_lea.vmem [#allocation2], %s655
        %s657 = smul.u32 2, %s31
        %p658 = scmp.lt.s32.totalorder %s657, 1
        %s659 = scalar_select %p658, %s657, 1
        %s660 = smul.addr %s659, 2
        %s661 = smul.addr %s660, 4
        %s662 = scalar_lea.vmem %s0, %s661
        %s663 = smul.u32 2, %s31
        %p664 = scmp.lt.s32.totalorder %s30, 2
        %s665 = scalar_select %p664, %s30, 2
        %s666 = scalar_lea.vmem %s3, %s665
        %p667 = scmp.lt.s32.totalorder %s30, 2
        %s668 = scalar_select %p667, %s30, 2
        %s669 = scalar_lea.vmem %s4, %s668
        %p670 = scmp.lt.s32.totalorder %s30, 2
        %s671 = scalar_select %p670, %s30, 2
        %s672 = smul.addr %s671, 32
        %s673 = smul.addr %s672, 4
        %s674 = scalar_lea.vmem %s5, %s673
        %p675 = scmp.lt.s32.totalorder %s30, 2
        %s676 = scalar_select %p675, %s30, 2
        %s677 = smul.addr %s676, 2
        %s678 = scalar_lea.vmem %s6, %s677
        %p679 = scmp.lt.s32.totalorder %s30, 2
        %s680 = scalar_select %p679, %s30, 2
        %s681 = smul.addr %s680, 2
        %s682 = scalar_lea.vmem %s7, %s681
        %p683 = scmp.lt.s32.totalorder %s30, 2
        %s684 = scalar_select %p683, %s30, 2
        %s685 = smul.addr %s684, 2
        %s686 = scalar_lea.vmem %s8, %s685
        %p687 = scmp.lt.s32.totalorder %s30, 2
        %s688 = scalar_select %p687, %s30, 2
        %s689 = smul.addr %s688, 64
        %s690 = smul.addr %s689, 4
        %s691 = scalar_lea.vmem %s9, %s690
        %p692 = scmp.lt.s32.totalorder %s30, 2
        %s693 = scalar_select %p692, %s30, 2
        %s694 = smul.addr %s693, 2
        %s695 = scalar_lea.vmem %s10, %s694
        %p696 = scmp.lt.s32.totalorder %s30, 2
        %s697 = scalar_select %p696, %s30, 2
        %s698 = smul.addr %s697, 2
        %s699 = scalar_lea.vmem %s11, %s698
        %p700 = scmp.lt.s32.totalorder %s30, 2
        %s701 = scalar_select %p700, %s30, 2
        %s702 = smul.addr %s701, 2
        %s703 = scalar_lea.vmem %s12, %s702
        %p704 = scmp.lt.s32.totalorder %s30, 2
        %s705 = scalar_select %p704, %s30, 2
        %s706 = smul.addr %s705, 32
        %s707 = smul.addr %s706, 4
        %s708 = scalar_lea.vmem %s13, %s707
        %p709 = scmp.lt.s32.totalorder %s30, 2
        %s710 = scalar_select %p709, %s30, 2
        %s711 = scalar_lea.vmem %s14, %s710
        %s712 = smul.u32 2, %s31
        %v714 = vld [vmem:[%s662] sm:$0xff]
        %v715 = vld [vmem:[%s662 + $0x8] sm:$0xff]
        %v716 = vld [vmem:[%s1] sm:$0xf]
        %v717 = vld [vmem:[%s1 + $0x4] sm:$0xf]
        %v718 = vld [vmem:[%s1 + $0x8] sm:$0xf]
        %v719 = vld [vmem:[%s1 + $0xc] sm:$0xf]
        %v720 = vld [vmem:[%s1 + $0x10] sm:$0xf]
        %v721 = vld [vmem:[%s1 + $0x14] sm:$0xf]
        %v722 = vld [vmem:[%s1 + $0x18] sm:$0xf]
        %v723 = vld [vmem:[%s1 + $0x1c] sm:$0xf]
        %v724 = vld [vmem:[%s1 + $0x20] sm:$0xf]
        %v725 = vld [vmem:[%s1 + $0x24] sm:$0xf]
        %v726 = vld [vmem:[%s1 + $0x28] sm:$0xf]
        %v727 = vld [vmem:[%s1 + $0x2c] sm:$0xf]
        %v728 = vld [vmem:[%s1 + $0x30] sm:$0xf]
        %v729 = vld [vmem:[%s1 + $0x34] sm:$0xf]
        %v730 = vld [vmem:[%s1 + $0x38] sm:$0xf]
        %v731 = vld [vmem:[%s1 + $0x3c] sm:$0xf]
        %v732 = vld [vmem:[%s1 + $0x40] sm:$0xf]
        %v733 = vld [vmem:[%s1 + $0x44] sm:$0xf]
        %v734 = vld [vmem:[%s1 + $0x48] sm:$0xf]
        %v735 = vld [vmem:[%s1 + $0x4c] sm:$0xf]
        %v736 = vld [vmem:[%s1 + $0x50] sm:$0xf]
        %v737 = vld [vmem:[%s1 + $0x54] sm:$0xf]
        %v738 = vld [vmem:[%s1 + $0x58] sm:$0xf]
        %v739 = vld [vmem:[%s1 + $0x5c] sm:$0xf]
        %v740 = vld [vmem:[%s1 + $0x60] sm:$0xf]
        %v741 = vld [vmem:[%s1 + $0x64] sm:$0xf]
        %v742 = vld [vmem:[%s1 + $0x68] sm:$0xf]
        %v743 = vld [vmem:[%s1 + $0x6c] sm:$0xf]
        %v744 = vld [vmem:[%s1 + $0x70] sm:$0xf]
        %v745 = vld [vmem:[%s1 + $0x74] sm:$0xf]
        %v746 = vld [vmem:[%s1 + $0x78] sm:$0xf]
        %v747 = vld [vmem:[%s1 + $0x7c] sm:$0xf]
        %v748 = vld [vmem:[%s2] sm:$0x1]
        %v750 = vlaneseq
        %v751 = vshrl.u32 %v750, 7
        %v752 = vsub.s32 0, %v751
        %v753 = vrot.slane %v748, %v752
        %v757 = vunpack.c.l.b16 %v714
        %v758 = vunpack.c.h.b16 %v714
        %v759 = vunpack.c.l.b16 %v715
        %v760 = vunpack.c.h.b16 %v715
        %v761 = vpack.c.b16 %v759, %v757
        %v762 = vpack.c.b16 %v760, %v758
        %v797 = vunpack.c.l.b16 %v716
        %v798 = vunpack.c.l.b16 %v717
        %v799 = vunpack.c.l.b16 %v718
        %v800 = vunpack.c.l.b16 %v719
        %v801 = vunpack.c.l.b16 %v720
        %v802 = vunpack.c.l.b16 %v721
        %v803 = vunpack.c.l.b16 %v722
        %v804 = vunpack.c.l.b16 %v723
        %v805 = vunpack.c.l.b16 %v724
        %v806 = vunpack.c.l.b16 %v725
        %v807 = vunpack.c.l.b16 %v726
        %v808 = vunpack.c.l.b16 %v727
        %v809 = vunpack.c.l.b16 %v728
        %v810 = vunpack.c.l.b16 %v729
        %v811 = vunpack.c.l.b16 %v730
        %v812 = vunpack.c.l.b16 %v731
        %v813 = vunpack.c.l.b16 %v732
        %v814 = vunpack.c.l.b16 %v733
        %v815 = vunpack.c.l.b16 %v734
        %v816 = vunpack.c.l.b16 %v735
        %v817 = vunpack.c.l.b16 %v736
        %v818 = vunpack.c.l.b16 %v737
        %v819 = vunpack.c.l.b16 %v738
        %v820 = vunpack.c.l.b16 %v739
        %v821 = vunpack.c.l.b16 %v740
        %v822 = vunpack.c.l.b16 %v741
        %v823 = vunpack.c.l.b16 %v742
        %v824 = vunpack.c.l.b16 %v743
        %v825 = vunpack.c.l.b16 %v744
        %v826 = vunpack.c.l.b16 %v745
        %v827 = vunpack.c.l.b16 %v746
        %v828 = vunpack.c.l.b16 %v747
        %v829 = vpack.c.b16 %v798, %v797
        %v830 = vpack.c.b16 %v800, %v799
        %v831 = vpack.c.b16 %v802, %v801
        %v832 = vpack.c.b16 %v804, %v803
        %v833 = vpack.c.b16 %v806, %v805
        %v834 = vpack.c.b16 %v808, %v807
        %v835 = vpack.c.b16 %v810, %v809
        %v836 = vpack.c.b16 %v812, %v811
        %v837 = vpack.c.b16 %v814, %v813
        %v838 = vpack.c.b16 %v816, %v815
        %v839 = vpack.c.b16 %v818, %v817
        %v840 = vpack.c.b16 %v820, %v819
        %v841 = vpack.c.b16 %v822, %v821
        %v842 = vpack.c.b16 %v824, %v823
        %v843 = vpack.c.b16 %v826, %v825
        %v844 = vpack.c.b16 %v828, %v827
        %861 = vmatprep.subr.bf16.mxu0 0
        %862 = vmatpush1.bf16.msra.mxu0 %v829
        %863 = vmatprep.subr.bf16.mxu0 0
        %864 = vmatpush1.bf16.msra.mxu0 %v830
        %865 = vmatprep.subr.bf16.mxu0 0
        %866 = vmatpush1.bf16.msra.mxu0 %v831
        %867 = vmatprep.subr.bf16.mxu0 0
        %868 = vmatpush1.bf16.msra.mxu0 %v832
        %869 = vmatprep.subr.bf16.mxu0 0
        %870 = vmatpush1.bf16.msra.mxu0 %v833
        %871 = vmatprep.subr.bf16.mxu0 0
        %872 = vmatpush1.bf16.msra.mxu0 %v834
        %873 = vmatprep.subr.bf16.mxu0 0
        %874 = vmatpush1.bf16.msra.mxu0 %v835
        %875 = vmatprep.subr.bf16.mxu0 0
        %876 = vmatpush1.bf16.msra.mxu0 %v836
        %877 = vmatprep.subr.bf16.mxu0 0
        %878 = vmatpush1.bf16.msra.mxu0 %v837
        %879 = vmatprep.subr.bf16.mxu0 0
        %880 = vmatpush1.bf16.msra.mxu0 %v838
        %881 = vmatprep.subr.bf16.mxu0 0
        %882 = vmatpush1.bf16.msra.mxu0 %v839
        %883 = vmatprep.subr.bf16.mxu0 0
        %884 = vmatpush1.bf16.msra.mxu0 %v840
        %885 = vmatprep.subr.bf16.mxu0 0
        %886 = vmatpush1.bf16.msra.mxu0 %v841
        %887 = vmatprep.subr.bf16.mxu0 0
        %888 = vmatpush1.bf16.msra.mxu0 %v842
        %889 = vmatprep.subr.bf16.mxu0 0
        %890 = vmatpush1.bf16.msra.mxu0 %v843
        %891 = vmatprep.subr.bf16.mxu0 0
        %892 = vmatpush1.bf16.msra.mxu0 %v844
        %893 = vmatprep.mubr.bf16.mxu0 %v762
        %894 = vmatmul.mubr.bf16.gmra.mrb[0].mxu0 %v761
        %v895 = vpop.f32.mrb[0].mxu0
        %v896 = vadd.f32 %v753, %v895
        %v897 = vpop.f32.mrb[0].mxu0
        %v898 = vpop.f32.mrb[0].mxu0
        %v899 = vadd.f32 %v753, %v898
        %v900 = vpop.f32.mrb[0].mxu0
        %901 = vdwg.mxu0
        %v902 = vmax.f32 %v896, 0.0
        %v903 = vmax.f32 %v899, 0.0
        %v904 = vld [vmem:[%s666] sm:$0x1]
        %v905 = vld [vmem:[%s669] sm:$0x1]
        %906 = vadd.xlane.f32.xlu0 %v902
        %v907 = vpop.xlane.xlu0 %906
        %908 = vadd.xlane.f32.xlu0 %v903
        %v909 = vpop.xlane.xlu0 %908
        %v910 = vrcp.pop 128.0
        %v911 = vmul.f32 %v907, %v910
        %v912 = vmul.f32 %v909, %v910
        %v913 = vsub.f32 %v902, %v911
        %v914 = vsub.f32 %v903, %v912
        %v915 = vmul.f32 %v913, %v913
        %v916 = vmul.f32 %v914, %v914
        %917 = vadd.xlane.f32.xlu0 %v915
        %v918 = vpop.xlane.xlu0 %917
        %919 = vadd.xlane.f32.xlu0 %v916
        %v920 = vpop.xlane.xlu0 %919
        %v921 = vmul.f32 %v918, %v910
        %v922 = vmul.f32 %v920, %v910
        %v923 = vadd.f32 %v921, 1e-05
        %v924 = vadd.f32 %v922, 1e-05
        %v925 = vrsqrt.pop %v923
        %v926 = vrsqrt.pop %v924
        %v927 = vmul.f32 %v913, %v925
        %v928 = vmul.f32 %v914, %v926
        %v930 = vlaneseq
        %v931 = vshrl.u32 %v930, 7
        %v932 = vsub.s32 0, %v931
        %v933 = vrot.slane %v904, %v932
        %v935 = vmul.f32 %v927, %v933
        %v936 = vmul.f32 %v928, %v933
        %v938 = vlaneseq
        %v939 = vshrl.u32 %v938, 7
        %v940 = vsub.s32 0, %v939
        %v941 = vrot.slane %v905, %v940
        %v943 = vadd.f32 %v935, %v941
        %v944 = vadd.f32 %v936, %v941
        %v945 = vpack.c.bf16 %v944, %v943
        %v946 = vld [vmem:[%s674] sm:$0xff]
        %v947 = vld [vmem:[%s674 + $0x8] sm:$0xff]
        %v948 = vld [vmem:[%s674 + $0x10] sm:$0xff]
        %v949 = vld [vmem:[%s674 + $0x18] sm:$0xff]
        %v950 = vld [vmem:[%s674 + $0x20] sm:$0xff]
        %v951 = vld [vmem:[%s674 + $0x28] sm:$0xff]
        %v952 = vld [vmem:[%s674 + $0x30] sm:$0xff]
        %v953 = vld [vmem:[%s674 + $0x38] sm:$0xff]
        %v954 = vld [vmem:[%s674 + $0x40] sm:$0xff]
        %v955 = vld [vmem:[%s674 + $0x48] sm:$0xff]
        %v956 = vld [vmem:[%s674 + $0x50] sm:$0xff]
        %v957 = vld [vmem:[%s674 + $0x58] sm:$0xff]
        %v958 = vld [vmem:[%s674 + $0x60] sm:$0xff]
        %v959 = vld [vmem:[%s674 + $0x68] sm:$0xff]
        %v960 = vld [vmem:[%s674 + $0x70] sm:$0xff]
        %v961 = vld [vmem:[%s674 + $0x78] sm:$0xff]
        %v962 = vld [vmem:[%s678] sm:$0x3]
        %v964 = vlaneseq
        %v965 = vshrl.u32 %v964, 7
        %v966 = vsub.s32 0, %v965
        %v967 = vrot.slane %v962, %v966
        %v968 = vlaneseq
        %v969 = vshrl.u32 %v968, 7
        %v970 = vsub.s32 1, %v969
        %v971 = vrot.slane %v962, %v970
        %v990 = vunpack.c.l.b16 %v946
        %v991 = vunpack.c.h.b16 %v946
        %v992 = vunpack.c.l.b16 %v947
        %v993 = vunpack.c.h.b16 %v947
        %v994 = vunpack.c.l.b16 %v948
        %v995 = vunpack.c.h.b16 %v948
        %v996 = vunpack.c.l.b16 %v949
        %v997 = vunpack.c.h.b16 %v949
        %v998 = vunpack.c.l.b16 %v950
        %v999 = vunpack.c.h.b16 %v950
        %v1000 = vunpack.c.l.b16 %v951
        %v1001 = vunpack.c.h.b16 %v951
        %v1002 = vunpack.c.l.b16 %v952
        %v1003 = vunpack.c.h.b16 %v952
        %v1004 = vunpack.c.l.b16 %v953
        %v1005 = vunpack.c.h.b16 %v953
        %v1006 = vunpack.c.l.b16 %v954
        %v1007 = vunpack.c.h.b16 %v954
        %v1008 = vunpack.c.l.b16 %v955
        %v1009 = vunpack.c.h.b16 %v955
        %v1010 = vunpack.c.l.b16 %v956
        %v1011 = vunpack.c.h.b16 %v956
        %v1012 = vunpack.c.l.b16 %v957
        %v1013 = vunpack.c.h.b16 %v957
        %v1014 = vunpack.c.l.b16 %v958
        %v1015 = vunpack.c.h.b16 %v958
        %v1016 = vunpack.c.l.b16 %v959
        %v1017 = vunpack.c.h.b16 %v959
        %v1018 = vunpack.c.l.b16 %v960
        %v1019 = vunpack.c.h.b16 %v960
        %v1020 = vunpack.c.l.b16 %v961
        %v1021 = vunpack.c.h.b16 %v961
        %v1022 = vpack.c.b16 %v992, %v990
        %v1023 = vpack.c.b16 %v993, %v991
        %v1024 = vpack.c.b16 %v996, %v994
        %v1025 = vpack.c.b16 %v997, %v995
        %v1026 = vpack.c.b16 %v1000, %v998
        %v1027 = vpack.c.b16 %v1001, %v999
        %v1028 = vpack.c.b16 %v1004, %v1002
        %v1029 = vpack.c.b16 %v1005, %v1003
        %v1030 = vpack.c.b16 %v1008, %v1006
        %v1031 = vpack.c.b16 %v1009, %v1007
        %v1032 = vpack.c.b16 %v1012, %v1010
        %v1033 = vpack.c.b16 %v1013, %v1011
        %v1034 = vpack.c.b16 %v1016, %v1014
        %v1035 = vpack.c.b16 %v1017, %v1015
        %v1036 = vpack.c.b16 %v1020, %v1018
        %v1037 = vpack.c.b16 %v1021, %v1019
        %1054 = vmatprep.subr.bf16.mxu0 %v1023
        %1055 = vmatpush1.bf16.msra.mxu0 %v1022
        %1056 = vmatprep.subr.bf16.mxu0 %v1025
        %1057 = vmatpush1.bf16.msra.mxu0 %v1024
        %1058 = vmatprep.subr.bf16.mxu0 %v1027
        %1059 = vmatpush1.bf16.msra.mxu0 %v1026
        %1060 = vmatprep.subr.bf16.mxu0 %v1029
        %1061 = vmatpush1.bf16.msra.mxu0 %v1028
        %1062 = vmatprep.subr.bf16.mxu0 %v1031
        %1063 = vmatpush1.bf16.msra.mxu0 %v1030
        %1064 = vmatprep.subr.bf16.mxu0 %v1033
        %1065 = vmatpush1.bf16.msra.mxu0 %v1032
        %1066 = vmatprep.subr.bf16.mxu0 %v1035
        %1067 = vmatpush1.bf16.msra.mxu0 %v1034
        %1068 = vmatprep.subr.bf16.mxu0 %v1037
        %1069 = vmatpush1.bf16.msra.mxu0 %v1036
        %1070 = vmatprep.subr.bf16.mxu0 0
        %1071 = vmatpush1.bf16.msra.mxu0 0
        %1072 = vmatprep.subr.bf16.mxu0 0
        %1073 = vmatpush1.bf16.msra.mxu0 0
        %1074 = vmatprep.subr.bf16.mxu0 0
        %1075 = vmatpush1.bf16.msra.mxu0 0
        %1076 = vmatprep.subr.bf16.mxu0 0
        %1077 = vmatpush1.bf16.msra.mxu0 0
        %1078 = vmatprep.subr.bf16.mxu0 0
        %1079 = vmatpush1.bf16.msra.mxu0 0
        %1080 = vmatprep.subr.bf16.mxu0 0
        %1081 = vmatpush1.bf16.msra.mxu0 0
        %1082 = vmatprep.subr.bf16.mxu0 0
        %1083 = vmatpush1.bf16.msra.mxu0 0
        %1084 = vmatprep.subr.bf16.mxu0 0
        %1085 = vmatpush1.bf16.msra.mxu0 0
        %1086 = vmatprep.mubr.bf16.mxu0 0
        %1087 = vmatmul.mubr.bf16.gmra.mrb[0].mxu0 %v945
        %v1088 = vpop.f32.mrb[0].mxu0
        %v1089 = vadd.f32 %v967, %v1088
        %v1090 = vpop.f32.mrb[0].mxu0
        %v1091 = vadd.f32 %v971, %v1090
        %v1092 = vpop.f32.mrb[0].mxu0
        %v1093 = vadd.f32 %v967, %v1092
        %v1094 = vpop.f32.mrb[0].mxu0
        %v1095 = vadd.f32 %v971, %v1094
        %1096 = vdwg.mxu0
        %v1097 = vmax.f32 %v1089, 0.0
        %v1098 = vmax.f32 %v1091, 0.0
        %v1099 = vmax.f32 %v1093, 0.0
        %v1100 = vmax.f32 %v1095, 0.0
        %v1101 = vld [vmem:[%s682] sm:$0x3]
        %v1102 = vld [vmem:[%s686] sm:$0x3]
        %v1103 = vadd.f32 %v1097, %v1098
        %1104 = vadd.xlane.f32.xlu0 %v1103
        %v1105 = vpop.xlane.xlu0 %1104
        %v1106 = vadd.f32 %v1099, %v1100
        %1107 = vadd.xlane.f32.xlu0 %v1106
        %v1108 = vpop.xlane.xlu0 %1107
        %v1109 = vrcp.pop 256.0
        %v1110 = vmul.f32 %v1105, %v1109
        %v1111 = vmul.f32 %v1108, %v1109
        %v1112 = vsub.f32 %v1097, %v1110
        %v1113 = vsub.f32 %v1098, %v1110
        %v1114 = vsub.f32 %v1099, %v1111
        %v1115 = vsub.f32 %v1100, %v1111
        %v1116 = vmul.f32 %v1112, %v1112
        %v1117 = vmul.f32 %v1113, %v1113
        %v1118 = vmul.f32 %v1114, %v1114
        %v1119 = vmul.f32 %v1115, %v1115
        %v1120 = vadd.f32 %v1116, %v1117
        %1121 = vadd.xlane.f32.xlu0 %v1120
        %v1122 = vpop.xlane.xlu0 %1121
        %v1123 = vadd.f32 %v1118, %v1119
        %1124 = vadd.xlane.f32.xlu0 %v1123
        %v1125 = vpop.xlane.xlu0 %1124
        %v1126 = vmul.f32 %v1122, %v1109
        %v1127 = vmul.f32 %v1125, %v1109
        %v1128 = vadd.f32 %v1126, 1e-05
        %v1129 = vadd.f32 %v1127, 1e-05
        %v1130 = vrsqrt.pop %v1128
        %v1131 = vrsqrt.pop %v1129
        %v1132 = vmul.f32 %v1112, %v1130
        %v1133 = vmul.f32 %v1113, %v1130
        %v1134 = vmul.f32 %v1114, %v1131
        %v1135 = vmul.f32 %v1115, %v1131
        %v1137 = vlaneseq
        %v1138 = vshrl.u32 %v1137, 7
        %v1139 = vsub.s32 0, %v1138
        %v1140 = vrot.slane %v1101, %v1139
        %v1141 = vlaneseq
        %v1142 = vshrl.u32 %v1141, 7
        %v1143 = vsub.s32 1, %v1142
        %v1144 = vrot.slane %v1101, %v1143
        %v1147 = vmul.f32 %v1132, %v1140
        %v1148 = vmul.f32 %v1133, %v1144
        %v1149 = vmul.f32 %v1134, %v1140
        %v1150 = vmul.f32 %v1135, %v1144
        %v1152 = vlaneseq
        %v1153 = vshrl.u32 %v1152, 7
        %v1154 = vsub.s32 0, %v1153
        %v1155 = vrot.slane %v1102, %v1154
        %v1156 = vlaneseq
        %v1157 = vshrl.u32 %v1156, 7
        %v1158 = vsub.s32 1, %v1157
        %v1159 = vrot.slane %v1102, %v1158
        %v1162 = vadd.f32 %v1147, %v1155
        %v1163 = vadd.f32 %v1148, %v1159
        %v1164 = vadd.f32 %v1149, %v1155
        %v1165 = vadd.f32 %v1150, %v1159
        %v1166 = vpack.c.bf16 %v1164, %v1162
        %v1167 = vpack.c.bf16 %v1165, %v1163
        %v1168 = vld [vmem:[%s691] sm:$0xff]
        %v1169 = vld [vmem:[%s691 + $0x8] sm:$0xff]
        %v1170 = vld [vmem:[%s691 + $0x10] sm:$0xff]
        %v1171 = vld [vmem:[%s691 + $0x18] sm:$0xff]
        %v1172 = vld [vmem:[%s691 + $0x20] sm:$0xff]
        %v1173 = vld [vmem:[%s691 + $0x28] sm:$0xff]
        %v1174 = vld [vmem:[%s691 + $0x30] sm:$0xff]
        %v1175 = vld [vmem:[%s691 + $0x38] sm:$0xff]
        %v1176 = vld [vmem:[%s691 + $0x40] sm:$0xff]
        %v1177 = vld [vmem:[%s691 + $0x48] sm:$0xff]
        %v1178 = vld [vmem:[%s691 + $0x50] sm:$0xff]
        %v1179 = vld [vmem:[%s691 + $0x58] sm:$0xff]
        %v1180 = vld [vmem:[%s691 + $0x60] sm:$0xff]
        %v1181 = vld [vmem:[%s691 + $0x68] sm:$0xff]
        %v1182 = vld [vmem:[%s691 + $0x70] sm:$0xff]
        %v1183 = vld [vmem:[%s691 + $0x78] sm:$0xff]
        %v1184 = vld [vmem:[%s691 + $0x80] sm:$0xff]
        %v1185 = vld [vmem:[%s691 + $0x88] sm:$0xff]
        %v1186 = vld [vmem:[%s691 + $0x90] sm:$0xff]
        %v1187 = vld [vmem:[%s691 + $0x98] sm:$0xff]
        %v1188 = vld [vmem:[%s691 + $0xa0] sm:$0xff]
        %v1189 = vld [vmem:[%s691 + $0xa8] sm:$0xff]
        %v1190 = vld [vmem:[%s691 + $0xb0] sm:$0xff]
        %v1191 = vld [vmem:[%s691 + $0xb8] sm:$0xff]
        %v1192 = vld [vmem:[%s691 + $0xc0] sm:$0xff]
        %v1193 = vld [vmem:[%s691 + $0xc8] sm:$0xff]
        %v1194 = vld [vmem:[%s691 + $0xd0] sm:$0xff]
        %v1195 = vld [vmem:[%s691 + $0xd8] sm:$0xff]
        %v1196 = vld [vmem:[%s691 + $0xe0] sm:$0xff]
        %v1197 = vld [vmem:[%s691 + $0xe8] sm:$0xff]
        %v1198 = vld [vmem:[%s691 + $0xf0] sm:$0xff]
        %v1199 = vld [vmem:[%s691 + $0xf8] sm:$0xff]
        %v1200 = vld [vmem:[%s695] sm:$0x3]
        %v1202 = vlaneseq
        %v1203 = vshrl.u32 %v1202, 7
        %v1204 = vsub.s32 0, %v1203
        %v1205 = vrot.slane %v1200, %v1204
        %v1206 = vlaneseq
        %v1207 = vshrl.u32 %v1206, 7
        %v1208 = vsub.s32 1, %v1207
        %v1209 = vrot.slane %v1200, %v1208
        %v1244 = vunpack.c.l.b16 %v1168
        %v1245 = vunpack.c.h.b16 %v1168
        %v1246 = vunpack.c.l.b16 %v1169
        %v1247 = vunpack.c.h.b16 %v1169
        %v1248 = vunpack.c.l.b16 %v1170
        %v1249 = vunpack.c.h.b16 %v1170
        %v1250 = vunpack.c.l.b16 %v1171
        %v1251 = vunpack.c.h.b16 %v1171
        %v1252 = vunpack.c.l.b16 %v1172
        %v1253 = vunpack.c.h.b16 %v1172
        %v1254 = vunpack.c.l.b16 %v1173
        %v1255 = vunpack.c.h.b16 %v1173
        %v1256 = vunpack.c.l.b16 %v1174
        %v1257 = vunpack.c.h.b16 %v1174
        %v1258 = vunpack.c.l.b16 %v1175
        %v1259 = vunpack.c.h.b16 %v1175
        %v1260 = vunpack.c.l.b16 %v1176
        %v1261 = vunpack.c.h.b16 %v1176
        %v1262 = vunpack.c.l.b16 %v1177
        %v1263 = vunpack.c.h.b16 %v1177
        %v1264 = vunpack.c.l.b16 %v1178
        %v1265 = vunpack.c.h.b16 %v1178
        %v1266 = vunpack.c.l.b16 %v1179
        %v1267 = vunpack.c.h.b16 %v1179
        %v1268 = vunpack.c.l.b16 %v1180
        %v1269 = vunpack.c.h.b16 %v1180
        %v1270 = vunpack.c.l.b16 %v1181
        %v1271 = vunpack.c.h.b16 %v1181
        %v1272 = vunpack.c.l.b16 %v1182
        %v1273 = vunpack.c.h.b16 %v1182
        %v1274 = vunpack.c.l.b16 %v1183
        %v1275 = vunpack.c.h.b16 %v1183
        %v1276 = vunpack.c.l.b16 %v1184
        %v1277 = vunpack.c.h.b16 %v1184
        %v1278 = vunpack.c.l.b16 %v1185
        %v1279 = vunpack.c.h.b16 %v1185
        %v1280 = vunpack.c.l.b16 %v1186
        %v1281 = vunpack.c.h.b16 %v1186
        %v1282 = vunpack.c.l.b16 %v1187
        %v1283 = vunpack.c.h.b16 %v1187
        %v1284 = vunpack.c.l.b16 %v1188
        %v1285 = vunpack.c.h.b16 %v1188
        %v1286 = vunpack.c.l.b16 %v1189
        %v1287 = vunpack.c.h.b16 %v1189
        %v1288 = vunpack.c.l.b16 %v1190
        %v1289 = vunpack.c.h.b16 %v1190
        %v1290 = vunpack.c.l.b16 %v1191
        %v1291 = vunpack.c.h.b16 %v1191
        %v1292 = vunpack.c.l.b16 %v1192
        %v1293 = vunpack.c.h.b16 %v1192
        %v1294 = vunpack.c.l.b16 %v1193
        %v1295 = vunpack.c.h.b16 %v1193
        %v1296 = vunpack.c.l.b16 %v1194
        %v1297 = vunpack.c.h.b16 %v1194
        %v1298 = vunpack.c.l.b16 %v1195
        %v1299 = vunpack.c.h.b16 %v1195
        %v1300 = vunpack.c.l.b16 %v1196
        %v1301 = vunpack.c.h.b16 %v1196
        %v1302 = vunpack.c.l.b16 %v1197
        %v1303 = vunpack.c.h.b16 %v1197
        %v1304 = vunpack.c.l.b16 %v1198
        %v1305 = vunpack.c.h.b16 %v1198
        %v1306 = vunpack.c.l.b16 %v1199
        %v1307 = vunpack.c.h.b16 %v1199
        %v1308 = vpack.c.b16 %v1246, %v1244
        %v1309 = vpack.c.b16 %v1247, %v1245
        %v1310 = vpack.c.b16 %v1250, %v1248
        %v1311 = vpack.c.b16 %v1251, %v1249
        %v1312 = vpack.c.b16 %v1254, %v1252
        %v1313 = vpack.c.b16 %v1255, %v1253
        %v1314 = vpack.c.b16 %v1258, %v1256
        %v1315 = vpack.c.b16 %v1259, %v1257
        %v1316 = vpack.c.b16 %v1262, %v1260
        %v1317 = vpack.c.b16 %v1263, %v1261
        %v1318 = vpack.c.b16 %v1266, %v1264
        %v1319 = vpack.c.b16 %v1267, %v1265
        %v1320 = vpack.c.b16 %v1270, %v1268
        %v1321 = vpack.c.b16 %v1271, %v1269
        %v1322 = vpack.c.b16 %v1274, %v1272
        %v1323 = vpack.c.b16 %v1275, %v1273
        %v1324 = vpack.c.b16 %v1278, %v1276
        %v1325 = vpack.c.b16 %v1279, %v1277
        %v1326 = vpack.c.b16 %v1282, %v1280
        %v1327 = vpack.c.b16 %v1283, %v1281
        %v1328 = vpack.c.b16 %v1286, %v1284
        %v1329 = vpack.c.b16 %v1287, %v1285
        %v1330 = vpack.c.b16 %v1290, %v1288
        %v1331 = vpack.c.b16 %v1291, %v1289
        %v1332 = vpack.c.b16 %v1294, %v1292
        %v1333 = vpack.c.b16 %v1295, %v1293
        %v1334 = vpack.c.b16 %v1298, %v1296
        %v1335 = vpack.c.b16 %v1299, %v1297
        %v1336 = vpack.c.b16 %v1302, %v1300
        %v1337 = vpack.c.b16 %v1303, %v1301
        %v1338 = vpack.c.b16 %v1306, %v1304
        %v1339 = vpack.c.b16 %v1307, %v1305
        %1372 = vmatprep.subr.bf16.mxu0 %v1309
        %1373 = vmatpush1.bf16.msra.mxu0 %v1308
        %1374 = vmatprep.subr.bf16.mxu0 %v1311
        %1375 = vmatpush1.bf16.msra.mxu0 %v1310
        %1376 = vmatprep.subr.bf16.mxu0 %v1313
        %1377 = vmatpush1.bf16.msra.mxu0 %v1312
        %1378 = vmatprep.subr.bf16.mxu0 %v1315
        %1379 = vmatpush1.bf16.msra.mxu0 %v1314
        %1380 = vmatprep.subr.bf16.mxu0 %v1317
        %1381 = vmatpush1.bf16.msra.mxu0 %v1316
        %1382 = vmatprep.subr.bf16.mxu0 %v1319
        %1383 = vmatpush1.bf16.msra.mxu0 %v1318
        %1384 = vmatprep.subr.bf16.mxu0 %v1321
        %1385 = vmatpush1.bf16.msra.mxu0 %v1320
        %1386 = vmatprep.subr.bf16.mxu0 %v1323
        %1387 = vmatpush1.bf16.msra.mxu0 %v1322
        %1388 = vmatprep.subr.bf16.mxu0 %v1325
        %1389 = vmatpush1.bf16.msra.mxu0 %v1324
        %1390 = vmatprep.subr.bf16.mxu0 %v1327
        %1391 = vmatpush1.bf16.msra.mxu0 %v1326
        %1392 = vmatprep.subr.bf16.mxu0 %v1329
        %1393 = vmatpush1.bf16.msra.mxu0 %v1328
        %1394 = vmatprep.subr.bf16.mxu0 %v1331
        %1395 = vmatpush1.bf16.msra.mxu0 %v1330
        %1396 = vmatprep.subr.bf16.mxu0 %v1333
        %1397 = vmatpush1.bf16.msra.mxu0 %v1332
        %1398 = vmatprep.subr.bf16.mxu0 %v1335
        %1399 = vmatpush1.bf16.msra.mxu0 %v1334
        %1400 = vmatprep.subr.bf16.mxu0 %v1337
        %1401 = vmatpush1.bf16.msra.mxu0 %v1336
        %1402 = vmatprep.subr.bf16.mxu0 %v1339
        %1403 = vmatpush1.bf16.msra.mxu0 %v1338
        %1404 = vmatprep.mubr.bf16.mxu0 %v1167
        %1405 = vmatmul.mubr.bf16.gmra.mrb[0].mxu0 %v1166
        %v1406 = vpop.f32.mrb[0].mxu0
        %v1407 = vadd.f32 %v1205, %v1406
        %v1408 = vpop.f32.mrb[0].mxu0
        %v1409 = vadd.f32 %v1209, %v1408
        %v1410 = vpop.f32.mrb[0].mxu0
        %v1411 = vadd.f32 %v1205, %v1410
        %v1412 = vpop.f32.mrb[0].mxu0
        %v1413 = vadd.f32 %v1209, %v1412
        %1414 = vdwg.mxu0
        %v1415 = vmax.f32 %v1407, 0.0
        %v1416 = vmax.f32 %v1409, 0.0
        %v1417 = vmax.f32 %v1411, 0.0
        %v1418 = vmax.f32 %v1413, 0.0
        %v1419 = vld [vmem:[%s699] sm:$0x3]
        %v1420 = vld [vmem:[%s703] sm:$0x3]
        %v1421 = vadd.f32 %v1415, %v1416
        %1422 = vadd.xlane.f32.xlu0 %v1421
        %v1423 = vpop.xlane.xlu0 %1422
        %v1424 = vadd.f32 %v1417, %v1418
        %1425 = vadd.xlane.f32.xlu0 %v1424
        %v1426 = vpop.xlane.xlu0 %1425
        %v1427 = vmul.f32 %v1423, %v1109
        %v1428 = vmul.f32 %v1426, %v1109
        %v1429 = vsub.f32 %v1415, %v1427
        %v1430 = vsub.f32 %v1416, %v1427
        %v1431 = vsub.f32 %v1417, %v1428
        %v1432 = vsub.f32 %v1418, %v1428
        %v1433 = vmul.f32 %v1429, %v1429
        %v1434 = vmul.f32 %v1430, %v1430
        %v1435 = vmul.f32 %v1431, %v1431
        %v1436 = vmul.f32 %v1432, %v1432
        %v1437 = vadd.f32 %v1433, %v1434
        %1438 = vadd.xlane.f32.xlu0 %v1437
        %v1439 = vpop.xlane.xlu0 %1438
        %v1440 = vadd.f32 %v1435, %v1436
        %1441 = vadd.xlane.f32.xlu0 %v1440
        %v1442 = vpop.xlane.xlu0 %1441
        %v1443 = vmul.f32 %v1439, %v1109
        %v1444 = vmul.f32 %v1442, %v1109
        %v1445 = vadd.f32 %v1443, 1e-05
        %v1446 = vadd.f32 %v1444, 1e-05
        %v1447 = vrsqrt.pop %v1445
        %v1448 = vrsqrt.pop %v1446
        %v1449 = vmul.f32 %v1429, %v1447
        %v1450 = vmul.f32 %v1430, %v1447
        %v1451 = vmul.f32 %v1431, %v1448
        %v1452 = vmul.f32 %v1432, %v1448
        %v1454 = vlaneseq
        %v1455 = vshrl.u32 %v1454, 7
        %v1456 = vsub.s32 0, %v1455
        %v1457 = vrot.slane %v1419, %v1456
        %v1458 = vlaneseq
        %v1459 = vshrl.u32 %v1458, 7
        %v1460 = vsub.s32 1, %v1459
        %v1461 = vrot.slane %v1419, %v1460
        %v1464 = vmul.f32 %v1449, %v1457
        %v1465 = vmul.f32 %v1450, %v1461
        %v1466 = vmul.f32 %v1451, %v1457
        %v1467 = vmul.f32 %v1452, %v1461
        %v1469 = vlaneseq
        %v1470 = vshrl.u32 %v1469, 7
        %v1471 = vsub.s32 0, %v1470
        %v1472 = vrot.slane %v1420, %v1471
        %v1473 = vlaneseq
        %v1474 = vshrl.u32 %v1473, 7
        %v1475 = vsub.s32 1, %v1474
        %v1476 = vrot.slane %v1420, %v1475
        %v1479 = vadd.f32 %v1464, %v1472
        %v1480 = vadd.f32 %v1465, %v1476
        %v1481 = vadd.f32 %v1466, %v1472
        %v1482 = vadd.f32 %v1467, %v1476
        %v1483 = vpack.c.bf16 %v1481, %v1479
        %v1484 = vpack.c.bf16 %v1482, %v1480
        %v1485 = vld [vmem:[%s708] sm:$0xf]
        %v1486 = vld [vmem:[%s708 + $0x4] sm:$0xf]
        %v1487 = vld [vmem:[%s708 + $0x8] sm:$0xf]
        %v1488 = vld [vmem:[%s708 + $0xc] sm:$0xf]
        %v1489 = vld [vmem:[%s708 + $0x10] sm:$0xf]
        %v1490 = vld [vmem:[%s708 + $0x14] sm:$0xf]
        %v1491 = vld [vmem:[%s708 + $0x18] sm:$0xf]
        %v1492 = vld [vmem:[%s708 + $0x1c] sm:$0xf]
        %v1493 = vld [vmem:[%s708 + $0x20] sm:$0xf]
        %v1494 = vld [vmem:[%s708 + $0x24] sm:$0xf]
        %v1495 = vld [vmem:[%s708 + $0x28] sm:$0xf]
        %v1496 = vld [vmem:[%s708 + $0x2c] sm:$0xf]
        %v1497 = vld [vmem:[%s708 + $0x30] sm:$0xf]
        %v1498 = vld [vmem:[%s708 + $0x34] sm:$0xf]
        %v1499 = vld [vmem:[%s708 + $0x38] sm:$0xf]
        %v1500 = vld [vmem:[%s708 + $0x3c] sm:$0xf]
        %v1501 = vld [vmem:[%s708 + $0x40] sm:$0xf]
        %v1502 = vld [vmem:[%s708 + $0x44] sm:$0xf]
        %v1503 = vld [vmem:[%s708 + $0x48] sm:$0xf]
        %v1504 = vld [vmem:[%s708 + $0x4c] sm:$0xf]
        %v1505 = vld [vmem:[%s708 + $0x50] sm:$0xf]
        %v1506 = vld [vmem:[%s708 + $0x54] sm:$0xf]
        %v1507 = vld [vmem:[%s708 + $0x58] sm:$0xf]
        %v1508 = vld [vmem:[%s708 + $0x5c] sm:$0xf]
        %v1509 = vld [vmem:[%s708 + $0x60] sm:$0xf]
        %v1510 = vld [vmem:[%s708 + $0x64] sm:$0xf]
        %v1511 = vld [vmem:[%s708 + $0x68] sm:$0xf]
        %v1512 = vld [vmem:[%s708 + $0x6c] sm:$0xf]
        %v1513 = vld [vmem:[%s708 + $0x70] sm:$0xf]
        %v1514 = vld [vmem:[%s708 + $0x74] sm:$0xf]
        %v1515 = vld [vmem:[%s708 + $0x78] sm:$0xf]
        %v1516 = vld [vmem:[%s708 + $0x7c] sm:$0xf]
        %v1517 = vld [vmem:[%s711] sm:$0x1]
        %v1519 = vlaneseq
        %v1520 = vshrl.u32 %v1519, 7
        %v1521 = vsub.s32 0, %v1520
        %v1522 = vrot.slane %v1517, %v1521
        %v1556 = vunpack.c.l.b16 %v1485
        %v1557 = vunpack.c.l.b16 %v1486
        %v1558 = vunpack.c.l.b16 %v1487
        %v1559 = vunpack.c.l.b16 %v1488
        %v1560 = vunpack.c.l.b16 %v1489
        %v1561 = vunpack.c.l.b16 %v1490
        %v1562 = vunpack.c.l.b16 %v1491
        %v1563 = vunpack.c.l.b16 %v1492
        %v1564 = vunpack.c.l.b16 %v1493
        %v1565 = vunpack.c.l.b16 %v1494
        %v1566 = vunpack.c.l.b16 %v1495
        %v1567 = vunpack.c.l.b16 %v1496
        %v1568 = vunpack.c.l.b16 %v1497
        %v1569 = vunpack.c.l.b16 %v1498
        %v1570 = vunpack.c.l.b16 %v1499
        %v1571 = vunpack.c.l.b16 %v1500
        %v1572 = vunpack.c.l.b16 %v1501
        %v1573 = vunpack.c.l.b16 %v1502
        %v1574 = vunpack.c.l.b16 %v1503
        %v1575 = vunpack.c.l.b16 %v1504
        %v1576 = vunpack.c.l.b16 %v1505
        %v1577 = vunpack.c.l.b16 %v1506
        %v1578 = vunpack.c.l.b16 %v1507
        %v1579 = vunpack.c.l.b16 %v1508
        %v1580 = vunpack.c.l.b16 %v1509
        %v1581 = vunpack.c.l.b16 %v1510
        %v1582 = vunpack.c.l.b16 %v1511
        %v1583 = vunpack.c.l.b16 %v1512
        %v1584 = vunpack.c.l.b16 %v1513
        %v1585 = vunpack.c.l.b16 %v1514
        %v1586 = vunpack.c.l.b16 %v1515
        %v1587 = vunpack.c.l.b16 %v1516
        %v1588 = vpack.c.b16 %v1557, %v1556
        %v1589 = vpack.c.b16 %v1559, %v1558
        %v1590 = vpack.c.b16 %v1561, %v1560
        %v1591 = vpack.c.b16 %v1563, %v1562
        %v1592 = vpack.c.b16 %v1565, %v1564
        %v1593 = vpack.c.b16 %v1567, %v1566
        %v1594 = vpack.c.b16 %v1569, %v1568
        %v1595 = vpack.c.b16 %v1571, %v1570
        %v1596 = vpack.c.b16 %v1573, %v1572
        %v1597 = vpack.c.b16 %v1575, %v1574
        %v1598 = vpack.c.b16 %v1577, %v1576
        %v1599 = vpack.c.b16 %v1579, %v1578
        %v1600 = vpack.c.b16 %v1581, %v1580
        %v1601 = vpack.c.b16 %v1583, %v1582
        %v1602 = vpack.c.b16 %v1585, %v1584
        %v1603 = vpack.c.b16 %v1587, %v1586
        %1620 = vmatprep.subr.bf16.mxu0 0
        %1621 = vmatpush1.bf16.msra.mxu0 %v1588
        %1622 = vmatprep.subr.bf16.mxu0 0
        %1623 = vmatpush1.bf16.msra.mxu0 %v1589
        %1624 = vmatprep.subr.bf16.mxu0 0
        %1625 = vmatpush1.bf16.msra.mxu0 %v1590
        %1626 = vmatprep.subr.bf16.mxu0 0
        %1627 = vmatpush1.bf16.msra.mxu0 %v1591
        %1628 = vmatprep.subr.bf16.mxu0 0
        %1629 = vmatpush1.bf16.msra.mxu0 %v1592
        %1630 = vmatprep.subr.bf16.mxu0 0
        %1631 = vmatpush1.bf16.msra.mxu0 %v1593
        %1632 = vmatprep.subr.bf16.mxu0 0
        %1633 = vmatpush1.bf16.msra.mxu0 %v1594
        %1634 = vmatprep.subr.bf16.mxu0 0
        %1635 = vmatpush1.bf16.msra.mxu0 %v1595
        %1636 = vmatprep.subr.bf16.mxu0 0
        %1637 = vmatpush1.bf16.msra.mxu0 %v1596
        %1638 = vmatprep.subr.bf16.mxu0 0
        %1639 = vmatpush1.bf16.msra.mxu0 %v1597
        %1640 = vmatprep.subr.bf16.mxu0 0
        %1641 = vmatpush1.bf16.msra.mxu0 %v1598
        %1642 = vmatprep.subr.bf16.mxu0 0
        %1643 = vmatpush1.bf16.msra.mxu0 %v1599
        %1644 = vmatprep.subr.bf16.mxu0 0
        %1645 = vmatpush1.bf16.msra.mxu0 %v1600
        %1646 = vmatprep.subr.bf16.mxu0 0
        %1647 = vmatpush1.bf16.msra.mxu0 %v1601
        %1648 = vmatprep.subr.bf16.mxu0 0
        %1649 = vmatpush1.bf16.msra.mxu0 %v1602
        %1650 = vmatprep.subr.bf16.mxu0 0
        %1651 = vmatpush1.bf16.msra.mxu0 %v1603
        %1652 = vmatprep.mubr.bf16.mxu0 %v1484
        %1653 = vmatmul.mubr.bf16.gmra.mrb[0].mxu0 %v1483
        %v1654 = vpop.f32.mrb[0].mxu0
        %v1655 = vadd.f32 %v1522, %v1654
        %v1656 = vpop.f32.mrb[0].mxu0
        %v1657 = vpop.f32.mrb[0].mxu0
        %v1658 = vadd.f32 %v1522, %v1657
        %v1659 = vpop.f32.mrb[0].mxu0
        %1660 = vdwg.mxu0
        %v1661 = vxor.u32 %v1655, 2147483648
        %v1662 = vxor.u32 %v1658, 2147483648
        %v1663 = vmul.f32 %v1661, 1.442695
        %v1664 = vpow.pop %v1663
        %v1665 = vmul.f32 %v1662, 1.442695
        %v1666 = vpow.pop %v1665
        %v1667 = vadd.f32 %v1664, 1.0
        %v1668 = vadd.f32 %v1666, 1.0
        %v1669 = vrcp.pop %v1667
        %v1670 = vmul.f32 1.0, %v1669
        %v1671 = vrcp.pop %v1668
        %v1672 = vmul.f32 1.0, %v1671
        %1673 = vst [vmem:[%s656] sm:$0xff] %v1670
        %1674 = vst [vmem:[%s656 + $0x8] sm:$0xff] %v1672
        %s1675 = sand.u32 %s428, 1
        %s1676 = sand.u32 %s428, 1
        %s1677 = smul.addr %s1676, 16
        %s1678 = scalar_lea.vmem [#allocation2], %s1677
        // Predicated region
        $region81: #{artspeech_forward.5} parent=79 // pred_check
          %p1679 = pneg %p438
        $region82: #{artspeech_forward.5} parent=79 // pred_check_branch
          %1681 = sbr.rel (%p1679) target = $region84
        $region83: #{artspeech_forward.5} parent=79 // pred_region
          %s1682 = smul.u32 2, %s31
          %s1683 = smul.addr %s1682, 3
          %s1684 = sadd.s32 %s30, %s1683
          %s1685 = smul.addr %s1684, 8
          %s1686 = scalar_lea.vmem %s15, %s1685
          // Predicated region
          $region85: #{artspeech_forward.5} parent=83 // pred_check
            _
          $region86: #{artspeech_forward.5} parent=83 // pred_check_branch
            %1688 = sbr.rel (0) target = $region88
          $region87: #{artspeech_forward.5} parent=83 // pred_region
            // Predicated region
            $region89: #{artspeech_forward.5} parent=87 // pred_check
              _
            $region90: #{artspeech_forward.5} parent=87 // pred_check_branch
              %1690 = sbr.rel (0) target = $region92
            $region91: #{artspeech_forward.5} parent=87 // pred_region
              // Predicated region
              $region104: #{artspeech_forward.5} parent=91 // pred_check
                _
              $region105: #{artspeech_forward.5} parent=91 // pred_check_branch
                %1707 = sbr.rel (0) target = $region107
              $region106: #{artspeech_forward.5} parent=91 // pred_region
                loop: start=0, step=1, limit=1
                $region108: #{artspeech_forward.5} parent=106 // loop_pre_header
                  _
                $region109: #{artspeech_forward.5} parent=106 // loop_header
                  %s1709 = sphi 0, %s1713
                  %p1710 = scmp.ge.s32.totalorder %s1709, 1
                  %s1714 = sphi %s1678, %s1678
                  %s1715 = sphi %s1686, %s1686
                $region110: #{artspeech_forward.5} parent=106 // loop_header_branch
                  %1712 = sbr.rel (%p1710) target = $region114
                $region111: #{artspeech_forward.5} parent=106 // loop_body
                  %v1716 = vld [vmem:[%s1714] sm:$0xff]
                  %1717 = vst [vmem:[%s1715] sm:$0xff] %v1716
                  %v1718 = vld [vmem:[%s1714 + $0x8] sm:$0xff]
                  %1719 = vst [vmem:[%s1715 + $0x18] sm:$0xff] %v1718
                $region112: #{artspeech_forward.5} parent=106 // loop_footer
                  %s1713 = sadd.s32 1, %s1709
                $region113: #{artspeech_forward.5} parent=106 // loop_footer_branch
                  %1708 = sbr.rel target = $region109
                $region114: #{artspeech_forward.5} parent=106 // loop_exit
                  _
              $region107: #{artspeech_forward.5} parent=91 // pred_fallthru
                _
              // Predicated region
              $region115: #{artspeech_forward.5} parent=91 // pred_check
                _
              $region116: #{artspeech_forward.5} parent=91 // pred_check_branch
                %1721 = sbr.rel target = $region118
              $region117: #{artspeech_forward.5} parent=91 // pred_region
                _
              $region118: #{artspeech_forward.5} parent=91 // pred_fallthru
                _
            $region92: #{artspeech_forward.5} parent=87 // pred_fallthru
              _
            // Predicated region
            $region93: #{artspeech_forward.5} parent=87 // pred_check
              _
            $region94: #{artspeech_forward.5} parent=87 // pred_check_branch
              %1692 = sbr.rel target = $region96
            $region95: #{artspeech_forward.5} parent=87 // pred_region
              loop: start=0, step=1, limit=1
              $region97: #{artspeech_forward.5} parent=95 // loop_pre_header
                _
              $region98: #{artspeech_forward.5} parent=95 // loop_header
                %s1695 = sphi 0, %s1699
                %p1696 = scmp.ge.s32.totalorder %s1695, 1
                %s1700 = sphi %s1678, %s1678
                %s1701 = sphi %s1686, %s1686
              $region99: #{artspeech_forward.5} parent=95 // loop_header_branch
                %1698 = sbr.rel (%p1696) target = $region103
              $region100: #{artspeech_forward.5} parent=95 // loop_body
                %v1702 = vld [vmem:[%s1700] sm:$0xff]
                %1703 = vst [vmem:[%s1701] sm:$0xff] %v1702
                %v1704 = vld [vmem:[%s1700 + $0x8] sm:$0xff]
                %1705 = vst [vmem:[%s1701 + $0x18] sm:$0xff] %v1704
              $region101: #{artspeech_forward.5} parent=95 // loop_footer
                %s1699 = sadd.s32 1, %s1695
              $region102: #{artspeech_forward.5} parent=95 // loop_footer_branch
                %1694 = sbr.rel target = $region98
              $region103: #{artspeech_forward.5} parent=95 // loop_exit
                _
            $region96: #{artspeech_forward.5} parent=87 // pred_fallthru
              _
          $region88: #{artspeech_forward.5} parent=83 // pred_fallthru
            _
          %1722 = vnop
        $region84: #{artspeech_forward.5} parent=79 // pred_fallthru
          _
      $region80: #{artspeech_forward.5} parent=5 // pred_fallthru
        _
      %p1723 = scmp.le.s32.totalorder 2, %s21
      // Predicated region
      $region119: #{artspeech_forward.5} parent=5 // pred_check
        %p1724 = pneg %p1723
      $region120: #{artspeech_forward.5} parent=5 // pred_check_branch
        %1726 = sbr.rel (%p1724) target = $region122
      $region121: #{artspeech_forward.5} parent=5 // pred_region
        %s1727 = ssub.s32 %s21, 2
        // Predicated region
        $region123: #{artspeech_forward.5} parent=121 // pred_check
          %p1728 = pneg %p444
        $region124: #{artspeech_forward.5} parent=121 // pred_check_branch
          %1730 = sbr.rel (%p1728) target = $region126
        $region125: #{artspeech_forward.5} parent=121 // pred_region
          %s1731 = sand.u32 %s429, 1
          %s1732 = sand.u32 %s429, 1
          %s1733 = smul.addr %s1732, 16
          %s1734 = scalar_lea.vmem [#allocation2], %s1733
        $region126: #{artspeech_forward.5} parent=121 // pred_fallthru
          _
      $region122: #{artspeech_forward.5} parent=5 // pred_fallthru
        _
    $region6: #{artspeech_forward.5} parent=1 // loop_footer
      %s25 = sadd.s32 1, %s21
    $region7: #{artspeech_forward.5} parent=1 // loop_footer_branch
      %20 = sbr.rel target = $region3
    $region8: #{artspeech_forward.5} parent=1 // loop_exit
      _

// kernel: artspeech_forward.3
$region0: #{artspeech_forward.3}
  #allocation0 [shape = 'u32[]', space=smem, size = 0x4, offset = 0x4, fixed_abs, tag = 'smem constant byte address 0x4 - core index']
  #allocation1 [shape = 'u32[144,128]{1,0:T(1,128)}', space=vmem, size = 0x12000, scoped, tag = 'internal scratch']
  #allocation2 [shape = 'f32[2,2,128]{2,1,0:T(2,128)}', space=vmem, size = 0x800, scoped, tag = 'scratch operand']
  #allocation3 [shape = 'f32[8,2,128]{2,1,0:T(2,128)}', space=vmem, size = 0x2000, scoped, tag = 'scratch operand']
  %s0 = inlined_call_operand.vmem [shape: f32[2,8,2,384], index: 0, kind: input, shape index: {}]
  %s1 = inlined_call_operand.vmem [shape: f32[8,2,1], index: 1, kind: input, shape index: {}]
  %s2 = inlined_call_operand.vmem [shape: bf16[2,128,384], index: 2, kind: input, shape index: {}]
  %s3 = inlined_call_operand.vmem [shape: f32[2,1,384], index: 3, kind: input, shape index: {}]
  %s4 = inlined_call_operand.vmem [shape: bf16[8,2,256], index: 4, kind: output, shape index: {}]
  %s5 = sld [smem:[#allocation0]]
  $region90: #{artspeech_forward.3} parent=0
    _
  %s7 = ssub.s32 1, %s5
  %s8 = scalar_select 0, %s7, %s5
  $region1: #{artspeech_forward.3} parent=0
    #allocation4 [shape = 'u8[8192]{0}', space=vmem, size = 0x2000, scoped, tag = 'output window, operand 0']
    loop: start=0, step=1, limit=4
    $region2: #{artspeech_forward.3} parent=1 // loop_pre_header
      _
    $region3: #{artspeech_forward.3} parent=1 // loop_header
      %s10 = sphi 0, %s14
      %p11 = scmp.ge.s32.totalorder %s10, 4
      %s17 = sphi 0, %s29
      %s18 = sphi 0, %s25
      %s19 = sphi 0, %s17
      %s20 = sphi 0, %s18
      %s21 = sphi 0, %s19
      %s22 = sphi 0, %s20
      %s42 = sphi 0, %s44
      %s45 = sphi 0, %s42
      %s46 = sphi 0, %s45
      %s62 = sphi 0, %s46
      %s76 = sphi 0, %s78
      %s79 = sphi 0, %s76
      %s80 = sphi 0, %s79
      %s96 = sphi 0, %s80
      %s102 = sphi 0, %s104
      %s105 = sphi 0, %s102
      %s106 = sphi 0, %s105
      %s122 = sphi 0, %s106
      %s128 = sphi 0, %s130
      %s131 = sphi 0, %s128
      %s132 = sphi 0, %s131
      %s148 = sphi 0, %s132
      %s164 = sphi 0, %s166
      %s167 = sphi 0, %s164
      %s168 = sphi 0, %s167
      %s184 = sphi 0, %s168
    $region4: #{artspeech_forward.3} parent=1 // loop_header_branch
      %13 = sbr.rel (%p11) target = $region8
    $region5: #{artspeech_forward.3} parent=1 // loop_body
      %s15 = ssub.s32 %s10, 1
      %s16 = ssub.s32 %s10, 2
      %s23 = sadd.s32 1, %s18
      %p24 = scmp.ge.s32.totalorder %s23, 1
      %s25 = scalar_select %p24, 0, %s23
      %s26 = sadd.s32 1, %s17
      %s27 = scalar_select %p24, %s26, %s17
      %p28 = scmp.ge.s32.totalorder %s27, 2
      %s29 = scalar_select %p28, 0, %s27
      %s30 = smul.u32 %s18, 2
      %s31 = ssub.s32 0, %s30
      %s32 = smul.u32 %s17, %s31
      %s33 = sadd.s32 %s18, %s32
      %s34 = smul.u32 %s25, 2
      %s35 = ssub.s32 0, %s34
      %s36 = smul.u32 %s29, %s35
      %s37 = sadd.s32 %s25, %s36
      %s38 = ssub.s32 %s17, %s29
      %s39 = ssub.s32 %s33, %s37
      %s40 = sor.u32 %s38, %s39
      %p41 = scmp.eq.s32.totalorder %s40, 0
      %s43 = sadd.s32 %s42, 1
      %s44 = scalar_select %p41, %s42, %s43
      %p47 = pneg %p41
      %p48 = scmp.eq.s32.totalorder %s10, 1
      %p49 = por %p47, %p48
      %p50 = scmp.ne.s32.totalorder %s42, %s45
      %p51 = scmp.eq.s32.totalorder %s10, 0
      %p52 = por %p50, %p51
      %p53 = scmp.ne.s32.totalorder %s42, %s45
      %p54 = scmp.eq.s32.totalorder %s15, 1
      %p55 = por %p53, %p54
      %p56 = scmp.ne.s32.totalorder %s45, %s46
      %p57 = scmp.eq.s32.totalorder %s15, 0
      %p58 = por %p56, %p57
      %p59 = scmp.ne.s32.totalorder %s45, %s46
      %p60 = scmp.eq.s32.totalorder %s16, 1
      %p61 = por %p59, %p60
      %p63 = scmp.ne.s32.totalorder %s46, %s62
      %p64 = scmp.eq.s32.totalorder %s16, 0
      %p65 = por %p63, %p64
      %s66 = smul.u32 %s18, 2
      %s67 = ssub.s32 0, %s66
      %s68 = smul.u32 %s17, %s67
      %s69 = sadd.s32 %s18, %s68
      %s70 = smul.u32 %s25, 2
      %s71 = ssub.s32 0, %s70
      %s72 = smul.u32 %s29, %s71
      %s73 = sadd.s32 %s25, %s72
      %s74 = ssub.s32 %s69, %s73
      %p75 = scmp.eq.s32.totalorder %s74, 0
      %s77 = sadd.s32 %s76, 1
      %s78 = scalar_select %p75, %s76, %s77
      %p81 = pneg %p75
      %p82 = scmp.eq.s32.totalorder %s10, 1
      %p83 = por %p81, %p82
      %p84 = scmp.ne.s32.totalorder %s76, %s79
      %p85 = scmp.eq.s32.totalorder %s10, 0
      %p86 = por %p84, %p85
      %p87 = scmp.ne.s32.totalorder %s76, %s79
      %p88 = scmp.eq.s32.totalorder %s15, 1
      %p89 = por %p87, %p88
      %p90 = scmp.ne.s32.totalorder %s79, %s80
      %p91 = scmp.eq.s32.totalorder %s15, 0
      %p92 = por %p90, %p91
      %p93 = scmp.ne.s32.totalorder %s79, %s80
      %p94 = scmp.eq.s32.totalorder %s16, 1
      %p95 = por %p93, %p94
      %p97 = scmp.ne.s32.totalorder %s80, %s96
      %p98 = scmp.eq.s32.totalorder %s16, 0
      %p99 = por %p97, %p98
      %s100 = ssub.s32 %s17, %s29
      %p101 = scmp.eq.s32.totalorder %s100, 0
      %s103 = sadd.s32 %s102, 1
      %s104 = scalar_select %p101, %s102, %s103
      %p107 = pneg %p101
      %p108 = scmp.eq.s32.totalorder %s10, 1
      %p109 = por %p107, %p108
      %p110 = scmp.ne.s32.totalorder %s102, %s105
      %p111 = scmp.eq.s32.totalorder %s10, 0
      %p112 = por %p110, %p111
      %p113 = scmp.ne.s32.totalorder %s102, %s105
      %p114 = scmp.eq.s32.totalorder %s15, 1
      %p115 = por %p113, %p114
      %p116 = scmp.ne.s32.totalorder %s105, %s106
      %p117 = scmp.eq.s32.totalorder %s15, 0
      %p118 = por %p116, %p117
      %p119 = scmp.ne.s32.totalorder %s105, %s106
      %p120 = scmp.eq.s32.totalorder %s16, 1
      %p121 = por %p119, %p120
      %p123 = scmp.ne.s32.totalorder %s106, %s122
      %p124 = scmp.eq.s32.totalorder %s16, 0
      %p125 = por %p123, %p124
      %s126 = ssub.s32 %s17, %s29
      %p127 = scmp.eq.s32.totalorder %s126, 0
      %s129 = sadd.s32 %s128, 1
      %s130 = scalar_select %p127, %s128, %s129
      %p133 = pneg %p127
      %p134 = scmp.eq.s32.totalorder %s10, 1
      %p135 = por %p133, %p134
      %p136 = scmp.ne.s32.totalorder %s128, %s131
      %p137 = scmp.eq.s32.totalorder %s10, 0
      %p138 = por %p136, %p137
      %p139 = scmp.ne.s32.totalorder %s128, %s131
      %p140 = scmp.eq.s32.totalorder %s15, 1
      %p141 = por %p139, %p140
      %p142 = scmp.ne.s32.totalorder %s131, %s132
      %p143 = scmp.eq.s32.totalorder %s15, 0
      %p144 = por %p142, %p143
      %p145 = scmp.ne.s32.totalorder %s131, %s132
      %p146 = scmp.eq.s32.totalorder %s16, 1
      %p147 = por %p145, %p146
      %p149 = scmp.ne.s32.totalorder %s132, %s148
      %p150 = scmp.eq.s32.totalorder %s16, 0
      %p151 = por %p149, %p150
      %s152 = smul.u32 %s18, 2
      %s153 = ssub.s32 0, %s152
      %s154 = smul.u32 %s17, %s153
      %s155 = sadd.s32 %s18, %s154
      %s156 = smul.u32 %s25, 2
      %s157 = ssub.s32 0, %s156
      %s158 = smul.u32 %s29, %s157
      %s159 = sadd.s32 %s25, %s158
      %s160 = ssub.s32 %s155, %s159
      %s161 = ssub.s32 %s17, %s29
      %s162 = sor.u32 %s160, %s161
      %p163 = scmp.eq.s32.totalorder %s162, 0
      %s165 = sadd.s32 %s164, 1
      %s166 = scalar_select %p163, %s164, %s165
      %p169 = pneg %p163
      %p170 = scmp.eq.s32.totalorder %s10, 1
      %p171 = por %p169, %p170
      %p172 = scmp.ne.s32.totalorder %s164, %s167
      %p173 = scmp.eq.s32.totalorder %s10, 0
      %p174 = por %p172, %p173
      %p175 = scmp.ne.s32.totalorder %s164, %s167
      %p176 = scmp.eq.s32.totalorder %s15, 1
      %p177 = por %p175, %p176
      %p178 = scmp.ne.s32.totalorder %s167, %s168
      %p179 = scmp.eq.s32.totalorder %s15, 0
      %p180 = por %p178, %p179
      %p181 = scmp.ne.s32.totalorder %s167, %s168
      %p182 = scmp.eq.s32.totalorder %s16, 1
      %p183 = por %p181, %p182
      %p185 = scmp.ne.s32.totalorder %s168, %s184
      %p186 = scmp.eq.s32.totalorder %s16, 0
      %p187 = por %p185, %p186
      %p188 = scmp.le.s32.totalorder 1, %s10
      %p189 = scmp.lt.s32.totalorder %s10, 3
      %p190 = pnand %p188, %p189
      %p191 = pneg %p190
      // Predicated region
      $region9: #{artspeech_forward.3} parent=5 // pred_check
        _
      $region10: #{artspeech_forward.3} parent=5 // pred_check_branch
        %193 = sbr.rel (%p190) target = $region12
      $region11: #{artspeech_forward.3} parent=5 // pred_region
        %s194 = ssub.s32 %s10, 1
      $region12: #{artspeech_forward.3} parent=5 // pred_fallthru
        _
      %p195 = scmp.lt.s32.totalorder %s10, 2
      // Predicated region
      $region13: #{artspeech_forward.3} parent=5 // pred_check
        %p196 = pneg %p195
      $region14: #{artspeech_forward.3} parent=5 // pred_check_branch
        %198 = sbr.rel (%p196) target = $region16
      $region15: #{artspeech_forward.3} parent=5 // pred_region
        // Predicated region
        $region17: #{artspeech_forward.3} parent=15 // pred_check
          %p199 = pneg %p52
        $region18: #{artspeech_forward.3} parent=15 // pred_check_branch
          %201 = sbr.rel (%p199) target = $region20
        $region19: #{artspeech_forward.3} parent=15 // pred_region
          %s202 = smul.u32 %s18, 2
          %s203 = ssub.s32 0, %s202
          %s204 = smul.u32 %s17, %s203
          %s205 = sadd.s32 %s18, %s204
          %s206 = smul.u32 8, %s205
          %p207 = scmp.lt.s32.totalorder %s17, 1
          %s208 = scalar_select %p207, %s17, 1
          %p209 = scmp.lt.s32.totalorder %s206, 7
          %s210 = scalar_select %p209, %s206, 7
          %s211 = smul.addr %s210, 3
          %s212 = smul.addr %s208, 24
          %s213 = sadd.s32 %s211, %s212
          %s214 = smul.addr %s213, 2
          %s215 = scalar_lea.vmem %s0, %s214
          %s216 = smul.u32 %s18, 2
          %s217 = ssub.s32 0, %s216
          %s218 = smul.u32 %s17, %s217
          %s219 = sadd.s32 %s18, %s218
          %s220 = smul.u32 8, %s219
        $region20: #{artspeech_forward.3} parent=15 // pred_fallthru
          _
        // Predicated region
        $region21: #{artspeech_forward.3} parent=15 // pred_check
          %p221 = pneg %p86
        $region22: #{artspeech_forward.3} parent=15 // pred_check_branch
          %223 = sbr.rel (%p221) target = $region24
        $region23: #{artspeech_forward.3} parent=15 // pred_region
          %s224 = smul.u32 %s18, 2
          %s225 = ssub.s32 0, %s224
          %s226 = smul.u32 %s17, %s225
          %s227 = sadd.s32 %s18, %s226
          %s228 = smul.u32 8, %s227
          %p229 = scmp.lt.s32.totalorder %s228, 7
          %s230 = scalar_select %p229, %s228, 7
          %s231 = smul.addr %s230, 2
          %s232 = scalar_lea.vmem %s1, %s231
          %s233 = smul.u32 %s18, 2
          %s234 = ssub.s32 0, %s233
          %s235 = smul.u32 %s17, %s234
          %s236 = sadd.s32 %s18, %s235
          %s237 = smul.u32 8, %s236
        $region24: #{artspeech_forward.3} parent=15 // pred_fallthru
          _
        // Predicated region
        $region25: #{artspeech_forward.3} parent=15 // pred_check
          %p238 = pneg %p112
        $region26: #{artspeech_forward.3} parent=15 // pred_check_branch
          %240 = sbr.rel (%p238) target = $region28
        $region27: #{artspeech_forward.3} parent=15 // pred_region
          %p241 = scmp.lt.s32.totalorder %s17, 1
          %s242 = scalar_select %p241, %s17, 1
          %s243 = smul.addr %s242, 48
          %s244 = smul.addr %s243, 4
          %s245 = scalar_lea.vmem %s2, %s244
        $region28: #{artspeech_forward.3} parent=15 // pred_fallthru
          _
        // Predicated region
        $region29: #{artspeech_forward.3} parent=15 // pred_check
          %p246 = pneg %p138
        $region30: #{artspeech_forward.3} parent=15 // pred_check_branch
          %248 = sbr.rel (%p246) target = $region32
        $region31: #{artspeech_forward.3} parent=15 // pred_region
          %p249 = scmp.lt.s32.totalorder %s17, 1
          %s250 = scalar_select %p249, %s17, 1
          %s251 = smul.addr %s250, 3
          %s252 = scalar_lea.vmem %s3, %s251
        $region32: #{artspeech_forward.3} parent=15 // pred_fallthru
          _
      $region16: #{artspeech_forward.3} parent=5 // pred_fallthru
        _
      %p253 = scmp.le.s32.totalorder 1, %s10
      %p254 = scmp.lt.s32.totalorder %s10, 3
      %p255 = pnand %p253, %p254
      %p256 = pneg %p255
      // Predicated region
      $region33: #{artspeech_forward.3} parent=5 // pred_check
        _
      $region34: #{artspeech_forward.3} parent=5 // pred_check_branch
        %258 = sbr.rel (%p255) target = $region36
      $region35: #{artspeech_forward.3} parent=5 // pred_region
        %s259 = ssub.s32 %s10, 1
        %s260 = smul.u32 %s20, 2
        %s261 = ssub.s32 0, %s260
        %s262 = smul.u32 %s19, %s261
        %s263 = sadd.s32 %s20, %s262
        %s264 = smul.u32 8, %s263
        %p265 = scmp.lt.s32.totalorder %s19, 1
        %s266 = scalar_select %p265, %s19, 1
        %p267 = scmp.lt.s32.totalorder %s264, 7
        %s268 = scalar_select %p267, %s264, 7
        %s269 = smul.addr %s268, 3
        %s270 = smul.addr %s266, 24
        %s271 = sadd.s32 %s269, %s270
        %s272 = smul.addr %s271, 2
        %s273 = scalar_lea.vmem %s0, %s272
        %p274 = pneg %p58
        %p275 = pneg %p55
        %s276 = smul.u32 %s20, 2
        %s277 = ssub.s32 0, %s276
        %s278 = smul.u32 %s19, %s277
        %s279 = sadd.s32 %s20, %s278
        %s280 = smul.u32 8, %s279
        %p281 = scmp.lt.s32.totalorder %s280, 7
        %s282 = scalar_select %p281, %s280, 7
        %s283 = smul.addr %s282, 2
        %s284 = scalar_lea.vmem %s1, %s283
        %p285 = pneg %p92
        %p286 = pneg %p89
        %p287 = scmp.lt.s32.totalorder %s19, 1
        %s288 = scalar_select %p287, %s19, 1
        %s289 = smul.addr %s288, 48
        %s290 = smul.addr %s289, 4
        %s291 = scalar_lea.vmem %s2, %s290
        %p292 = pneg %p118
        %p293 = pneg %p115
        %p294 = scmp.lt.s32.totalorder %s19, 1
        %s295 = scalar_select %p294, %s19, 1
        %s296 = smul.addr %s295, 3
        %s297 = scalar_lea.vmem %s3, %s296
        %p298 = pneg %p144
        %p299 = pneg %p141
        %p300 = pneg %p180
        %p301 = pneg %p177
        %s302 = sand.u32 %s167, 1
        %s303 = sand.u32 %s167, 1
        %s304 = smul.addr %s303, 8
        %s305 = scalar_lea.vmem [#allocation4], %s304
        %s306 = smul.u32 %s20, 2
        %s307 = ssub.s32 0, %s306
        %s308 = smul.u32 %s19, %s307
        %s309 = sadd.s32 %s20, %s308
        %s310 = smul.u32 8, %s309
        %p311 = scmp.lt.s32.totalorder %s19, 1
        %s312 = scalar_select %p311, %s19, 1
        %p313 = scmp.lt.s32.totalorder %s310, 7
        %s314 = scalar_select %p313, %s310, 7
        %s315 = smul.addr %s314, 3
        %s316 = smul.addr %s312, 24
        %s317 = sadd.s32 %s315, %s316
        %s318 = smul.addr %s317, 2
        %s319 = scalar_lea.vmem %s0, %s318
        %s320 = smul.u32 %s20, 2
        %s321 = ssub.s32 0, %s320
        %s322 = smul.u32 %s19, %s321
        %s323 = sadd.s32 %s20, %s322
        %s324 = smul.u32 8, %s323
        %s325 = smul.u32 %s20, 2
        %s326 = ssub.s32 0, %s325
        %s327 = smul.u32 %s19, %s326
        %s328 = sadd.s32 %s20, %s327
        %s329 = smul.u32 8, %s328
        %p330 = scmp.lt.s32.totalorder %s329, 7
        %s331 = scalar_select %p330, %s329, 7
        %s332 = smul.addr %s331, 2
        %s333 = scalar_lea.vmem %s1, %s332
        %s334 = smul.u32 %s20, 2
        %s335 = ssub.s32 0, %s334
        %s336 = smul.u32 %s19, %s335
        %s337 = sadd.s32 %s20, %s336
        %s338 = smul.u32 8, %s337
        %p339 = scmp.lt.s32.totalorder %s19, 1
        %s340 = scalar_select %p339, %s19, 1
        %s341 = smul.addr %s340, 48
        %s342 = smul.addr %s341, 4
        %s343 = scalar_lea.vmem %s2, %s342
        %p344 = scmp.lt.s32.totalorder %s19, 1
        %s345 = scalar_select %p344, %s19, 1
        %s346 = smul.addr %s345, 3
        %s347 = scalar_lea.vmem %s3, %s346
        %s348 = smul.u32 %s20, 2
        %s349 = ssub.s32 0, %s348
        %s350 = smul.u32 %s19, %s349
        %s351 = sadd.s32 %s20, %s350
        %s352 = smul.u32 8, %s351
        %p354 = scmp.eq.s32.totalorder %s20, 0
        // Predicated region
        $region37: #{artspeech_forward.3} parent=35 // pred_check
          %p355 = pneg %p354
        $region38: #{artspeech_forward.3} parent=35 // pred_check_branch
          %357 = sbr.rel (%p355) target = $region40
        $region39: #{artspeech_forward.3} parent=35 // pred_region
          %s358 = smul.u32 %s19, 2
          %s359 = scalar_lea.vmem [#allocation2], %s358
          %360 = vst [vmem:[%s359] sm:$0x3] 0.0
        $region40: #{artspeech_forward.3} parent=35 // pred_fallthru
          _
        %v361 = vld [vmem:[%s343] sm:$0xff]
        %v362 = vld [vmem:[%s343 + $0x8] sm:$0xf]
        %v363 = vld [vmem:[%s343 + $0xc] sm:$0xff]
        %v364 = vld [vmem:[%s343 + $0x14] sm:$0xf]
        %v365 = vld [vmem:[%s343 + $0x18] sm:$0xff]
        %v366 = vld [vmem:[%s343 + $0x20] sm:$0xf]
        %v367 = vld [vmem:[%s343 + $0x24] sm:$0xff]
        %v368 = vld [vmem:[%s343 + $0x2c] sm:$0xf]
        %v369 = vld [vmem:[%s343 + $0x30] sm:$0xff]
        %v370 = vld [vmem:[%s343 + $0x38] sm:$0xf]
        %v371 = vld [vmem:[%s343 + $0x3c] sm:$0xff]
        %v372 = vld [vmem:[%s343 + $0x44] sm:$0xf]
        %v373 = vld [vmem:[%s343 + $0x48] sm:$0xff]
        %v374 = vld [vmem:[%s343 + $0x50] sm:$0xf]
        %v375 = vld [vmem:[%s343 + $0x54] sm:$0xff]
        %v376 = vld [vmem:[%s343 + $0x5c] sm:$0xf]
        %v377 = vld [vmem:[%s343 + $0x60] sm:$0xff]
        %v378 = vld [vmem:[%s343 + $0x68] sm:$0xf]
        %v379 = vld [vmem:[%s343 + $0x6c] sm:$0xff]
        %v380 = vld [vmem:[%s343 + $0x74] sm:$0xf]
        %v381 = vld [vmem:[%s343 + $0x78] sm:$0xff]
        %v382 = vld [vmem:[%s343 + $0x80] sm:$0xf]
        %v383 = vld [vmem:[%s343 + $0x84] sm:$0xff]
        %v384 = vld [vmem:[%s343 + $0x8c] sm:$0xf]
        %v385 = vld [vmem:[%s343 + $0x90] sm:$0xff]
        %v386 = vld [vmem:[%s343 + $0x98] sm:$0xf]
        %v387 = vld [vmem:[%s343 + $0x9c] sm:$0xff]
        %v388 = vld [vmem:[%s343 + $0xa4] sm:$0xf]
        %v389 = vld [vmem:[%s343 + $0xa8] sm:$0xff]
        %v390 = vld [vmem:[%s343 + $0xb0] sm:$0xf]
        %v391 = vld [vmem:[%s343 + $0xb4] sm:$0xff]
        %v392 = vld [vmem:[%s343 + $0xbc] sm:$0xf]
        %v393 = vld [vmem:[%s347] sm:$0x7]
        %s394 = smul.u32 %s19, 2
        %s395 = scalar_lea.vmem [#allocation2], %s394
        %v396 = vld [vmem:[%s395] sm:$0x3]
        %s397 = smul.u32 %s19, 7
        %s398 = smul.u32 %s397, 3
        %s399 = smul.addr %s398, 2
        %s400 = scalar_lea.vmem %s319, %s399
        %v401 = vld [vmem:[%s400] sm:$0x3f]
        %s402 = smul.u32 %s397, 2
        %s403 = scalar_lea.vmem %s333, %s402
        %v404 = vld [vmem:[%s403] sm:$0x3]
        %v405 = vpack.c.bf16 %v396, %v396
        %v407 = vlaneseq
        %v408 = vshrl.u32 %v407, 7
        %v409 = vsub.s32 0, %v408
        %v410 = vrot.slane %v393, %v409
        %v411 = vlaneseq
        %v412 = vshrl.u32 %v411, 7
        %v413 = vsub.s32 1, %v412
        %v414 = vrot.slane %v393, %v413
        %v415 = vlaneseq
        %v416 = vshrl.u32 %v415, 7
        %v417 = vsub.s32 2, %v416
        %v418 = vrot.slane %v393, %v417
        %v454 = vunpack.c.l.b16 %v361
        %v455 = vunpack.c.h.b16 %v361
        %v456 = vunpack.c.l.b16 %v362
        %v457 = vunpack.c.l.b16 %v363
        %v458 = vunpack.c.h.b16 %v363
        %v459 = vunpack.c.l.b16 %v364
        %v460 = vunpack.c.l.b16 %v365
        %v461 = vunpack.c.h.b16 %v365
        %v462 = vunpack.c.l.b16 %v366
        %v463 = vunpack.c.l.b16 %v367
        %v464 = vunpack.c.h.b16 %v367
        %v465 = vunpack.c.l.b16 %v368
        %v466 = vunpack.c.l.b16 %v369
        %v467 = vunpack.c.h.b16 %v369
        %v468 = vunpack.c.l.b16 %v370
        %v469 = vunpack.c.l.b16 %v371
        %v470 = vunpack.c.h.b16 %v371
        %v471 = vunpack.c.l.b16 %v372
        %v472 = vunpack.c.l.b16 %v373
        %v473 = vunpack.c.h.b16 %v373
        %v474 = vunpack.c.l.b16 %v374
        %v475 = vunpack.c.l.b16 %v375
        %v476 = vunpack.c.h.b16 %v375
        %v477 = vunpack.c.l.b16 %v376
        %v478 = vunpack.c.l.b16 %v377
        %v479 = vunpack.c.h.b16 %v377
        %v480 = vunpack.c.l.b16 %v378
        %v481 = vunpack.c.l.b16 %v379
        %v482 = vunpack.c.h.b16 %v379
        %v483 = vunpack.c.l.b16 %v380
        %v484 = vunpack.c.l.b16 %v381
        %v485 = vunpack.c.h.b16 %v381
        %v486 = vunpack.c.l.b16 %v382
        %v487 = vunpack.c.l.b16 %v383
        %v488 = vunpack.c.h.b16 %v383
        %v489 = vunpack.c.l.b16 %v384
        %v490 = vunpack.c.l.b16 %v385
        %v491 = vunpack.c.h.b16 %v385
        %v492 = vunpack.c.l.b16 %v386
        %v493 = vunpack.c.l.b16 %v387
        %v494 = vunpack.c.h.b16 %v387
        %v495 = vunpack.c.l.b16 %v388
        %v496 = vunpack.c.l.b16 %v389
        %v497 = vunpack.c.h.b16 %v389
        %v498 = vunpack.c.l.b16 %v390
        %v499 = vunpack.c.l.b16 %v391
        %v500 = vunpack.c.h.b16 %v391
        %v501 = vunpack.c.l.b16 %v392
        %v502 = vpack.c.b16 %v457, %v454
        %v503 = vpack.c.b16 %v458, %v455
        %v504 = vpack.c.b16 %v459, %v456
        %v505 = vpack.c.b16 %v463, %v460
        %v506 = vpack.c.b16 %v464, %v461
        %v507 = vpack.c.b16 %v465, %v462
        %v508 = vpack.c.b16 %v469, %v466
        %v509 = vpack.c.b16 %v470, %v467
        %v510 = vpack.c.b16 %v471, %v468
        %v511 = vpack.c.b16 %v475, %v472
        %v512 = vpack.c.b16 %v476, %v473
        %v513 = vpack.c.b16 %v477, %v474
        %v514 = vpack.c.b16 %v481, %v478
        %v515 = vpack.c.b16 %v482, %v479
        %v516 = vpack.c.b16 %v483, %v480
        %v517 = vpack.c.b16 %v487, %v484
        %v518 = vpack.c.b16 %v488, %v485
        %v519 = vpack.c.b16 %v489, %v486
        %v520 = vpack.c.b16 %v493, %v490
        %v521 = vpack.c.b16 %v494, %v491
        %v522 = vpack.c.b16 %v495, %v492
        %v523 = vpack.c.b16 %v499, %v496
        %v524 = vpack.c.b16 %v500, %v497
        %v525 = vpack.c.b16 %v501, %v498
        %550 = vmatprep.subr.bf16.mxu0 %v503
        %551 = vmatpush1.bf16.msra.mxu0 %v502
        %552 = vmatprep.subr.bf16.mxu0 %v506
        %553 = vmatpush1.bf16.msra.mxu0 %v505
        %554 = vmatprep.subr.bf16.mxu0 %v509
        %555 = vmatpush1.bf16.msra.mxu0 %v508
        %556 = vmatprep.subr.bf16.mxu0 %v512
        %557 = vmatpush1.bf16.msra.mxu0 %v511
        %558 = vmatprep.subr.bf16.mxu0 %v515
        %559 = vmatpush1.bf16.msra.mxu0 %v514
        %560 = vmatprep.subr.bf16.mxu0 %v518
        %561 = vmatpush1.bf16.msra.mxu0 %v517
        %562 = vmatprep.subr.bf16.mxu0 %v521
        %563 = vmatpush1.bf16.msra.mxu0 %v520
        %564 = vmatprep.subr.bf16.mxu0 %v524
        %565 = vmatpush1.bf16.msra.mxu0 %v523
        %566 = vmatprep.subr.bf16.mxu0 0
        %567 = vmatpush1.bf16.msra.mxu0 0
        %568 = vmatprep.subr.bf16.mxu0 0
        %569 = vmatpush1.bf16.msra.mxu0 0
        %570 = vmatprep.subr.bf16.mxu0 0
        %571 = vmatpush1.bf16.msra.mxu0 0
        %572 = vmatprep.subr.bf16.mxu0 0
        %573 = vmatpush1.bf16.msra.mxu0 0
        %574 = vmatprep.subr.bf16.mxu0 0
        %575 = vmatpush1.bf16.msra.mxu0 0
        %576 = vmatprep.subr.bf16.mxu0 0
        %577 = vmatpush1.bf16.msra.mxu0 0
        %578 = vmatprep.subr.bf16.mxu0 0
        %579 = vmatpush1.bf16.msra.mxu0 0
        %580 = vmatprep.subr.bf16.mxu0 0
        %581 = vmatpush1.bf16.msra.mxu0 0
        %582 = vmatprep.mubr.bf16.mxu0 0
        %583 = vmatmul.mubr.bf16.gmra.mrb[0].mxu0 %v405
        %v584 = vpop.f32.mrb[0].mxu0
        %v585 = vadd.f32 %v410, %v584
        %v586 = vpop.f32.mrb[0].mxu0
        %v587 = vadd.f32 %v414, %v586
        %v588 = vpop.f32.mrb[0].mxu0
        %v589 = vpop.f32.mrb[0].mxu0
        %590 = vdwg.mxu0
        %591 = vmatprep.subr.bf16.mxu0 0
        %592 = vmatpush1.bf16.msra.mxu0 %v504
        %593 = vmatprep.subr.bf16.mxu0 0
        %594 = vmatpush1.bf16.msra.mxu0 %v507
        %595 = vmatprep.subr.bf16.mxu0 0
        %596 = vmatpush1.bf16.msra.mxu0 %v510
        %597 = vmatprep.subr.bf16.mxu0 0
        %598 = vmatpush1.bf16.msra.mxu0 %v513
        %599 = vmatprep.subr.bf16.mxu0 0
        %600 = vmatpush1.bf16.msra.mxu0 %v516
        %601 = vmatprep.subr.bf16.mxu0 0
        %602 = vmatpush1.bf16.msra.mxu0 %v519
        %603 = vmatprep.subr.bf16.mxu0 0
        %604 = vmatpush1.bf16.msra.mxu0 %v522
        %605 = vmatprep.subr.bf16.mxu0 0
        %606 = vmatpush1.bf16.msra.mxu0 %v525
        %607 = vmatprep.subr.bf16.mxu0 0
        %608 = vmatpush1.bf16.msra.mxu0 0
        %609 = vmatprep.subr.bf16.mxu0 0
        %610 = vmatpush1.bf16.msra.mxu0 0
        %611 = vmatprep.subr.bf16.mxu0 0
        %612 = vmatpush1.bf16.msra.mxu0 0
        %613 = vmatprep.subr.bf16.mxu0 0
        %614 = vmatpush1.bf16.msra.mxu0 0
        %615 = vmatprep.subr.bf16.mxu0 0
        %616 = vmatpush1.bf16.msra.mxu0 0
        %617 = vmatprep.subr.bf16.mxu0 0
        %618 = vmatpush1.bf16.msra.mxu0 0
        %619 = vmatprep.subr.bf16.mxu0 0
        %620 = vmatpush1.bf16.msra.mxu0 0
        %621 = vmatprep.subr.bf16.mxu0 0
        %622 = vmatpush1.bf16.msra.mxu0 0
        %623 = vmatprep.mubr.bf16.mxu0 0
        %624 = vmatmul.mubr.bf16.gmra.mrb[0].mxu0 %v405
        %v625 = vpop.f32.mrb[0].mxu0
        %v626 = vadd.f32 %v418, %v625
        %v627 = vpop.f32.mrb[0].mxu0
        %v628 = vpop.f32.mrb[0].mxu0
        %v629 = vpop.f32.mrb[0].mxu0
        %630 = vdwg.mxu0
        %v631 = vadd.f32 %v401, %v585
        %v632 = vxor.u32 %v631, 2147483648
        %v633 = vmul.f32 %v632, 1.442695
        %v634 = vpow.pop %v633
        %v635 = vadd.f32 %v634, 1.0
        %v636 = vrcp.pop %v635
        %v637 = vmul.f32 1.0, %v636
        %v639 = vrot.slane %v401, 2
        %v641 = vadd.f32 %v639, %v587
        %v642 = vxor.u32 %v641, 2147483648
        %v643 = vmul.f32 %v642, 1.442695
        %v644 = vpow.pop %v643
        %v645 = vadd.f32 %v644, 1.0
        %v646 = vrcp.pop %v645
        %v647 = vmul.f32 1.0, %v646
        %v648 = vmul.f32 %v637, %v626
        %v649 = vrot.slane %v401, 4
        %v651 = vadd.f32 %v649, %v648
        %v652 = vtanh.pop %v651
        %v653 = vsub.f32 1.0, %v647
        %v654 = vmul.f32 %v653, %v652
        %v655 = vmul.f32 %v647, %v396
        %v656 = vadd.f32 %v654, %v655
        %658 = vset.pattern.permute.xlu0 0
        %659 = vperm.xlu0 %658, %v404
        %v660 = vpop.permute.xlu0 %659
        %v662 = vmul.f32 %v660, %v656
        %s663 = scalar_lea.vmem [#allocation3], %s402
        %664 = vst [vmem:[%s663] sm:$0x3] %v662
        %v665 = vsub.f32 1.0, %v404
        %667 = vset.pattern.permute.xlu0 0
        %668 = vperm.xlu0 %667, %v665
        %v669 = vpop.permute.xlu0 %668
        %v671 = vmul.f32 %v669, %v396
        %v672 = vadd.f32 %v662, %v671
        %s673 = smul.u32 %s19, 5
        %s674 = sadd.s32 %s673, 1
        %s675 = smul.u32 %s674, 3
        %s676 = smul.addr %s675, 2
        %s677 = scalar_lea.vmem %s319, %s676
        %v678 = vld [vmem:[%s677] sm:$0x3f]
        %s679 = smul.u32 %s674, 2
        %s680 = scalar_lea.vmem %s333, %s679
        %v681 = vld [vmem:[%s680] sm:$0x3]
        %v682 = vpack.c.bf16 %v672, %v672
        %683 = vmatprep.subr.bf16.mxu0 %v503
        %684 = vmatpush1.bf16.msra.mxu0 %v502
        %685 = vmatprep.subr.bf16.mxu0 %v506
        %686 = vmatpush1.bf16.msra.mxu0 %v505
        %687 = vmatprep.subr.bf16.mxu0 %v509
        %688 = vmatpush1.bf16.msra.mxu0 %v508
        %689 = vmatprep.subr.bf16.mxu0 %v512
        %690 = vmatpush1.bf16.msra.mxu0 %v511
        %691 = vmatprep.subr.bf16.mxu0 %v515
        %692 = vmatpush1.bf16.msra.mxu0 %v514
        %693 = vmatprep.subr.bf16.mxu0 %v518
        %694 = vmatpush1.bf16.msra.mxu0 %v517
        %695 = vmatprep.subr.bf16.mxu0 %v521
        %696 = vmatpush1.bf16.msra.mxu0 %v520
        %697 = vmatprep.subr.bf16.mxu0 %v524
        %698 = vmatpush1.bf16.msra.mxu0 %v523
        %699 = vmatprep.subr.bf16.mxu0 0
        %700 = vmatpush1.bf16.msra.mxu0 0
        %701 = vmatprep.subr.bf16.mxu0 0
        %702 = vmatpush1.bf16.msra.mxu0 0
        %703 = vmatprep.subr.bf16.mxu0 0
        %704 = vmatpush1.bf16.msra.mxu0 0
        %705 = vmatprep.subr.bf16.mxu0 0
        %706 = vmatpush1.bf16.msra.mxu0 0
        %707 = vmatprep.subr.bf16.mxu0 0
        %708 = vmatpush1.bf16.msra.mxu0 0
        %709 = vmatprep.subr.bf16.mxu0 0
        %710 = vmatpush1.bf16.msra.mxu0 0
        %711 = vmatprep.subr.bf16.mxu0 0
        %712 = vmatpush1.bf16.msra.mxu0 0
        %713 = vmatprep.subr.bf16.mxu0 0
        %714 = vmatpush1.bf16.msra.mxu0 0
        %715 = vmatprep.mubr.bf16.mxu0 0
        %716 = vmatmul.mubr.bf16.gmra.mrb[0].mxu0 %v682
        %v717 = vpop.f32.mrb[0].mxu0
        %v718 = vadd.f32 %v410, %v717
        %v719 = vpop.f32.mrb[0].mxu0
        %v720 = vadd.f32 %v414, %v719
        %v721 = vpop.f32.mrb[0].mxu0
        %v722 = vpop.f32.mrb[0].mxu0
        %723 = vdwg.mxu0
        %724 = vmatprep.subr.bf16.mxu0 0
        %725 = vmatpush1.bf16.msra.mxu0 %v504
        %726 = vmatprep.subr.bf16.mxu0 0
        %727 = vmatpush1.bf16.msra.mxu0 %v507
        %728 = vmatprep.subr.bf16.mxu0 0
        %729 = vmatpush1.bf16.msra.mxu0 %v510
        %730 = vmatprep.subr.bf16.mxu0 0
        %731 = vmatpush1.bf16.msra.mxu0 %v513
        %732 = vmatprep.subr.bf16.mxu0 0
        %733 = vmatpush1.bf16.msra.mxu0 %v516
        %734 = vmatprep.subr.bf16.mxu0 0
        %735 = vmatpush1.bf16.msra.mxu0 %v519
        %736 = vmatprep.subr.bf16.mxu0 0
        %737 = vmatpush1.bf16.msra.mxu0 %v522
        %738 = vmatprep.subr.bf16.mxu0 0
        %739 = vmatpush1.bf16.msra.mxu0 %v525
        %740 = vmatprep.subr.bf16.mxu0 0
        %741 = vmatpush1.bf16.msra.mxu0 0
        %742 = vmatprep.subr.bf16.mxu0 0
        %743 = vmatpush1.bf16.msra.mxu0 0
        %744 = vmatprep.subr.bf16.mxu0 0
        %745 = vmatpush1.bf16.msra.mxu0 0
        %746 = vmatprep.subr.bf16.mxu0 0
        %747 = vmatpush1.bf16.msra.mxu0 0
        %748 = vmatprep.subr.bf16.mxu0 0
        %749 = vmatpush1.bf16.msra.mxu0 0
        %750 = vmatprep.subr.bf16.mxu0 0
        %751 = vmatpush1.bf16.msra.mxu0 0
        %752 = vmatprep.subr.bf16.mxu0 0
        %753 = vmatpush1.bf16.msra.mxu0 0
        %754 = vmatprep.subr.bf16.mxu0 0
        %755 = vmatpush1.bf16.msra.mxu0 0
        %756 = vmatprep.mubr.bf16.mxu0 0
        %757 = vmatmul.mubr.bf16.gmra.mrb[0].mxu0 %v682
        %v758 = vpop.f32.mrb[0].mxu0
        %v759 = vadd.f32 %v418, %v758
        %v760 = vpop.f32.mrb[0].mxu0
        %v761 = vpop.f32.mrb[0].mxu0
        %v762 = vpop.f32.mrb[0].mxu0
        %763 = vdwg.mxu0
        %v764 = vadd.f32 %v678, %v718
        %v765 = vxor.u32 %v764, 2147483648
        %v766 = vmul.f32 %v765, 1.442695
        %v767 = vpow.pop %v766
        %v768 = vadd.f32 %v767, 1.0
        %v769 = vrcp.pop %v768
        %v770 = vmul.f32 1.0, %v769
        %v772 = vrot.slane %v678, 2
        %v774 = vadd.f32 %v772, %v720
        %v775 = vxor.u32 %v774, 2147483648
        %v776 = vmul.f32 %v775, 1.442695
        %v777 = vpow.pop %v776
        %v778 = vadd.f32 %v777, 1.0
        %v779 = vrcp.pop %v778
        %v780 = vmul.f32 1.0, %v779
        %v781 = vmul.f32 %v770, %v759
        %v782 = vrot.slane %v678, 4
        %v784 = vadd.f32 %v782, %v781
        %v785 = vtanh.pop %v784
        %v786 = vsub.f32 1.0, %v780
        %v787 = vmul.f32 %v786, %v785
        %v788 = vmul.f32 %v780, %v672
        %v789 = vadd.f32 %v787, %v788
        %791 = vset.pattern.permute.xlu0 0
        %792 = vperm.xlu0 %791, %v681
        %v793 = vpop.permute.xlu0 %792
        %v795 = vmul.f32 %v793, %v789
        %s796 = scalar_lea.vmem [#allocation3], %s679
        %797 = vst [vmem:[%s796] sm:$0x3] %v795
        %v798 = vsub.f32 1.0, %v681
        %800 = vset.pattern.permute.xlu0 0
        %801 = vperm.xlu0 %800, %v798
        %v802 = vpop.permute.xlu0 %801
        %v804 = vmul.f32 %v802, %v672
        %v805 = vadd.f32 %v795, %v804
        %s806 = smul.u32 %s19, 3
        %s807 = sadd.s32 %s806, 2
        %s808 = smul.u32 %s807, 3
        %s809 = smul.addr %s808, 2
        %s810 = scalar_lea.vmem %s319, %s809
        %v811 = vld [vmem:[%s810] sm:$0x3f]
        %s812 = smul.u32 %s807, 2
        %s813 = scalar_lea.vmem %s333, %s812
        %v814 = vld [vmem:[%s813] sm:$0x3]
        %v815 = vpack.c.bf16 %v805, %v805
        %816 = vmatprep.subr.bf16.mxu0 %v503
        %817 = vmatpush1.bf16.msra.mxu0 %v502
        %818 = vmatprep.subr.bf16.mxu0 %v506
        %819 = vmatpush1.bf16.msra.mxu0 %v505
        %820 = vmatprep.subr.bf16.mxu0 %v509
        %821 = vmatpush1.bf16.msra.mxu0 %v508
        %822 = vmatprep.subr.bf16.mxu0 %v512
        %823 = vmatpush1.bf16.msra.mxu0 %v511
        %824 = vmatprep.subr.bf16.mxu0 %v515
        %825 = vmatpush1.bf16.msra.mxu0 %v514
        %826 = vmatprep.subr.bf16.mxu0 %v518
        %827 = vmatpush1.bf16.msra.mxu0 %v517
        %828 = vmatprep.subr.bf16.mxu0 %v521
        %829 = vmatpush1.bf16.msra.mxu0 %v520
        %830 = vmatprep.subr.bf16.mxu0 %v524
        %831 = vmatpush1.bf16.msra.mxu0 %v523
        %832 = vmatprep.subr.bf16.mxu0 0
        %833 = vmatpush1.bf16.msra.mxu0 0
        %834 = vmatprep.subr.bf16.mxu0 0
        %835 = vmatpush1.bf16.msra.mxu0 0
        %836 = vmatprep.subr.bf16.mxu0 0
        %837 = vmatpush1.bf16.msra.mxu0 0
        %838 = vmatprep.subr.bf16.mxu0 0
        %839 = vmatpush1.bf16.msra.mxu0 0
        %840 = vmatprep.subr.bf16.mxu0 0
        %841 = vmatpush1.bf16.msra.mxu0 0
        %842 = vmatprep.subr.bf16.mxu0 0
        %843 = vmatpush1.bf16.msra.mxu0 0
        %844 = vmatprep.subr.bf16.mxu0 0
        %845 = vmatpush1.bf16.msra.mxu0 0
        %846 = vmatprep.subr.bf16.mxu0 0
        %847 = vmatpush1.bf16.msra.mxu0 0
        %848 = vmatprep.mubr.bf16.mxu0 0
        %849 = vmatmul.mubr.bf16.gmra.mrb[0].mxu0 %v815
        %v850 = vpop.f32.mrb[0].mxu0
        %v851 = vadd.f32 %v410, %v850
        %v852 = vpop.f32.mrb[0].mxu0
        %v853 = vadd.f32 %v414, %v852
        %v854 = vpop.f32.mrb[0].mxu0
        %v855 = vpop.f32.mrb[0].mxu0
        %856 = vdwg.mxu0
        %857 = vmatprep.subr.bf16.mxu0 0
        %858 = vmatpush1.bf16.msra.mxu0 %v504
        %859 = vmatprep.subr.bf16.mxu0 0
        %860 = vmatpush1.bf16.msra.mxu0 %v507
        %861 = vmatprep.subr.bf16.mxu0 0
        %862 = vmatpush1.bf16.msra.mxu0 %v510
        %863 = vmatprep.subr.bf16.mxu0 0
        %864 = vmatpush1.bf16.msra.mxu0 %v513
        %865 = vmatprep.subr.bf16.mxu0 0
        %866 = vmatpush1.bf16.msra.mxu0 %v516
        %867 = vmatprep.subr.bf16.mxu0 0
        %868 = vmatpush1.bf16.msra.mxu0 %v519
        %869 = vmatprep.subr.bf16.mxu0 0
        %870 = vmatpush1.bf16.msra.mxu0 %v522
        %871 = vmatprep.subr.bf16.mxu0 0
        %872 = vmatpush1.bf16.msra.mxu0 %v525
        %873 = vmatprep.subr.bf16.mxu0 0
        %874 = vmatpush1.bf16.msra.mxu0 0
        %875 = vmatprep.subr.bf16.mxu0 0
        %876 = vmatpush1.bf16.msra.mxu0 0
        %877 = vmatprep.subr.bf16.mxu0 0
        %878 = vmatpush1.bf16.msra.mxu0 0
        %879 = vmatprep.subr.bf16.mxu0 0
        %880 = vmatpush1.bf16.msra.mxu0 0
        %881 = vmatprep.subr.bf16.mxu0 0
        %882 = vmatpush1.bf16.msra.mxu0 0
        %883 = vmatprep.subr.bf16.mxu0 0
        %884 = vmatpush1.bf16.msra.mxu0 0
        %885 = vmatprep.subr.bf16.mxu0 0
        %886 = vmatpush1.bf16.msra.mxu0 0
        %887 = vmatprep.subr.bf16.mxu0 0
        %888 = vmatpush1.bf16.msra.mxu0 0
        %889 = vmatprep.mubr.bf16.mxu0 0
        %890 = vmatmul.mubr.bf16.gmra.mrb[0].mxu0 %v815
        %v891 = vpop.f32.mrb[0].mxu0
        %v892 = vadd.f32 %v418, %v891
        %v893 = vpop.f32.mrb[0].mxu0
        %v894 = vpop.f32.mrb[0].mxu0
        %v895 = vpop.f32.mrb[0].mxu0
        %896 = vdwg.mxu0
        %v897 = vadd.f32 %v811, %v851
        %v898 = vxor.u32 %v897, 2147483648
        %v899 = vmul.f32 %v898, 1.442695
        %v900 = vpow.pop %v899
        %v901 = vadd.f32 %v900, 1.0
        %v902 = vrcp.pop %v901
        %v903 = vmul.f32 1.0, %v902
        %v905 = vrot.slane %v811, 2
        %v907 = vadd.f32 %v905, %v853
        %v908 = vxor.u32 %v907, 2147483648
        %v909 = vmul.f32 %v908, 1.442695
        %v910 = vpow.pop %v909
        %v911 = vadd.f32 %v910, 1.0
        %v912 = vrcp.pop %v911
        %v913 = vmul.f32 1.0, %v912
        %v914 = vmul.f32 %v903, %v892
        %v915 = vrot.slane %v811, 4
        %v917 = vadd.f32 %v915, %v914
        %v918 = vtanh.pop %v917
        %v919 = vsub.f32 1.0, %v913
        %v920 = vmul.f32 %v919, %v918
        %v921 = vmul.f32 %v913, %v805
        %v922 = vadd.f32 %v920, %v921
        %924 = vset.pattern.permute.xlu0 0
        %925 = vperm.xlu0 %924, %v814
        %v926 = vpop.permute.xlu0 %925
        %v928 = vmul.f32 %v926, %v922
        %s929 = scalar_lea.vmem [#allocation3], %s812
        %930 = vst [vmem:[%s929] sm:$0x3] %v928
        %v931 = vsub.f32 1.0, %v814
        %933 = vset.pattern.permute.xlu0 0
        %934 = vperm.xlu0 %933, %v931
        %v935 = vpop.permute.xlu0 %934
        %v937 = vmul.f32 %v935, %v805
        %v938 = vadd.f32 %v928, %v937
        %s939 = sadd.s32 %s19, 3
        %s940 = smul.u32 %s939, 3
        %s941 = smul.addr %s940, 2
        %s942 = scalar_lea.vmem %s319, %s941
        %v943 = vld [vmem:[%s942] sm:$0x3f]
        %s944 = smul.u32 %s939, 2
        %s945 = scalar_lea.vmem %s333, %s944
        %v946 = vld [vmem:[%s945] sm:$0x3]
        %v947 = vpack.c.bf16 %v938, %v938
        %948 = vmatprep.subr.bf16.mxu0 %v503
        %949 = vmatpush1.bf16.msra.mxu0 %v502
        %950 = vmatprep.subr.bf16.mxu0 %v506
        %951 = vmatpush1.bf16.msra.mxu0 %v505
        %952 = vmatprep.subr.bf16.mxu0 %v509
        %953 = vmatpush1.bf16.msra.mxu0 %v508
        %954 = vmatprep.subr.bf16.mxu0 %v512
        %955 = vmatpush1.bf16.msra.mxu0 %v511
        %956 = vmatprep.subr.bf16.mxu0 %v515
        %957 = vmatpush1.bf16.msra.mxu0 %v514
        %958 = vmatprep.subr.bf16.mxu0 %v518
        %959 = vmatpush1.bf16.msra.mxu0 %v517
        %960 = vmatprep.subr.bf16.mxu0 %v521
        %961 = vmatpush1.bf16.msra.mxu0 %v520
        %962 = vmatprep.subr.bf16.mxu0 %v524
        %963 = vmatpush1.bf16.msra.mxu0 %v523
        %964 = vmatprep.subr.bf16.mxu0 0
        %965 = vmatpush1.bf16.msra.mxu0 0
        %966 = vmatprep.subr.bf16.mxu0 0
        %967 = vmatpush1.bf16.msra.mxu0 0
        %968 = vmatprep.subr.bf16.mxu0 0
        %969 = vmatpush1.bf16.msra.mxu0 0
        %970 = vmatprep.subr.bf16.mxu0 0
        %971 = vmatpush1.bf16.msra.mxu0 0
        %972 = vmatprep.subr.bf16.mxu0 0
        %973 = vmatpush1.bf16.msra.mxu0 0
        %974 = vmatprep.subr.bf16.mxu0 0
        %975 = vmatpush1.bf16.msra.mxu0 0
        %976 = vmatprep.subr.bf16.mxu0 0
        %977 = vmatpush1.bf16.msra.mxu0 0
        %978 = vmatprep.subr.bf16.mxu0 0
        %979 = vmatpush1.bf16.msra.mxu0 0
        %980 = vmatprep.mubr.bf16.mxu0 0
        %981 = vmatmul.mubr.bf16.gmra.mrb[0].mxu0 %v947
        %v982 = vpop.f32.mrb[0].mxu0
        %v983 = vadd.f32 %v410, %v982
        %v984 = vpop.f32.mrb[0].mxu0
        %v985 = vadd.f32 %v414, %v984
        %v986 = vpop.f32.mrb[0].mxu0
        %v987 = vpop.f32.mrb[0].mxu0
        %988 = vdwg.mxu0
        %989 = vmatprep.subr.bf16.mxu0 0
        %990 = vmatpush1.bf16.msra.mxu0 %v504
        %991 = vmatprep.subr.bf16.mxu0 0
        %992 = vmatpush1.bf16.msra.mxu0 %v507
        %993 = vmatprep.subr.bf16.mxu0 0
        %994 = vmatpush1.bf16.msra.mxu0 %v510
        %995 = vmatprep.subr.bf16.mxu0 0
        %996 = vmatpush1.bf16.msra.mxu0 %v513
        %997 = vmatprep.subr.bf16.mxu0 0
        %998 = vmatpush1.bf16.msra.mxu0 %v516
        %999 = vmatprep.subr.bf16.mxu0 0
        %1000 = vmatpush1.bf16.msra.mxu0 %v519
        %1001 = vmatprep.subr.bf16.mxu0 0
        %1002 = vmatpush1.bf16.msra.mxu0 %v522
        %1003 = vmatprep.subr.bf16.mxu0 0
        %1004 = vmatpush1.bf16.msra.mxu0 %v525
        %1005 = vmatprep.subr.bf16.mxu0 0
        %1006 = vmatpush1.bf16.msra.mxu0 0
        %1007 = vmatprep.subr.bf16.mxu0 0
        %1008 = vmatpush1.bf16.msra.mxu0 0
        %1009 = vmatprep.subr.bf16.mxu0 0
        %1010 = vmatpush1.bf16.msra.mxu0 0
        %1011 = vmatprep.subr.bf16.mxu0 0
        %1012 = vmatpush1.bf16.msra.mxu0 0
        %1013 = vmatprep.subr.bf16.mxu0 0
        %1014 = vmatpush1.bf16.msra.mxu0 0
        %1015 = vmatprep.subr.bf16.mxu0 0
        %1016 = vmatpush1.bf16.msra.mxu0 0
        %1017 = vmatprep.subr.bf16.mxu0 0
        %1018 = vmatpush1.bf16.msra.mxu0 0
        %1019 = vmatprep.subr.bf16.mxu0 0
        %1020 = vmatpush1.bf16.msra.mxu0 0
        %1021 = vmatprep.mubr.bf16.mxu0 0
        %1022 = vmatmul.mubr.bf16.gmra.mrb[0].mxu0 %v947
        %v1023 = vpop.f32.mrb[0].mxu0
        %v1024 = vadd.f32 %v418, %v1023
        %v1025 = vpop.f32.mrb[0].mxu0
        %v1026 = vpop.f32.mrb[0].mxu0
        %v1027 = vpop.f32.mrb[0].mxu0
        %1028 = vdwg.mxu0
        %v1029 = vadd.f32 %v943, %v983
        %v1030 = vxor.u32 %v1029, 2147483648
        %v1031 = vmul.f32 %v1030, 1.442695
        %v1032 = vpow.pop %v1031
        %v1033 = vadd.f32 %v1032, 1.0
        %v1034 = vrcp.pop %v1033
        %v1035 = vmul.f32 1.0, %v1034
        %v1037 = vrot.slane %v943, 2
        %v1039 = vadd.f32 %v1037, %v985
        %v1040 = vxor.u32 %v1039, 2147483648
        %v1041 = vmul.f32 %v1040, 1.442695
        %v1042 = vpow.pop %v1041
        %v1043 = vadd.f32 %v1042, 1.0
        %v1044 = vrcp.pop %v1043
        %v1045 = vmul.f32 1.0, %v1044
        %v1046 = vmul.f32 %v1035, %v1024
        %v1047 = vrot.slane %v943, 4
        %v1049 = vadd.f32 %v1047, %v1046
        %v1050 = vtanh.pop %v1049
        %v1051 = vsub.f32 1.0, %v1045
        %v1052 = vmul.f32 %v1051, %v1050
        %v1053 = vmul.f32 %v1045, %v938
        %v1054 = vadd.f32 %v1052, %v1053
        %1056 = vset.pattern.permute.xlu0 0
        %1057 = vperm.xlu0 %1056, %v946
        %v1058 = vpop.permute.xlu0 %1057
        %v1060 = vmul.f32 %v1058, %v1054
        %s1061 = scalar_lea.vmem [#allocation3], %s944
        %1062 = vst [vmem:[%s1061] sm:$0x3] %v1060
        %v1063 = vsub.f32 1.0, %v946
        %1065 = vset.pattern.permute.xlu0 0
        %1066 = vperm.xlu0 %1065, %v1063
        %v1067 = vpop.permute.xlu0 %1066
        %v1069 = vmul.f32 %v1067, %v938
        %v1070 = vadd.f32 %v1060, %v1069
        %s1071 = ssub.s32 4, %s19
        %s1072 = smul.u32 %s1071, 3
        %s1073 = smul.addr %s1072, 2
        %s1074 = scalar_lea.vmem %s319, %s1073
        %v1075 = vld [vmem:[%s1074] sm:$0x3f]
        %s1076 = smul.u32 %s1071, 2
        %s1077 = scalar_lea.vmem %s333, %s1076
        %v1078 = vld [vmem:[%s1077] sm:$0x3]
        %v1079 = vpack.c.bf16 %v1070, %v1070
        %1080 = vmatprep.subr.bf16.mxu0 %v503
        %1081 = vmatpush1.bf16.msra.mxu0 %v502
        %1082 = vmatprep.subr.bf16.mxu0 %v506
        %1083 = vmatpush1.bf16.msra.mxu0 %v505
        %1084 = vmatprep.subr.bf16.mxu0 %v509
        %1085 = vmatpush1.bf16.msra.mxu0 %v508
        %1086 = vmatprep.subr.bf16.mxu0 %v512
        %1087 = vmatpush1.bf16.msra.mxu0 %v511
        %1088 = vmatprep.subr.bf16.mxu0 %v515
        %1089 = vmatpush1.bf16.msra.mxu0 %v514
        %1090 = vmatprep.subr.bf16.mxu0 %v518
        %1091 = vmatpush1.bf16.msra.mxu0 %v517
        %1092 = vmatprep.subr.bf16.mxu0 %v521
        %1093 = vmatpush1.bf16.msra.mxu0 %v520
        %1094 = vmatprep.subr.bf16.mxu0 %v524
        %1095 = vmatpush1.bf16.msra.mxu0 %v523
        %1096 = vmatprep.subr.bf16.mxu0 0
        %1097 = vmatpush1.bf16.msra.mxu0 0
        %1098 = vmatprep.subr.bf16.mxu0 0
        %1099 = vmatpush1.bf16.msra.mxu0 0
        %1100 = vmatprep.subr.bf16.mxu0 0
        %1101 = vmatpush1.bf16.msra.mxu0 0
        %1102 = vmatprep.subr.bf16.mxu0 0
        %1103 = vmatpush1.bf16.msra.mxu0 0
        %1104 = vmatprep.subr.bf16.mxu0 0
        %1105 = vmatpush1.bf16.msra.mxu0 0
        %1106 = vmatprep.subr.bf16.mxu0 0
        %1107 = vmatpush1.bf16.msra.mxu0 0
        %1108 = vmatprep.subr.bf16.mxu0 0
        %1109 = vmatpush1.bf16.msra.mxu0 0
        %1110 = vmatprep.subr.bf16.mxu0 0
        %1111 = vmatpush1.bf16.msra.mxu0 0
        %1112 = vmatprep.mubr.bf16.mxu0 0
        %1113 = vmatmul.mubr.bf16.gmra.mrb[0].mxu0 %v1079
        %v1114 = vpop.f32.mrb[0].mxu0
        %v1115 = vadd.f32 %v410, %v1114
        %v1116 = vpop.f32.mrb[0].mxu0
        %v1117 = vadd.f32 %v414, %v1116
        %v1118 = vpop.f32.mrb[0].mxu0
        %v1119 = vpop.f32.mrb[0].mxu0
        %1120 = vdwg.mxu0
        %1121 = vmatprep.subr.bf16.mxu0 0
        %1122 = vmatpush1.bf16.msra.mxu0 %v504
        %1123 = vmatprep.subr.bf16.mxu0 0
        %1124 = vmatpush1.bf16.msra.mxu0 %v507
        %1125 = vmatprep.subr.bf16.mxu0 0
        %1126 = vmatpush1.bf16.msra.mxu0 %v510
        %1127 = vmatprep.subr.bf16.mxu0 0
        %1128 = vmatpush1.bf16.msra.mxu0 %v513
        %1129 = vmatprep.subr.bf16.mxu0 0
        %1130 = vmatpush1.bf16.msra.mxu0 %v516
        %1131 = vmatprep.subr.bf16.mxu0 0
        %1132 = vmatpush1.bf16.msra.mxu0 %v519
        %1133 = vmatprep.subr.bf16.mxu0 0
        %1134 = vmatpush1.bf16.msra.mxu0 %v522
        %1135 = vmatprep.subr.bf16.mxu0 0
        %1136 = vmatpush1.bf16.msra.mxu0 %v525
        %1137 = vmatprep.subr.bf16.mxu0 0
        %1138 = vmatpush1.bf16.msra.mxu0 0
        %1139 = vmatprep.subr.bf16.mxu0 0
        %1140 = vmatpush1.bf16.msra.mxu0 0
        %1141 = vmatprep.subr.bf16.mxu0 0
        %1142 = vmatpush1.bf16.msra.mxu0 0
        %1143 = vmatprep.subr.bf16.mxu0 0
        %1144 = vmatpush1.bf16.msra.mxu0 0
        %1145 = vmatprep.subr.bf16.mxu0 0
        %1146 = vmatpush1.bf16.msra.mxu0 0
        %1147 = vmatprep.subr.bf16.mxu0 0
        %1148 = vmatpush1.bf16.msra.mxu0 0
        %1149 = vmatprep.subr.bf16.mxu0 0
        %1150 = vmatpush1.bf16.msra.mxu0 0
        %1151 = vmatprep.subr.bf16.mxu0 0
        %1152 = vmatpush1.bf16.msra.mxu0 0
        %1153 = vmatprep.mubr.bf16.mxu0 0
        %1154 = vmatmul.mubr.bf16.gmra.mrb[0].mxu0 %v1079
        %v1155 = vpop.f32.mrb[0].mxu0
        %v1156 = vadd.f32 %v418, %v1155
        %v1157 = vpop.f32.mrb[0].mxu0
        %v1158 = vpop.f32.mrb[0].mxu0
        %v1159 = vpop.f32.mrb[0].mxu0
        %1160 = vdwg.mxu0
        %v1161 = vadd.f32 %v1075, %v1115
        %v1162 = vxor.u32 %v1161, 2147483648
        %v1163 = vmul.f32 %v1162, 1.442695
        %v1164 = vpow.pop %v1163
        %v1165 = vadd.f32 %v1164, 1.0
        %v1166 = vrcp.pop %v1165
        %v1167 = vmul.f32 1.0, %v1166
        %v1169 = vrot.slane %v1075, 2
        %v1171 = vadd.f32 %v1169, %v1117
        %v1172 = vxor.u32 %v1171, 2147483648
        %v1173 = vmul.f32 %v1172, 1.442695
        %v1174 = vpow.pop %v1173
        %v1175 = vadd.f32 %v1174, 1.0
        %v1176 = vrcp.pop %v1175
        %v1177 = vmul.f32 1.0, %v1176
        %v1178 = vmul.f32 %v1167, %v1156
        %v1179 = vrot.slane %v1075, 4
        %v1181 = vadd.f32 %v1179, %v1178
        %v1182 = vtanh.pop %v1181
        %v1183 = vsub.f32 1.0, %v1177
        %v1184 = vmul.f32 %v1183, %v1182
        %v1185 = vmul.f32 %v1177, %v1070
        %v1186 = vadd.f32 %v1184, %v1185
        %1188 = vset.pattern.permute.xlu0 0
        %1189 = vperm.xlu0 %1188, %v1078
        %v1190 = vpop.permute.xlu0 %1189
        %v1192 = vmul.f32 %v1190, %v1186
        %s1193 = scalar_lea.vmem [#allocation3], %s1076
        %1194 = vst [vmem:[%s1193] sm:$0x3] %v1192
        %v1195 = vsub.f32 1.0, %v1078
        %1197 = vset.pattern.permute.xlu0 0
        %1198 = vperm.xlu0 %1197, %v1195
        %v1199 = vpop.permute.xlu0 %1198
        %v1201 = vmul.f32 %v1199, %v1070
        %v1202 = vadd.f32 %v1192, %v1201
        %s1203 = smul.u32 %s19, 4294967293
        %s1204 = sadd.s32 %s1203, 5
        %s1205 = smul.u32 %s1204, 3
        %s1206 = smul.addr %s1205, 2
        %s1207 = scalar_lea.vmem %s319, %s1206
        %v1208 = vld [vmem:[%s1207] sm:$0x3f]
        %s1209 = smul.u32 %s1204, 2
        %s1210 = scalar_lea.vmem %s333, %s1209
        %v1211 = vld [vmem:[%s1210] sm:$0x3]
        %v1212 = vpack.c.bf16 %v1202, %v1202
        %1213 = vmatprep.subr.bf16.mxu0 %v503
        %1214 = vmatpush1.bf16.msra.mxu0 %v502
        %1215 = vmatprep.subr.bf16.mxu0 %v506
        %1216 = vmatpush1.bf16.msra.mxu0 %v505
        %1217 = vmatprep.subr.bf16.mxu0 %v509
        %1218 = vmatpush1.bf16.msra.mxu0 %v508
        %1219 = vmatprep.subr.bf16.mxu0 %v512
        %1220 = vmatpush1.bf16.msra.mxu0 %v511
        %1221 = vmatprep.subr.bf16.mxu0 %v515
        %1222 = vmatpush1.bf16.msra.mxu0 %v514
        %1223 = vmatprep.subr.bf16.mxu0 %v518
        %1224 = vmatpush1.bf16.msra.mxu0 %v517
        %1225 = vmatprep.subr.bf16.mxu0 %v521
        %1226 = vmatpush1.bf16.msra.mxu0 %v520
        %1227 = vmatprep.subr.bf16.mxu0 %v524
        %1228 = vmatpush1.bf16.msra.mxu0 %v523
        %1229 = vmatprep.subr.bf16.mxu0 0
        %1230 = vmatpush1.bf16.msra.mxu0 0
        %1231 = vmatprep.subr.bf16.mxu0 0
        %1232 = vmatpush1.bf16.msra.mxu0 0
        %1233 = vmatprep.subr.bf16.mxu0 0
        %1234 = vmatpush1.bf16.msra.mxu0 0
        %1235 = vmatprep.subr.bf16.mxu0 0
        %1236 = vmatpush1.bf16.msra.mxu0 0
        %1237 = vmatprep.subr.bf16.mxu0 0
        %1238 = vmatpush1.bf16.msra.mxu0 0
        %1239 = vmatprep.subr.bf16.mxu0 0
        %1240 = vmatpush1.bf16.msra.mxu0 0
        %1241 = vmatprep.subr.bf16.mxu0 0
        %1242 = vmatpush1.bf16.msra.mxu0 0
        %1243 = vmatprep.subr.bf16.mxu0 0
        %1244 = vmatpush1.bf16.msra.mxu0 0
        %1245 = vmatprep.mubr.bf16.mxu0 0
        %1246 = vmatmul.mubr.bf16.gmra.mrb[0].mxu0 %v1212
        %v1247 = vpop.f32.mrb[0].mxu0
        %v1248 = vadd.f32 %v410, %v1247
        %v1249 = vpop.f32.mrb[0].mxu0
        %v1250 = vadd.f32 %v414, %v1249
        %v1251 = vpop.f32.mrb[0].mxu0
        %v1252 = vpop.f32.mrb[0].mxu0
        %1253 = vdwg.mxu0
        %1254 = vmatprep.subr.bf16.mxu0 0
        %1255 = vmatpush1.bf16.msra.mxu0 %v504
        %1256 = vmatprep.subr.bf16.mxu0 0
        %1257 = vmatpush1.bf16.msra.mxu0 %v507
        %1258 = vmatprep.subr.bf16.mxu0 0
        %1259 = vmatpush1.bf16.msra.mxu0 %v510
        %1260 = vmatprep.subr.bf16.mxu0 0
        %1261 = vmatpush1.bf16.msra.mxu0 %v513
        %1262 = vmatprep.subr.bf16.mxu0 0
        %1263 = vmatpush1.bf16.msra.mxu0 %v516
        %1264 = vmatprep.subr.bf16.mxu0 0
        %1265 = vmatpush1.bf16.msra.mxu0 %v519
        %1266 = vmatprep.subr.bf16.mxu0 0
        %1267 = vmatpush1.bf16.msra.mxu0 %v522
        %1268 = vmatprep.subr.bf16.mxu0 0
        %1269 = vmatpush1.bf16.msra.mxu0 %v525
        %1270 = vmatprep.subr.bf16.mxu0 0
        %1271 = vmatpush1.bf16.msra.mxu0 0
        %1272 = vmatprep.subr.bf16.mxu0 0
        %1273 = vmatpush1.bf16.msra.mxu0 0
        %1274 = vmatprep.subr.bf16.mxu0 0
        %1275 = vmatpush1.bf16.msra.mxu0 0
        %1276 = vmatprep.subr.bf16.mxu0 0
        %1277 = vmatpush1.bf16.msra.mxu0 0
        %1278 = vmatprep.subr.bf16.mxu0 0
        %1279 = vmatpush1.bf16.msra.mxu0 0
        %1280 = vmatprep.subr.bf16.mxu0 0
        %1281 = vmatpush1.bf16.msra.mxu0 0
        %1282 = vmatprep.subr.bf16.mxu0 0
        %1283 = vmatpush1.bf16.msra.mxu0 0
        %1284 = vmatprep.subr.bf16.mxu0 0
        %1285 = vmatpush1.bf16.msra.mxu0 0
        %1286 = vmatprep.mubr.bf16.mxu0 0
        %1287 = vmatmul.mubr.bf16.gmra.mrb[0].mxu0 %v1212
        %v1288 = vpop.f32.mrb[0].mxu0
        %v1289 = vadd.f32 %v418, %v1288
        %v1290 = vpop.f32.mrb[0].mxu0
        %v1291 = vpop.f32.mrb[0].mxu0
        %v1292 = vpop.f32.mrb[0].mxu0
        %1293 = vdwg.mxu0
        %v1294 = vadd.f32 %v1208, %v1248
        %v1295 = vxor.u32 %v1294, 2147483648
        %v1296 = vmul.f32 %v1295, 1.442695
        %v1297 = vpow.pop %v1296
        %v1298 = vadd.f32 %v1297, 1.0
        %v1299 = vrcp.pop %v1298
        %v1300 = vmul.f32 1.0, %v1299
        %v1302 = vrot.slane %v1208, 2
        %v1304 = vadd.f32 %v1302, %v1250
        %v1305 = vxor.u32 %v1304, 2147483648
        %v1306 = vmul.f32 %v1305, 1.442695
        %v1307 = vpow.pop %v1306
        %v1308 = vadd.f32 %v1307, 1.0
        %v1309 = vrcp.pop %v1308
        %v1310 = vmul.f32 1.0, %v1309
        %v1311 = vmul.f32 %v1300, %v1289
        %v1312 = vrot.slane %v1208, 4
        %v1314 = vadd.f32 %v1312, %v1311
        %v1315 = vtanh.pop %v1314
        %v1316 = vsub.f32 1.0, %v1310
        %v1317 = vmul.f32 %v1316, %v1315
        %v1318 = vmul.f32 %v1310, %v1202
        %v1319 = vadd.f32 %v1317, %v1318
        %1321 = vset.pattern.permute.xlu0 0
        %1322 = vperm.xlu0 %1321, %v1211
        %v1323 = vpop.permute.xlu0 %1322
        %v1325 = vmul.f32 %v1323, %v1319
        %s1326 = scalar_lea.vmem [#allocation3], %s1209
        %1327 = vst [vmem:[%s1326] sm:$0x3] %v1325
        %v1328 = vsub.f32 1.0, %v1211
        %1330 = vset.pattern.permute.xlu0 0
        %1331 = vperm.xlu0 %1330, %v1328
        %v1332 = vpop.permute.xlu0 %1331
        %v1334 = vmul.f32 %v1332, %v1202
        %v1335 = vadd.f32 %v1325, %v1334
        %s1336 = smul.u32 %s19, 4294967291
        %s1337 = sadd.s32 %s1336, 6
        %s1338 = smul.u32 %s1337, 3
        %s1339 = smul.addr %s1338, 2
        %s1340 = scalar_lea.vmem %s319, %s1339
        %v1341 = vld [vmem:[%s1340] sm:$0x3f]
        %s1342 = smul.u32 %s1337, 2
        %s1343 = scalar_lea.vmem %s333, %s1342
        %v1344 = vld [vmem:[%s1343] sm:$0x3]
        %v1345 = vpack.c.bf16 %v1335, %v1335
        %1346 = vmatprep.subr.bf16.mxu0 %v503
        %1347 = vmatpush1.bf16.msra.mxu0 %v502
        %1348 = vmatprep.subr.bf16.mxu0 %v506
        %1349 = vmatpush1.bf16.msra.mxu0 %v505
        %1350 = vmatprep.subr.bf16.mxu0 %v509
        %1351 = vmatpush1.bf16.msra.mxu0 %v508
        %1352 = vmatprep.subr.bf16.mxu0 %v512
        %1353 = vmatpush1.bf16.msra.mxu0 %v511
        %1354 = vmatprep.subr.bf16.mxu0 %v515
        %1355 = vmatpush1.bf16.msra.mxu0 %v514
        %1356 = vmatprep.subr.bf16.mxu0 %v518
        %1357 = vmatpush1.bf16.msra.mxu0 %v517
        %1358 = vmatprep.subr.bf16.mxu0 %v521
        %1359 = vmatpush1.bf16.msra.mxu0 %v520
        %1360 = vmatprep.subr.bf16.mxu0 %v524
        %1361 = vmatpush1.bf16.msra.mxu0 %v523
        %1362 = vmatprep.subr.bf16.mxu0 0
        %1363 = vmatpush1.bf16.msra.mxu0 0
        %1364 = vmatprep.subr.bf16.mxu0 0
        %1365 = vmatpush1.bf16.msra.mxu0 0
        %1366 = vmatprep.subr.bf16.mxu0 0
        %1367 = vmatpush1.bf16.msra.mxu0 0
        %1368 = vmatprep.subr.bf16.mxu0 0
        %1369 = vmatpush1.bf16.msra.mxu0 0
        %1370 = vmatprep.subr.bf16.mxu0 0
        %1371 = vmatpush1.bf16.msra.mxu0 0
        %1372 = vmatprep.subr.bf16.mxu0 0
        %1373 = vmatpush1.bf16.msra.mxu0 0
        %1374 = vmatprep.subr.bf16.mxu0 0
        %1375 = vmatpush1.bf16.msra.mxu0 0
        %1376 = vmatprep.subr.bf16.mxu0 0
        %1377 = vmatpush1.bf16.msra.mxu0 0
        %1378 = vmatprep.mubr.bf16.mxu0 0
        %1379 = vmatmul.mubr.bf16.gmra.mrb[0].mxu0 %v1345
        %v1380 = vpop.f32.mrb[0].mxu0
        %v1381 = vadd.f32 %v410, %v1380
        %v1382 = vpop.f32.mrb[0].mxu0
        %v1383 = vadd.f32 %v414, %v1382
        %v1384 = vpop.f32.mrb[0].mxu0
        %v1385 = vpop.f32.mrb[0].mxu0
        %1386 = vdwg.mxu0
        %1387 = vmatprep.subr.bf16.mxu0 0
        %1388 = vmatpush1.bf16.msra.mxu0 %v504
        %1389 = vmatprep.subr.bf16.mxu0 0
        %1390 = vmatpush1.bf16.msra.mxu0 %v507
        %1391 = vmatprep.subr.bf16.mxu0 0
        %1392 = vmatpush1.bf16.msra.mxu0 %v510
        %1393 = vmatprep.subr.bf16.mxu0 0
        %1394 = vmatpush1.bf16.msra.mxu0 %v513
        %1395 = vmatprep.subr.bf16.mxu0 0
        %1396 = vmatpush1.bf16.msra.mxu0 %v516
        %1397 = vmatprep.subr.bf16.mxu0 0
        %1398 = vmatpush1.bf16.msra.mxu0 %v519
        %1399 = vmatprep.subr.bf16.mxu0 0
        %1400 = vmatpush1.bf16.msra.mxu0 %v522
        %1401 = vmatprep.subr.bf16.mxu0 0
        %1402 = vmatpush1.bf16.msra.mxu0 %v525
        %1403 = vmatprep.subr.bf16.mxu0 0
        %1404 = vmatpush1.bf16.msra.mxu0 0
        %1405 = vmatprep.subr.bf16.mxu0 0
        %1406 = vmatpush1.bf16.msra.mxu0 0
        %1407 = vmatprep.subr.bf16.mxu0 0
        %1408 = vmatpush1.bf16.msra.mxu0 0
        %1409 = vmatprep.subr.bf16.mxu0 0
        %1410 = vmatpush1.bf16.msra.mxu0 0
        %1411 = vmatprep.subr.bf16.mxu0 0
        %1412 = vmatpush1.bf16.msra.mxu0 0
        %1413 = vmatprep.subr.bf16.mxu0 0
        %1414 = vmatpush1.bf16.msra.mxu0 0
        %1415 = vmatprep.subr.bf16.mxu0 0
        %1416 = vmatpush1.bf16.msra.mxu0 0
        %1417 = vmatprep.subr.bf16.mxu0 0
        %1418 = vmatpush1.bf16.msra.mxu0 0
        %1419 = vmatprep.mubr.bf16.mxu0 0
        %1420 = vmatmul.mubr.bf16.gmra.mrb[0].mxu0 %v1345
        %v1421 = vpop.f32.mrb[0].mxu0
        %v1422 = vadd.f32 %v418, %v1421
        %v1423 = vpop.f32.mrb[0].mxu0
        %v1424 = vpop.f32.mrb[0].mxu0
        %v1425 = vpop.f32.mrb[0].mxu0
        %1426 = vdwg.mxu0
        %v1427 = vadd.f32 %v1341, %v1381
        %v1428 = vxor.u32 %v1427, 2147483648
        %v1429 = vmul.f32 %v1428, 1.442695
        %v1430 = vpow.pop %v1429
        %v1431 = vadd.f32 %v1430, 1.0
        %v1432 = vrcp.pop %v1431
        %v1433 = vmul.f32 1.0, %v1432
        %v1435 = vrot.slane %v1341, 2
        %v1437 = vadd.f32 %v1435, %v1383
        %v1438 = vxor.u32 %v1437, 2147483648
        %v1439 = vmul.f32 %v1438, 1.442695
        %v1440 = vpow.pop %v1439
        %v1441 = vadd.f32 %v1440, 1.0
        %v1442 = vrcp.pop %v1441
        %v1443 = vmul.f32 1.0, %v1442
        %v1444 = vmul.f32 %v1433, %v1422
        %v1445 = vrot.slane %v1341, 4
        %v1447 = vadd.f32 %v1445, %v1444
        %v1448 = vtanh.pop %v1447
        %v1449 = vsub.f32 1.0, %v1443
        %v1450 = vmul.f32 %v1449, %v1448
        %v1451 = vmul.f32 %v1443, %v1335
        %v1452 = vadd.f32 %v1450, %v1451
        %1454 = vset.pattern.permute.xlu0 0
        %1455 = vperm.xlu0 %1454, %v1344
        %v1456 = vpop.permute.xlu0 %1455
        %v1458 = vmul.f32 %v1456, %v1452
        %s1459 = scalar_lea.vmem [#allocation3], %s1342
        %1460 = vst [vmem:[%s1459] sm:$0x3] %v1458
        %v1461 = vsub.f32 1.0, %v1344
        %1463 = vset.pattern.permute.xlu0 0
        %1464 = vperm.xlu0 %1463, %v1461
        %v1465 = vpop.permute.xlu0 %1464
        %v1467 = vmul.f32 %v1465, %v1335
        %v1468 = vadd.f32 %v1458, %v1467
        %s1469 = smul.u32 %s19, 4294967289
        %s1470 = sadd.s32 %s1469, 7
        %s1471 = smul.u32 %s1470, 3
        %s1472 = smul.addr %s1471, 2
        %s1473 = scalar_lea.vmem %s319, %s1472
        %v1474 = vld [vmem:[%s1473] sm:$0x3f]
        %s1475 = smul.u32 %s1470, 2
        %s1476 = scalar_lea.vmem %s333, %s1475
        %v1477 = vld [vmem:[%s1476] sm:$0x3]
        %v1478 = vpack.c.bf16 %v1468, %v1468
        %1479 = vmatprep.subr.bf16.mxu0 %v503
        %1480 = vmatpush1.bf16.msra.mxu0 %v502
        %1481 = vmatprep.subr.bf16.mxu0 %v506
        %1482 = vmatpush1.bf16.msra.mxu0 %v505
        %1483 = vmatprep.subr.bf16.mxu0 %v509
        %1484 = vmatpush1.bf16.msra.mxu0 %v508
        %1485 = vmatprep.subr.bf16.mxu0 %v512
        %1486 = vmatpush1.bf16.msra.mxu0 %v511
        %1487 = vmatprep.subr.bf16.mxu0 %v515
        %1488 = vmatpush1.bf16.msra.mxu0 %v514
        %1489 = vmatprep.subr.bf16.mxu0 %v518
        %1490 = vmatpush1.bf16.msra.mxu0 %v517
        %1491 = vmatprep.subr.bf16.mxu0 %v521
        %1492 = vmatpush1.bf16.msra.mxu0 %v520
        %1493 = vmatprep.subr.bf16.mxu0 %v524
        %1494 = vmatpush1.bf16.msra.mxu0 %v523
        %1495 = vmatprep.subr.bf16.mxu0 0
        %1496 = vmatpush1.bf16.msra.mxu0 0
        %1497 = vmatprep.subr.bf16.mxu0 0
        %1498 = vmatpush1.bf16.msra.mxu0 0
        %1499 = vmatprep.subr.bf16.mxu0 0
        %1500 = vmatpush1.bf16.msra.mxu0 0
        %1501 = vmatprep.subr.bf16.mxu0 0
        %1502 = vmatpush1.bf16.msra.mxu0 0
        %1503 = vmatprep.subr.bf16.mxu0 0
        %1504 = vmatpush1.bf16.msra.mxu0 0
        %1505 = vmatprep.subr.bf16.mxu0 0
        %1506 = vmatpush1.bf16.msra.mxu0 0
        %1507 = vmatprep.subr.bf16.mxu0 0
        %1508 = vmatpush1.bf16.msra.mxu0 0
        %1509 = vmatprep.subr.bf16.mxu0 0
        %1510 = vmatpush1.bf16.msra.mxu0 0
        %1511 = vmatprep.mubr.bf16.mxu0 0
        %1512 = vmatmul.mubr.bf16.gmra.mrb[0].mxu0 %v1478
        %v1513 = vpop.f32.mrb[0].mxu0
        %v1514 = vadd.f32 %v410, %v1513
        %v1515 = vpop.f32.mrb[0].mxu0
        %v1516 = vadd.f32 %v414, %v1515
        %v1517 = vpop.f32.mrb[0].mxu0
        %v1518 = vpop.f32.mrb[0].mxu0
        %1519 = vdwg.mxu0
        %1520 = vmatprep.subr.bf16.mxu0 0
        %1521 = vmatpush1.bf16.msra.mxu0 %v504
        %1522 = vmatprep.subr.bf16.mxu0 0
        %1523 = vmatpush1.bf16.msra.mxu0 %v507
        %1524 = vmatprep.subr.bf16.mxu0 0
        %1525 = vmatpush1.bf16.msra.mxu0 %v510
        %1526 = vmatprep.subr.bf16.mxu0 0
        %1527 = vmatpush1.bf16.msra.mxu0 %v513
        %1528 = vmatprep.subr.bf16.mxu0 0
        %1529 = vmatpush1.bf16.msra.mxu0 %v516
        %1530 = vmatprep.subr.bf16.mxu0 0
        %1531 = vmatpush1.bf16.msra.mxu0 %v519
        %1532 = vmatprep.subr.bf16.mxu0 0
        %1533 = vmatpush1.bf16.msra.mxu0 %v522
        %1534 = vmatprep.subr.bf16.mxu0 0
        %1535 = vmatpush1.bf16.msra.mxu0 %v525
        %1536 = vmatprep.subr.bf16.mxu0 0
        %1537 = vmatpush1.bf16.msra.mxu0 0
        %1538 = vmatprep.subr.bf16.mxu0 0
        %1539 = vmatpush1.bf16.msra.mxu0 0
        %1540 = vmatprep.subr.bf16.mxu0 0
        %1541 = vmatpush1.bf16.msra.mxu0 0
        %1542 = vmatprep.subr.bf16.mxu0 0
        %1543 = vmatpush1.bf16.msra.mxu0 0
        %1544 = vmatprep.subr.bf16.mxu0 0
        %1545 = vmatpush1.bf16.msra.mxu0 0
        %1546 = vmatprep.subr.bf16.mxu0 0
        %1547 = vmatpush1.bf16.msra.mxu0 0
        %1548 = vmatprep.subr.bf16.mxu0 0
        %1549 = vmatpush1.bf16.msra.mxu0 0
        %1550 = vmatprep.subr.bf16.mxu0 0
        %1551 = vmatpush1.bf16.msra.mxu0 0
        %1552 = vmatprep.mubr.bf16.mxu0 0
        %1553 = vmatmul.mubr.bf16.gmra.mrb[0].mxu0 %v1478
        %v1554 = vpop.f32.mrb[0].mxu0
        %v1555 = vadd.f32 %v418, %v1554
        %v1556 = vpop.f32.mrb[0].mxu0
        %v1557 = vpop.f32.mrb[0].mxu0
        %v1558 = vpop.f32.mrb[0].mxu0
        %1559 = vdwg.mxu0
        %v1560 = vadd.f32 %v1474, %v1514
        %v1561 = vxor.u32 %v1560, 2147483648
        %v1562 = vmul.f32 %v1561, 1.442695
        %v1563 = vpow.pop %v1562
        %v1564 = vadd.f32 %v1563, 1.0
        %v1565 = vrcp.pop %v1564
        %v1566 = vmul.f32 1.0, %v1565
        %v1568 = vrot.slane %v1474, 2
        %v1570 = vadd.f32 %v1568, %v1516
        %v1571 = vxor.u32 %v1570, 2147483648
        %v1572 = vmul.f32 %v1571, 1.442695
        %v1573 = vpow.pop %v1572
        %v1574 = vadd.f32 %v1573, 1.0
        %v1575 = vrcp.pop %v1574
        %v1576 = vmul.f32 1.0, %v1575
        %v1577 = vmul.f32 %v1566, %v1555
        %v1578 = vrot.slane %v1474, 4
        %v1580 = vadd.f32 %v1578, %v1577
        %v1581 = vtanh.pop %v1580
        %v1582 = vsub.f32 1.0, %v1576
        %v1583 = vmul.f32 %v1582, %v1581
        %v1584 = vmul.f32 %v1576, %v1468
        %v1585 = vadd.f32 %v1583, %v1584
        %1587 = vset.pattern.permute.xlu0 0
        %1588 = vperm.xlu0 %1587, %v1477
        %v1589 = vpop.permute.xlu0 %1588
        %v1591 = vmul.f32 %v1589, %v1585
        %s1592 = scalar_lea.vmem [#allocation3], %s1475
        %1593 = vst [vmem:[%s1592] sm:$0x3] %v1591
        %v1594 = vsub.f32 1.0, %v1477
        %1596 = vset.pattern.permute.xlu0 0
        %1597 = vperm.xlu0 %1596, %v1594
        %v1598 = vpop.permute.xlu0 %1597
        %v1600 = vmul.f32 %v1598, %v1468
        %v1601 = vadd.f32 %v1591, %v1600
        %1602 = vst [vmem:[%s395] sm:$0x3] %v1601
        %v1603 = vld [vmem:[#allocation3] sm:$0x3]
        %v1604 = vld [vmem:[#allocation3 + $0x2] sm:$0x3]
        %v1605 = vld [vmem:[#allocation3 + $0x4] sm:$0x3]
        %v1606 = vld [vmem:[#allocation3 + $0x6] sm:$0x3]
        %v1607 = vld [vmem:[#allocation3 + $0x8] sm:$0x3]
        %v1608 = vld [vmem:[#allocation3 + $0xa] sm:$0x3]
        %v1609 = vld [vmem:[#allocation3 + $0xc] sm:$0x3]
        %v1610 = vld [vmem:[#allocation3 + $0xe] sm:$0x3]
        %v1611 = vpack.c.bf16 %v1603, %v1603
        %v1612 = vpack.c.bf16 %v1604, %v1604
        %v1613 = vpack.c.bf16 %v1605, %v1605
        %v1614 = vpack.c.bf16 %v1606, %v1606
        %v1615 = vpack.c.bf16 %v1607, %v1607
        %v1616 = vpack.c.bf16 %v1608, %v1608
        %v1617 = vpack.c.bf16 %v1609, %v1609
        %v1618 = vpack.c.bf16 %v1610, %v1610
        %1619 = vst [vmem:[%s305] sm:$0x1] %v1611
        %1620 = vst [vmem:[%s305 + $0x1] sm:$0x1] %v1612
        %1621 = vst [vmem:[%s305 + $0x2] sm:$0x1] %v1613
        %1622 = vst [vmem:[%s305 + $0x3] sm:$0x1] %v1614
        %1623 = vst [vmem:[%s305 + $0x4] sm:$0x1] %v1615
        %1624 = vst [vmem:[%s305 + $0x5] sm:$0x1] %v1616
        %1625 = vst [vmem:[%s305 + $0x6] sm:$0x1] %v1617
        %1626 = vst [vmem:[%s305 + $0x7] sm:$0x1] %v1618
        %s1627 = sand.u32 %s167, 1
        %s1628 = sand.u32 %s167, 1
        %s1629 = smul.addr %s1628, 8
        %s1630 = scalar_lea.vmem [#allocation4], %s1629
        // Predicated region
        $region41: #{artspeech_forward.3} parent=35 // pred_check
          %p1631 = pneg %p177
        $region42: #{artspeech_forward.3} parent=35 // pred_check_branch
          %1633 = sbr.rel (%p1631) target = $region44
        $region43: #{artspeech_forward.3} parent=35 // pred_region
          %s1634 = smul.u32 %s20, 2
          %s1635 = ssub.s32 0, %s1634
          %s1636 = smul.u32 %s19, %s1635
          %s1637 = sadd.s32 %s20, %s1636
          %s1638 = smul.u32 8, %s1637
          %s1639 = smul.addr %s1638, 2
          %s1640 = sadd.s32 %s19, %s1639
          %s1641 = scalar_lea.vmem %s4, %s1640
          // Predicated region
          $region45: #{artspeech_forward.3} parent=43 // pred_check
            _
          $region46: #{artspeech_forward.3} parent=43 // pred_check_branch
            %1643 = sbr.rel (0) target = $region48
          $region47: #{artspeech_forward.3} parent=43 // pred_region
            // Predicated region
            $region49: #{artspeech_forward.3} parent=47 // pred_check
              _
            $region50: #{artspeech_forward.3} parent=47 // pred_check_branch
              %1645 = sbr.rel target = $region52
            $region51: #{artspeech_forward.3} parent=47 // pred_region
              // Predicated region
              $region64: #{artspeech_forward.3} parent=51 // pred_check
                _
              $region65: #{artspeech_forward.3} parent=51 // pred_check_branch
                %1674 = sbr.rel (0) target = $region67
              $region66: #{artspeech_forward.3} parent=51 // pred_region
                loop: start=0, step=1, limit=1
                $region68: #{artspeech_forward.3} parent=66 // loop_pre_header
                  _
                $region69: #{artspeech_forward.3} parent=66 // loop_header
                  %s1676 = sphi 0, %s1680
                  %p1677 = scmp.ge.s32.totalorder %s1676, 1
                  %s1681 = sphi %s1630, %s1630
                  %s1682 = sphi %s1641, %s1641
                $region70: #{artspeech_forward.3} parent=66 // loop_header_branch
                  %1679 = sbr.rel (%p1677) target = $region74
                $region71: #{artspeech_forward.3} parent=66 // loop_body
                  _
                $region72: #{artspeech_forward.3} parent=66 // loop_footer
                  %s1680 = sadd.s32 1, %s1676
                $region73: #{artspeech_forward.3} parent=66 // loop_footer_branch
                  %1675 = sbr.rel target = $region69
                $region74: #{artspeech_forward.3} parent=66 // loop_exit
                  _
                loop: start=0, step=1, limit=1
                $region75: #{artspeech_forward.3} parent=66 // loop_pre_header
                  _
                $region76: #{artspeech_forward.3} parent=66 // loop_header
                  %s1685 = sphi 0, %s1689
                  %p1686 = scmp.ge.s32.totalorder %s1685, 1
                  %s1690 = sphi %s1630, %s1630
                  %s1691 = sphi %s1641, %s1641
                $region77: #{artspeech_forward.3} parent=66 // loop_header_branch
                  %1688 = sbr.rel (%p1686) target = $region81
                $region78: #{artspeech_forward.3} parent=66 // loop_body
                  %v1692 = vld [vmem:[%s1690] sm:$0x1]
                  %1693 = vst [vmem:[%s1691] sm:$0x1] %v1692
                  %v1694 = vld [vmem:[%s1690 + $0x1] sm:$0x1]
                  %1695 = vst [vmem:[%s1691 + $0x2] sm:$0x1] %v1694
                  %v1696 = vld [vmem:[%s1690 + $0x2] sm:$0x1]
                  %1697 = vst [vmem:[%s1691 + $0x4] sm:$0x1] %v1696
                  %v1698 = vld [vmem:[%s1690 + $0x3] sm:$0x1]
                  %1699 = vst [vmem:[%s1691 + $0x6] sm:$0x1] %v1698
                  %v1700 = vld [vmem:[%s1690 + $0x4] sm:$0x1]
                  %1701 = vst [vmem:[%s1691 + $0x8] sm:$0x1] %v1700
                  %v1702 = vld [vmem:[%s1690 + $0x5] sm:$0x1]
                  %1703 = vst [vmem:[%s1691 + $0xa] sm:$0x1] %v1702
                  %v1704 = vld [vmem:[%s1690 + $0x6] sm:$0x1]
                  %1705 = vst [vmem:[%s1691 + $0xc] sm:$0x1] %v1704
                  %v1706 = vld [vmem:[%s1690 + $0x7] sm:$0x1]
                  %1707 = vst [vmem:[%s1691 + $0xe] sm:$0x1] %v1706
                $region79: #{artspeech_forward.3} parent=66 // loop_footer
                  %s1689 = sadd.s32 1, %s1685
                $region80: #{artspeech_forward.3} parent=66 // loop_footer_branch
                  %1684 = sbr.rel target = $region76
                $region81: #{artspeech_forward.3} parent=66 // loop_exit
                  _
              $region67: #{artspeech_forward.3} parent=51 // pred_fallthru
                _
            $region52: #{artspeech_forward.3} parent=47 // pred_fallthru
              _
            // Predicated region
            $region53: #{artspeech_forward.3} parent=47 // pred_check
              _
            $region54: #{artspeech_forward.3} parent=47 // pred_check_branch
              %1647 = sbr.rel (0) target = $region56
            $region55: #{artspeech_forward.3} parent=47 // pred_region
              loop: start=0, step=1, limit=1
              $region57: #{artspeech_forward.3} parent=55 // loop_pre_header
                _
              $region58: #{artspeech_forward.3} parent=55 // loop_header
                %s1650 = sphi 0, %s1654
                %p1651 = scmp.ge.s32.totalorder %s1650, 1
                %s1655 = sphi %s1630, %s1630
                %s1656 = sphi %s1641, %s1641
              $region59: #{artspeech_forward.3} parent=55 // loop_header_branch
                %1653 = sbr.rel (%p1651) target = $region63
              $region60: #{artspeech_forward.3} parent=55 // loop_body
                %v1657 = vld [vmem:[%s1655] sm:$0x1]
                %1658 = vst [vmem:[%s1656] sm:$0x1] %v1657
                %v1659 = vld [vmem:[%s1655 + $0x1] sm:$0x1]
                %1660 = vst [vmem:[%s1656 + $0x2] sm:$0x1] %v1659
                %v1661 = vld [vmem:[%s1655 + $0x2] sm:$0x1]
                %1662 = vst [vmem:[%s1656 + $0x4] sm:$0x1] %v1661
                %v1663 = vld [vmem:[%s1655 + $0x3] sm:$0x1]
                %1664 = vst [vmem:[%s1656 + $0x6] sm:$0x1] %v1663
                %v1665 = vld [vmem:[%s1655 + $0x4] sm:$0x1]
                %1666 = vst [vmem:[%s1656 + $0x8] sm:$0x1] %v1665
                %v1667 = vld [vmem:[%s1655 + $0x5] sm:$0x1]
                %1668 = vst [vmem:[%s1656 + $0xa] sm:$0x1] %v1667
                %v1669 = vld [vmem:[%s1655 + $0x6] sm:$0x1]
                %1670 = vst [vmem:[%s1656 + $0xc] sm:$0x1] %v1669
                %v1671 = vld [vmem:[%s1655 + $0x7] sm:$0x1]
                %1672 = vst [vmem:[%s1656 + $0xe] sm:$0x1] %v1671
              $region61: #{artspeech_forward.3} parent=55 // loop_footer
                %s1654 = sadd.s32 1, %s1650
              $region62: #{artspeech_forward.3} parent=55 // loop_footer_branch
                %1649 = sbr.rel target = $region58
              $region63: #{artspeech_forward.3} parent=55 // loop_exit
                _
            $region56: #{artspeech_forward.3} parent=47 // pred_fallthru
              _
          $region48: #{artspeech_forward.3} parent=43 // pred_fallthru
            _
          %1708 = vnop
        $region44: #{artspeech_forward.3} parent=35 // pred_fallthru
          _
      $region36: #{artspeech_forward.3} parent=5 // pred_fallthru
        _
      %p1709 = scmp.le.s32.totalorder 2, %s10
      // Predicated region
      $region82: #{artspeech_forward.3} parent=5 // pred_check
        %p1710 = pneg %p1709
      $region83: #{artspeech_forward.3} parent=5 // pred_check_branch
        %1712 = sbr.rel (%p1710) target = $region85
      $region84: #{artspeech_forward.3} parent=5 // pred_region
        %s1713 = ssub.s32 %s10, 2
        // Predicated region
        $region86: #{artspeech_forward.3} parent=84 // pred_check
          %p1714 = pneg %p183
        $region87: #{artspeech_forward.3} parent=84 // pred_check_branch
          %1716 = sbr.rel (%p1714) target = $region89
        $region88: #{artspeech_forward.3} parent=84 // pred_region
          %s1717 = sand.u32 %s168, 1
          %s1718 = sand.u32 %s168, 1
          %s1719 = smul.addr %s1718, 8
          %s1720 = scalar_lea.vmem [#allocation4], %s1719
        $region89: #{artspeech_forward.3} parent=84 // pred_fallthru
          _
      $region85: #{artspeech_forward.3} parent=5 // pred_fallthru
        _
    $region6: #{artspeech_forward.3} parent=1 // loop_footer
      %s14 = sadd.s32 1, %s10
    $region7: #{artspeech_forward.3} parent=1 // loop_footer_branch
      %9 = sbr.rel target = $region3
    $region8: #{artspeech_forward.3} parent=1 // loop_exit
      _

</llo_original>
